<compile_context>
chip_gen: v7x
topology: tpu7x:2x2x1
jax: 0.10.0
libtpu: 0.0.40
codegen_flags: <defaults>
</compile_context>

<pallas_src>
import functools

import jax
import jax.numpy as jnp
from jax.experimental import pallas as pl
from jax.experimental.pallas import tpu as pltpu


# MXU operand dtype (f32 accumulation is always used via preferred_element_type).
# Set to jnp.float32 for bit-closer numerics; bfloat16 is native on the v5e/v6e/v7x MXU.
_MXU_DTYPE = jnp.bfloat16

_VMEM = pl.BlockSpec(memory_space=pltpu.MemorySpace.VMEM)


def _mxu_dot(a, w):
    """MXU matmul: bf16 operands, f32 accumulation."""
    return jnp.dot(a.astype(_MXU_DTYPE), w.astype(_MXU_DTYPE),
                   preferred_element_type=jnp.float32)


# ----------------------------------------------------------------------------
# Pallas kernels
# ----------------------------------------------------------------------------
def _conv_ht_kernel(p_ref, w_ref, b_ref, o_ref):
    """Packed complex matmul + bias + complex_hardtanh (conv1 stage)."""
    y = _mxu_dot(p_ref[...], w_ref[...]) + b_ref[...]
    o_ref[...] = jnp.clip(y, -1.0, 1.0)


def _conv_bn_ht_kernel(p_ref, w_ref, b_ref, bn_ref, o_ref, *, c, eps):
    """conv2 (packed complex matmul + bias) + ComplexBatchNorm2d + hardtanh, fused.

    The conv output stays in its natural (M = B*H*W, 2C) packed layout; per-channel
    batch statistics are reductions over axis 0.
    """
    z = _mxu_dot(p_ref[...], w_ref[...]) + b_ref[...]      # (M, 2C) f32
    zr, zi = z[:, :c], z[:, c:]

    # --- ComplexBatchNorm2d, training/batch statistics (whitening form) ---
    mean_r = jnp.mean(zr, axis=0, keepdims=True)
    mean_i = jnp.mean(zi, axis=0, keepdims=True)
    cr = zr - mean_r
    ci = zi - mean_i
    crr = jnp.mean(cr * cr, axis=0, keepdims=True) + eps
    cii = jnp.mean(ci * ci, axis=0, keepdims=True) + eps
    cri = jnp.mean(cr * ci, axis=0, keepdims=True)
    det = crr * cii - cri * cri
    s = jnp.sqrt(det)
    t = jnp.sqrt(crr + cii + 2.0 * s)
    # exact divide kept (near-singular covariance concern); it is a tiny (1, C) op.
    inv_st = 1.0 / (s * t)
    rrr = (cii + s) * inv_st
    rii = (crr + s) * inv_st
    rri = -cri * inv_st
    yr = rrr * cr + rri * ci
    yi = rii * ci + rri * cr

    # affine: weight = [Wrr, Wii, Wri], bias = [br, bi]  (complexPyTorch convention)
    bn = bn_ref[...]
    wrr, wii, wri = bn[0:1], bn[1:2], bn[2:3]
    beta_r, beta_i = bn[3:4], bn[4:5]
    out_r = jnp.clip(wrr * yr + wri * yi + beta_r, -1.0, 1.0)
    out_i = jnp.clip(wri * yr + wii * yi + beta_i, -1.0, 1.0)
    o_ref[:, :c] = out_r
    o_ref[:, c:] = out_i


def _tail_kernel(p4_ref, w4_ref, b4_ref, w1_ref, b1_ref, w2_ref, b2_ref,
                 o_ref, flat_ref, *, batch, n_pos, c4):
    """conv4 + hardtanh + flatten + L1 + hardtanh + L2, fused in one kernel.

    p4 rows are ordered (spatial position, batch); the flatten writes (batch, 2*800)
    into a VMEM scratch (L1 weights were row-permuted on the host to match).
    """
    # conv4 + complex_hardtanh : (n_pos*B, 2*K4) @ (2*K4, 2*C4)
    y4 = jnp.clip(_mxu_dot(p4_ref[...], w4_ref[...]) + b4_ref[...], -1.0, 1.0)

    half = n_pos * c4                                   # 800
    for hw in range(n_pos):                             # static, unrolled at trace time
        blk = y4[hw * batch:(hw + 1) * batch, :]        # (B, 2*C4)
        flat_ref[:, hw * c4:(hw + 1) * c4] = blk[:, :c4]
        flat_ref[:, half + hw * c4:half + (hw + 1) * c4] = blk[:, c4:]

    x = flat_ref[...]                                   # (B, 1600) = [r_flat | i_flat]
    # L1 + complex_hardtanh
    h = jnp.clip(_mxu_dot(x, w1_ref[...]) + b1_ref[...], -1.0, 1.0)
    # L2
    o_ref[...] = _mxu_dot(h, w2_ref[...]) + b2_ref[...]


# ----------------------------------------------------------------------------
# pallas_call wrappers
# ----------------------------------------------------------------------------
def conv_stage(patches, w_c, b_c):
    """conv1 + hardtanh, tiled over M with "parallel" semantics (v7x dual-TC)."""
    m, k2 = patches.shape
    n2 = w_c.shape[1]
    nblk = 2 if m % 16 == 0 else 1
    bm = m // nblk
    return pl.pallas_call(
        _conv_ht_kernel,
        grid=(nblk,),
        in_specs=[pl.BlockSpec((bm, k2), lambda i: (i, 0)),
                  pl.BlockSpec((k2, n2), lambda i: (0, 0)),
                  pl.BlockSpec((1, n2), lambda i: (0, 0))],
        out_specs=pl.BlockSpec((bm, n2), lambda i: (i, 0)),
        out_shape=jax.ShapeDtypeStruct((m, n2), jnp.float32),
        compiler_params=pltpu.CompilerParams(
            dimension_semantics=("parallel",)),
    )(patches, w_c, b_c)


def conv_bn_stage(patches, w_c, b_c, bn_params, *, eps=1e-5):
    """conv2 + ComplexBatchNorm2d + hardtanh (single VMEM-resident block)."""
    m = patches.shape[0]
    n2 = w_c.shape[1]
    kernel = functools.partial(_conv_bn_ht_kernel, c=n2 // 2, eps=eps)
    return pl.pallas_call(
        kernel,
        out_shape=jax.ShapeDtypeStruct((m, n2), jnp.float32),
        in_specs=[_VMEM] * 4,
        out_specs=_VMEM,
    )(patches, w_c, b_c, bn_params)


def tail_stage(p4, p_conv4, p_l1, p_l2, *, batch, n_pos):
    """conv4 + hardtanh + flatten + L1 + hardtanh + L2."""
    c4 = p_conv4["w"].shape[1] // 2
    n_out = p_l2["w"].shape[1]
    kernel = functools.partial(_tail_kernel, batch=batch, n_pos=n_pos, c4=c4)
    return pl.pallas_call(
        kernel,
        out_shape=jax.ShapeDtypeStruct((batch, n_out), jnp.float32),
        in_specs=[_VMEM] * 7,
        out_specs=_VMEM,
        scratch_shapes=[pltpu.VMEM((batch, 2 * n_pos * c4), jnp.float32)],
    )(p4, p_conv4["w"], p_conv4["b"], p_l1["w"], p_l1["b"], p_l2["w"], p_l2["b"])


# ----------------------------------------------------------------------------
# XLA glue: tiny im2col gathers between stages (no heavy compute)
# ----------------------------------------------------------------------------
def _im2col_nhwc(x, k, stride, pad):
    """x: (B, H, W, C) -> (B*OH*OW, C*k*k); column order (c, kh, kw); row order (b, oh, ow)."""
    b, h, w, c = x.shape
    if pad:
        x = jnp.pad(x, ((0, 0), (pad, pad), (pad, pad), (0, 0)))
    oh = (h + 2 * pad - k) // stride + 1
    ow = (w + 2 * pad - k) // stride + 1
    taps = []
    for dh in range(k):
        for dw in range(k):
            taps.append(x[:, dh:dh + stride * (oh - 1) + 1:stride,
                          dw:dw + stride * (ow - 1) + 1:stride, :])
    p = jnp.stack(taps, axis=3)            # (B, OH, OW, k*k, C)
    p = p.transpose(0, 1, 2, 4, 3)         # (B, OH, OW, C, k*k)
    return p.reshape(b * oh * ow, c * k * k), oh, ow


# ----------------------------------------------------------------------------
# Parameter construction (deterministic, synthetic) -- packed complex form
# ----------------------------------------------------------------------------
def _cpack_weight(wr, wi):
    """(K, N) real/imag -> (2K, 2N) block matrix [[Wr, Wi], [-Wi, Wr]]."""
    top = jnp.concatenate([wr, wi], axis=1)
    bot = jnp.concatenate([-wi, wr], axis=1)
    return jnp.concatenate([top, bot], axis=0).astype(_MXU_DTYPE)


def _cpack_bias(br, bi):
    # ComplexConv2d/ComplexLinear: out = (Lr(xr) - Li(xi)) + i(Lr(xi) + Li(xr))
    #   => effective real bias = br - bi, effective imag bias = br + bi
    return jnp.concatenate([br - bi, br + bi]).reshape(1, -1).astype(jnp.float32)


def _conv_params(key, cin, cout, scale=0.05):
    ks = jax.random.split(key, 4)
    wr = scale * jax.random.normal(ks[0], (cout, cin, 3, 3), jnp.float32)
    wi = scale * jax.random.normal(ks[1], (cout, cin, 3, 3), jnp.float32)
    br = scale * jax.random.normal(ks[2], (cout,), jnp.float32)
    bi = scale * jax.random.normal(ks[3], (cout,), jnp.float32)
    return dict(w=_cpack_weight(wr.reshape(cout, cin * 9).T,
                                wi.reshape(cout, cin * 9).T),
                b=_cpack_bias(br, bi))


def _linear_params(key, fin, fout, scale=0.05, perm=None):
    ks = jax.random.split(key, 4)
    wr = scale * jax.random.normal(ks[0], (fout, fin), jnp.float32)
    wi = scale * jax.random.normal(ks[1], (fout, fin), jnp.float32)
    br = scale * jax.random.normal(ks[2], (fout,), jnp.float32)
    bi = scale * jax.random.normal(ks[3], (fout,), jnp.float32)
    wr_t, wi_t = wr.T, wi.T
    if perm is not None:                       # reorder rows to the in-kernel flatten order
        wr_t, wi_t = wr_t[perm], wi_t[perm]
    return dict(w=_cpack_weight(wr_t, wi_t), b=_cpack_bias(br, bi))


def _bn_params(key, c):
    ks = jax.random.split(key, 5)
    sqrt2 = 1.4142135623730951
    wrr = sqrt2 + 0.01 * jax.random.normal(ks[0], (c,), jnp.float32)
    wii = sqrt2 + 0.01 * jax.random.normal(ks[1], (c,), jnp.float32)
    wri = 0.01 * jax.random.normal(ks[2], (c,), jnp.float32)
    beta_r = 0.01 * jax.random.normal(ks[3], (c,), jnp.float32)
    beta_i = 0.01 * jax.random.normal(ks[4], (c,), jnp.float32)
    return jnp.stack([wrr, wii, wri, beta_r, beta_i], axis=0)   # (5, C)


def init_params(key, encoded_space_dim):
    ks = jax.random.split(key, 6)
    c4, n_pos = 32, 25                         # conv4 channels, 5x5 spatial positions
    # torch flatten index of (B, 32, 5, 5) is c*25 + hw; our in-kernel flatten uses hw*32 + c
    idx = jnp.arange(c4 * n_pos)
    perm = (idx % c4) * n_pos + idx // c4
    return {
        "conv1": _conv_params(ks[0], 1, 8),
        "conv2": _conv_params(ks[1], 8, 16),
        "bn": _bn_params(ks[2], 16),
        "conv4": _conv_params(ks[3], 16, 32),
        "L1": _linear_params(ks[4], c4 * n_pos, 128, perm=perm),
        "L2": _linear_params(ks[5], 128, encoded_space_dim),
    }


# ----------------------------------------------------------------------------
# Forward pass
# ----------------------------------------------------------------------------
def encoder_forward(params, x_real, x_imag):
    """x_real, x_imag: (B, 1, H, W) float32 (PyTorch NCHW). Returns (zr, zi) of shape (B, E)."""
    b = x_real.shape[0]
    xr = x_real.transpose(0, 2, 3, 1)          # NHWC
    xi = x_imag.transpose(0, 2, 3, 1)

    # --- stage 1: conv1 (stride 2, pad 1) + complex_hardtanh ---------------
    p1r, oh1, ow1 = _im2col_nhwc(xr, 3, 2, 1)
    p1i, _, _ = _im2col_nhwc(xi, 3, 2, 1)
    p1 = jnp.concatenate([p1r, p1i], axis=1)                       # (B*24*24, 18)
    y1 = conv_stage(p1, params["conv1"]["w"], params["conv1"]["b"])  # (1152, 16)

    # --- stage 2: conv2 (stride 2, pad 1) + ComplexBatchNorm2d + hardtanh --
    c1 = 8
    y1r = y1[:, :c1].reshape(b, oh1, ow1, c1)
    y1i = y1[:, c1:].reshape(b, oh1, ow1, c1)
    p2r, oh2, ow2 = _im2col_nhwc(y1r, 3, 2, 1)
    p2i, _, _ = _im2col_nhwc(y1i, 3, 2, 1)
    p2 = jnp.concatenate([p2r, p2i], axis=1)                       # (288, 144)
    y2 = conv_bn_stage(p2, params["conv2"]["w"], params["conv2"]["b"],
                       params["bn"])                               # (288, 32)

    # --- stage 3: conv4 (stride 2, pad 0) + hardtanh + flatten + L1 + L2 ---
    c2 = 16
    y2r = y2[:, :c2].reshape(b, oh2, ow2, c2)
    y2i = y2[:, c2:].reshape(b, oh2, ow2, c2)
    p4r, oh4, ow4 = _im2col_nhwc(y2r, 3, 2, 0)                     # (B*25, 144)
    p4i, _, _ = _im2col_nhwc(y2i, 3, 2, 0)
    n_pos = oh4 * ow4
    k4 = p4r.shape[1]
    # reorder rows (b, hw) -> (hw, b) so the in-kernel flatten uses contiguous slices
    p4r = p4r.reshape(b, n_pos, k4).transpose(1, 0, 2).reshape(b * n_pos, k4)
    p4i = p4i.reshape(b, n_pos, k4).transpose(1, 0, 2).reshape(b * n_pos, k4)
    p4 = jnp.concatenate([p4r, p4i], axis=1)                       # (50, 288)
    out = tail_stage(p4, params["conv4"], params["L1"], params["L2"],
                     batch=b, n_pos=n_pos)                         # (B, 2E)

    e = out.shape[1] // 2
    return out[:, :e], out[:, e:]


if __name__ == "__main__":
    # The 800-wide flatten implies input spatial size 48x48 (48 -> 24 -> 12 -> 5, 32*5*5 = 800).
    B, H, W = 2, 48, 48
    encoded_space_dim = 16

    key = jax.random.PRNGKey(0)
    kx, ky = jax.random.split(key)
    x_real = jax.random.normal(kx, (B, 1, H, W), jnp.float32)
    x_imag = jax.random.normal(ky, (B, 1, H, W), jnp.float32)

    params = init_params(jax.random.PRNGKey(42), encoded_space_dim)

    fwd = jax.jit(encoder_forward)
    zr, zi = fwd(params, x_real, x_imag)
    z = (zr + 1j * zi).astype(jnp.complex64)
    z = jax.block_until_ready(z)

    assert z.shape == (B, encoded_space_dim), z.shape
    assert z.dtype == jnp.complex64
    print("KERNEL_OK")
</pallas_src>

<mosaic_0001>
module attributes {stable_mosaic.version = 11 : i64} {
  func.func @_conv_ht_kernel(%arg0: i32, %arg1: memref<576x18xf32, #tpu.memory_space<vmem>>, %arg2: memref<18x16xbf16, #tpu.memory_space<vmem>>, %arg3: memref<1x16xf32, #tpu.memory_space<vmem>>, %arg4: memref<576x16xf32, #tpu.memory_space<vmem>>) attributes {dimension_semantics = [#tpu.dimension_semantics<parallel>], iteration_bounds = array<i64: 2>, scalar_prefetch = 0 : i64, scratch_operands = 0 : i64, tpu.core_type = #tpu.core_type<tc>, window_params = [{transform_indices = @transform_0, window_bounds = array<i64: 576, 18>}, {pipeline_mode = #tpu.pipeline_mode<synchronous>, transform_indices = @transform_1, window_bounds = array<i64: 18, 16>}, {pipeline_mode = #tpu.pipeline_mode<synchronous>, transform_indices = @transform_2, window_bounds = array<i64: 1, 16>}, {transform_indices = @transform_3, window_bounds = array<i64: 576, 16>}]} {
    %c0 = arith.constant 0 : index
    %c0_0 = arith.constant 0 : index
    %0 = vector.load %arg1[%c0, %c0_0] : memref<576x18xf32, #tpu.memory_space<vmem>>, vector<576x18xf32>
    %c0_1 = arith.constant 0 : index
    %c0_2 = arith.constant 0 : index
    %1 = vector.load %arg2[%c0_1, %c0_2] : memref<18x16xbf16, #tpu.memory_space<vmem>>, vector<18x16xbf16>
    %2 = arith.truncf %0 : vector<576x18xf32> to vector<576x18xbf16>
    %cst = arith.constant dense<0.000000e+00> : vector<576x16xf32>
    %3 = tpu.matmul %2, %1, %cst {dimension_numbers = #tpu.dot_dimension_numbers<[1], [0], [0], [1], [0, 0, 1, 1], [], []>} : vector<576x18xbf16>, vector<18x16xbf16>, vector<576x16xf32> -> vector<576x16xf32>
    %c0_3 = arith.constant 0 : index
    %c0_4 = arith.constant 0 : index
    %4 = vector.load %arg3[%c0_3, %c0_4] : memref<1x16xf32, #tpu.memory_space<vmem>>, vector<1x16xf32>
    %5 = vector.broadcast %4 : vector<1x16xf32> to vector<576x16xf32>
    %6 = arith.addf %3, %5 : vector<576x16xf32>
    %cst_5 = arith.constant -1.000000e+00 : f32
    %cst_6 = arith.constant 1.000000e+00 : f32
    %7 = vector.broadcast %cst_5 : f32 to vector<576x16xf32>
    %8 = arith.maximumf %7, %6 : vector<576x16xf32>
    %9 = vector.broadcast %cst_6 : f32 to vector<576x16xf32>
    %10 = arith.minimumf %9, %8 : vector<576x16xf32>
    %c0_7 = arith.constant 0 : index
    %c0_8 = arith.constant 0 : index
    %11 = vector.load %arg4[%c0_7, %c0_8] : memref<576x16xf32, #tpu.memory_space<vmem>>, vector<576x16xf32>
    tpu.vector_store %arg4[%c0_7, %c0_8], %10 {strides = array<i32>} : memref<576x16xf32, #tpu.memory_space<vmem>>, vector<576x16xf32>,
    return
  }
  func.func @transform_0(%arg0: i32) -> (i32, i32) {
    %c0_i32 = arith.constant 0 : i32
    %c0_i32_0 = arith.constant 0 : i32
    return %arg0, %c0_i32 : i32, i32
  }
  func.func @transform_1(%arg0: i32) -> (i32, i32) {
    %c0_i32 = arith.constant 0 : i32
    %c0_i32_0 = arith.constant 0 : i32
    %c0_i32_1 = arith.constant 0 : i32
    return %c0_i32, %c0_i32_0 : i32, i32
  }
  func.func @transform_2(%arg0: i32) -> (i32, i32) {
    %c0_i32 = arith.constant 0 : i32
    %c0_i32_0 = arith.constant 0 : i32
    %c0_i32_1 = arith.constant 0 : i32
    return %c0_i32, %c0_i32_0 : i32, i32
  }
  func.func @transform_3(%arg0: i32) -> (i32, i32) {
    %c0_i32 = arith.constant 0 : i32
    %c0_i32_0 = arith.constant 0 : i32
    return %arg0, %c0_i32 : i32, i32
  }
}

module attributes {stable_mosaic.version = 11 : i64} {
  func.func @_conv_bn_ht_kernel(%arg0: memref<288x144xf32, #tpu.memory_space<vmem>>, %arg1: memref<144x32xbf16, #tpu.memory_space<vmem>>, %arg2: memref<1x32xf32, #tpu.memory_space<vmem>>, %arg3: memref<5x16xf32, #tpu.memory_space<vmem>>, %arg4: memref<288x32xf32, #tpu.memory_space<vmem>>) attributes {dimension_semantics = [], scalar_prefetch = 0 : i64, scratch_operands = 0 : i64, tpu.core_type = #tpu.core_type<tc>} {
    %c0 = arith.constant 0 : index
    %c0_0 = arith.constant 0 : index
    %0 = vector.load %arg0[%c0, %c0_0] : memref<288x144xf32, #tpu.memory_space<vmem>>, vector<288x144xf32>
    %c0_1 = arith.constant 0 : index
    %c0_2 = arith.constant 0 : index
    %1 = vector.load %arg1[%c0_1, %c0_2] : memref<144x32xbf16, #tpu.memory_space<vmem>>, vector<144x32xbf16>
    %2 = arith.truncf %0 : vector<288x144xf32> to vector<288x144xbf16>
    %cst = arith.constant dense<0.000000e+00> : vector<288x32xf32>
    %3 = tpu.matmul %2, %1, %cst {dimension_numbers = #tpu.dot_dimension_numbers<[1], [0], [0], [1], [0, 0, 1, 1], [], []>} : vector<288x144xbf16>, vector<144x32xbf16>, vector<288x32xf32> -> vector<288x32xf32>
    %c0_3 = arith.constant 0 : index
    %c0_4 = arith.constant 0 : index
    %4 = vector.load %arg2[%c0_3, %c0_4] : memref<1x32xf32, #tpu.memory_space<vmem>>, vector<1x32xf32>
    %5 = vector.broadcast %4 : vector<1x32xf32> to vector<288x32xf32>
    %6 = arith.addf %3, %5 : vector<288x32xf32>
    %7 = vector.extract_strided_slice %6 {offsets = [0, 0], sizes = [288, 16], strides = [1, 1]} : vector<288x32xf32> to vector<288x16xf32>
    %8 = vector.extract_strided_slice %6 {offsets = [0, 16], sizes = [288, 16], strides = [1, 1]} : vector<288x32xf32> to vector<288x16xf32>
    %cst_5 = arith.constant dense<0.000000e+00> : vector<16xf32>
    %9 = vector.multi_reduction <add>, %7, %cst_5 [0] : vector<288x16xf32> to vector<16xf32>
    %10 = vector.shape_cast %9 : vector<16xf32> to vector<1x16xf32>
    %cst_6 = arith.constant 2.880000e+02 : f32
    %11 = vector.broadcast %cst_6 : f32 to vector<1x16xf32>
    %12 = arith.divf %10, %11 : vector<1x16xf32>
    %cst_7 = arith.constant dense<0.000000e+00> : vector<16xf32>
    %13 = vector.multi_reduction <add>, %8, %cst_7 [0] : vector<288x16xf32> to vector<16xf32>
    %14 = vector.shape_cast %13 : vector<16xf32> to vector<1x16xf32>
    %cst_8 = arith.constant 2.880000e+02 : f32
    %15 = vector.broadcast %cst_8 : f32 to vector<1x16xf32>
    %16 = arith.divf %14, %15 : vector<1x16xf32>
    %17 = vector.broadcast %12 : vector<1x16xf32> to vector<288x16xf32>
    %18 = arith.subf %7, %17 : vector<288x16xf32>
    %19 = vector.broadcast %16 : vector<1x16xf32> to vector<288x16xf32>
    %20 = arith.subf %8, %19 : vector<288x16xf32>
    %21 = arith.mulf %18, %18 : vector<288x16xf32>
    %cst_9 = arith.constant dense<0.000000e+00> : vector<16xf32>
    %22 = vector.multi_reduction <add>, %21, %cst_9 [0] : vector<288x16xf32> to vector<16xf32>
    %23 = vector.shape_cast %22 : vector<16xf32> to vector<1x16xf32>
    %cst_10 = arith.constant 2.880000e+02 : f32
    %24 = vector.broadcast %cst_10 : f32 to vector<1x16xf32>
    %25 = arith.divf %23, %24 : vector<1x16xf32>
    %cst_11 = arith.constant 9.99999974E-6 : f32
    %26 = vector.broadcast %cst_11 : f32 to vector<1x16xf32>
    %27 = arith.addf %25, %26 : vector<1x16xf32>
    %28 = arith.mulf %20, %20 : vector<288x16xf32>
    %cst_12 = arith.constant dense<0.000000e+00> : vector<16xf32>
    %29 = vector.multi_reduction <add>, %28, %cst_12 [0] : vector<288x16xf32> to vector<16xf32>
    %30 = vector.shape_cast %29 : vector<16xf32> to vector<1x16xf32>
    %cst_13 = arith.constant 2.880000e+02 : f32
    %31 = vector.broadcast %cst_13 : f32 to vector<1x16xf32>
    %32 = arith.divf %30, %31 : vector<1x16xf32>
    %cst_14 = arith.constant 9.99999974E-6 : f32
    %33 = vector.broadcast %cst_14 : f32 to vector<1x16xf32>
    %34 = arith.addf %32, %33 : vector<1x16xf32>
    %35 = arith.mulf %18, %20 : vector<288x16xf32>
    %cst_15 = arith.constant dense<0.000000e+00> : vector<16xf32>
    %36 = vector.multi_reduction <add>, %35, %cst_15 [0] : vector<288x16xf32> to vector<16xf32>
    %37 = vector.shape_cast %36 : vector<16xf32> to vector<1x16xf32>
    %cst_16 = arith.constant 2.880000e+02 : f32
    %38 = vector.broadcast %cst_16 : f32 to vector<1x16xf32>
    %39 = arith.divf %37, %38 : vector<1x16xf32>
    %40 = arith.mulf %27, %34 : vector<1x16xf32>
    %41 = arith.mulf %39, %39 : vector<1x16xf32>
    %42 = arith.subf %40, %41 : vector<1x16xf32>
    %43 = math.sqrt %42 : vector<1x16xf32>
    %44 = arith.addf %27, %34 : vector<1x16xf32>
    %cst_17 = arith.constant 2.000000e+00 : f32
    %45 = vector.broadcast %cst_17 : f32 to vector<1x16xf32>
    %46 = arith.mulf %45, %43 : vector<1x16xf32>
    %47 = arith.addf %44, %46 : vector<1x16xf32>
    %48 = math.sqrt %47 : vector<1x16xf32>
    %49 = arith.mulf %43, %48 : vector<1x16xf32>
    %cst_18 = arith.constant 1.000000e+00 : f32
    %50 = vector.broadcast %cst_18 : f32 to vector<1x16xf32>
    %51 = arith.divf %50, %49 : vector<1x16xf32>
    %52 = arith.addf %34, %43 : vector<1x16xf32>
    %53 = arith.mulf %52, %51 : vector<1x16xf32>
    %54 = arith.addf %27, %43 : vector<1x16xf32>
    %55 = arith.mulf %54, %51 : vector<1x16xf32>
    %cst_19 = arith.constant 0.000000e+00 : f32
    %56 = vector.broadcast %cst_19 : f32 to vector<1x16xf32>
    %57 = arith.subf %56, %39 : vector<1x16xf32>
    %58 = arith.mulf %57, %51 : vector<1x16xf32>
    %59 = vector.broadcast %53 : vector<1x16xf32> to vector<288x16xf32>
    %60 = arith.mulf %59, %18 : vector<288x16xf32>
    %61 = vector.broadcast %58 : vector<1x16xf32> to vector<288x16xf32>
    %62 = arith.mulf %61, %20 : vector<288x16xf32>
    %63 = arith.addf %60, %62 : vector<288x16xf32>
    %64 = vector.broadcast %55 : vector<1x16xf32> to vector<288x16xf32>
    %65 = arith.mulf %64, %20 : vector<288x16xf32>
    %66 = vector.broadcast %58 : vector<1x16xf32> to vector<288x16xf32>
    %67 = arith.mulf %66, %18 : vector<288x16xf32>
    %68 = arith.addf %65, %67 : vector<288x16xf32>
    %c0_20 = arith.constant 0 : index
    %c0_21 = arith.constant 0 : index
    %69 = vector.load %arg3[%c0_20, %c0_21] : memref<5x16xf32, #tpu.memory_space<vmem>>, vector<5x16xf32>
    %70 = vector.extract_strided_slice %69 {offsets = [0, 0], sizes = [1, 16], strides = [1, 1]} : vector<5x16xf32> to vector<1x16xf32>
    %71 = vector.extract_strided_slice %69 {offsets = [1, 0], sizes = [1, 16], strides = [1, 1]} : vector<5x16xf32> to vector<1x16xf32>
    %72 = vector.extract_strided_slice %69 {offsets = [2, 0], sizes = [1, 16], strides = [1, 1]} : vector<5x16xf32> to vector<1x16xf32>
    %73 = vector.extract_strided_slice %69 {offsets = [3, 0], sizes = [1, 16], strides = [1, 1]} : vector<5x16xf32> to vector<1x16xf32>
    %74 = vector.extract_strided_slice %69 {offsets = [4, 0], sizes = [1, 16], strides = [1, 1]} : vector<5x16xf32> to vector<1x16xf32>
    %75 = vector.broadcast %70 : vector<1x16xf32> to vector<288x16xf32>
    %76 = arith.mulf %75, %63 : vector<288x16xf32>
    %77 = vector.broadcast %72 : vector<1x16xf32> to vector<288x16xf32>
    %78 = arith.mulf %77, %68 : vector<288x16xf32>
    %79 = arith.addf %76, %78 : vector<288x16xf32>
    %80 = vector.broadcast %73 : vector<1x16xf32> to vector<288x16xf32>
    %81 = arith.addf %79, %80 : vector<288x16xf32>
    %cst_22 = arith.constant -1.000000e+00 : f32
    %cst_23 = arith.constant 1.000000e+00 : f32
    %82 = vector.broadcast %cst_22 : f32 to vector<288x16xf32>
    %83 = arith.maximumf %82, %81 : vector<288x16xf32>
    %84 = vector.broadcast %cst_23 : f32 to vector<288x16xf32>
    %85 = arith.minimumf %84, %83 : vector<288x16xf32>
    %86 = vector.broadcast %72 : vector<1x16xf32> to vector<288x16xf32>
    %87 = arith.mulf %86, %63 : vector<288x16xf32>
    %88 = vector.broadcast %71 : vector<1x16xf32> to vector<288x16xf32>
    %89 = arith.mulf %88, %68 : vector<288x16xf32>
    %90 = arith.addf %87, %89 : vector<288x16xf32>
    %91 = vector.broadcast %74 : vector<1x16xf32> to vector<288x16xf32>
    %92 = arith.addf %90, %91 : vector<288x16xf32>
    %cst_24 = arith.constant -1.000000e+00 : f32
    %cst_25 = arith.constant 1.000000e+00 : f32
    %93 = vector.broadcast %cst_24 : f32 to vector<288x16xf32>
    %94 = arith.maximumf %93, %92 : vector<288x16xf32>
    %95 = vector.broadcast %cst_25 : f32 to vector<288x16xf32>
    %96 = arith.minimumf %95, %94 : vector<288x16xf32>
    %c0_26 = arith.constant 0 : index
    %c0_27 = arith.constant 0 : index
    %97 = vector.load %arg4[%c0_26, %c0_27] : memref<288x32xf32, #tpu.memory_space<vmem>>, vector<288x16xf32>
    tpu.vector_store %arg4[%c0_26, %c0_27], %85 {strides = array<i32>} : memref<288x32xf32, #tpu.memory_space<vmem>>, vector<288x16xf32>,
    %c0_28 = arith.constant 0 : index
    %c16 = arith.constant 16 : index
    %98 = vector.load %arg4[%c0_28, %c16] : memref<288x32xf32, #tpu.memory_space<vmem>>, vector<288x16xf32>
    tpu.vector_store %arg4[%c0_28, %c16], %96 {strides = array<i32>} : memref<288x32xf32, #tpu.memory_space<vmem>>, vector<288x16xf32>,
    return
  }
}

module attributes {stable_mosaic.version = 11 : i64} {
  func.func @_tail_kernel(%arg0: memref<50x288xf32, #tpu.memory_space<vmem>>, %arg1: memref<288x64xbf16, #tpu.memory_space<vmem>>, %arg2: memref<1x64xf32, #tpu.memory_space<vmem>>, %arg3: memref<1600x256xbf16, #tpu.memory_space<vmem>>, %arg4: memref<1x256xf32, #tpu.memory_space<vmem>>, %arg5: memref<256x32xbf16, #tpu.memory_space<vmem>>, %arg6: memref<1x32xf32, #tpu.memory_space<vmem>>, %arg7: memref<2x32xf32, #tpu.memory_space<vmem>>, %arg8: memref<2x1600xf32, #tpu.memory_space<vmem>>) attributes {dimension_semantics = [], scalar_prefetch = 0 : i64, scratch_operands = 1 : i64, tpu.core_type = #tpu.core_type<tc>} {
    %c0 = arith.constant 0 : index
    %c0_0 = arith.constant 0 : index
    %0 = vector.load %arg0[%c0, %c0_0] : memref<50x288xf32, #tpu.memory_space<vmem>>, vector<50x288xf32>
    %c0_1 = arith.constant 0 : index
    %c0_2 = arith.constant 0 : index
    %1 = vector.load %arg1[%c0_1, %c0_2] : memref<288x64xbf16, #tpu.memory_space<vmem>>, vector<288x64xbf16>
    %2 = arith.truncf %0 : vector<50x288xf32> to vector<50x288xbf16>
    %cst = arith.constant dense<0.000000e+00> : vector<50x64xf32>
    %3 = tpu.matmul %2, %1, %cst {dimension_numbers = #tpu.dot_dimension_numbers<[1], [0], [0], [1], [0, 0, 1, 1], [], []>} : vector<50x288xbf16>, vector<288x64xbf16>, vector<50x64xf32> -> vector<50x64xf32>
    %c0_3 = arith.constant 0 : index
    %c0_4 = arith.constant 0 : index
    %4 = vector.load %arg2[%c0_3, %c0_4] : memref<1x64xf32, #tpu.memory_space<vmem>>, vector<1x64xf32>
    %5 = vector.broadcast %4 : vector<1x64xf32> to vector<50x64xf32>
    %6 = arith.addf %3, %5 : vector<50x64xf32>
    %cst_5 = arith.constant -1.000000e+00 : f32
    %cst_6 = arith.constant 1.000000e+00 : f32
    %7 = vector.broadcast %cst_5 : f32 to vector<50x64xf32>
    %8 = arith.maximumf %7, %6 : vector<50x64xf32>
    %9 = vector.broadcast %cst_6 : f32 to vector<50x64xf32>
    %10 = arith.minimumf %9, %8 : vector<50x64xf32>
    %11 = vector.extract_strided_slice %10 {offsets = [0, 0], sizes = [2, 64], strides = [1, 1]} : vector<50x64xf32> to vector<2x64xf32>
    %12 = vector.extract_strided_slice %11 {offsets = [0, 0], sizes = [2, 32], strides = [1, 1]} : vector<2x64xf32> to vector<2x32xf32>
    %c0_7 = arith.constant 0 : index
    %c0_8 = arith.constant 0 : index
    %13 = vector.load %arg8[%c0_7, %c0_8] : memref<2x1600xf32, #tpu.memory_space<vmem>>, vector<2x32xf32>
    tpu.vector_store %arg8[%c0_7, %c0_8], %12 {strides = array<i32>} : memref<2x1600xf32, #tpu.memory_space<vmem>>, vector<2x32xf32>,
    %14 = vector.extract_strided_slice %11 {offsets = [0, 32], sizes = [2, 32], strides = [1, 1]} : vector<2x64xf32> to vector<2x32xf32>
    %c0_9 = arith.constant 0 : index
    %c800 = arith.constant 800 : index
    %15 = vector.load %arg8[%c0_9, %c800] : memref<2x1600xf32, #tpu.memory_space<vmem>>, vector<2x32xf32>
    tpu.vector_store %arg8[%c0_9, %c800], %14 {strides = array<i32>} : memref<2x1600xf32, #tpu.memory_space<vmem>>, vector<2x32xf32>,
    %16 = vector.extract_strided_slice %10 {offsets = [2, 0], sizes = [2, 64], strides = [1, 1]} : vector<50x64xf32> to vector<2x64xf32>
    %17 = vector.extract_strided_slice %16 {offsets = [0, 0], sizes = [2, 32], strides = [1, 1]} : vector<2x64xf32> to vector<2x32xf32>
    %c0_10 = arith.constant 0 : index
    %c32 = arith.constant 32 : index
    %18 = vector.load %arg8[%c0_10, %c32] : memref<2x1600xf32, #tpu.memory_space<vmem>>, vector<2x32xf32>
    tpu.vector_store %arg8[%c0_10, %c32], %17 {strides = array<i32>} : memref<2x1600xf32, #tpu.memory_space<vmem>>, vector<2x32xf32>,
    %19 = vector.extract_strided_slice %16 {offsets = [0, 32], sizes = [2, 32], strides = [1, 1]} : vector<2x64xf32> to vector<2x32xf32>
    %c0_11 = arith.constant 0 : index
    %c832 = arith.constant 832 : index
    %20 = vector.load %arg8[%c0_11, %c832] : memref<2x1600xf32, #tpu.memory_space<vmem>>, vector<2x32xf32>
    tpu.vector_store %arg8[%c0_11, %c832], %19 {strides = array<i32>} : memref<2x1600xf32, #tpu.memory_space<vmem>>, vector<2x32xf32>,
    %21 = vector.extract_strided_slice %10 {offsets = [4, 0], sizes = [2, 64], strides = [1, 1]} : vector<50x64xf32> to vector<2x64xf32>
    %22 = vector.extract_strided_slice %21 {offsets = [0, 0], sizes = [2, 32], strides = [1, 1]} : vector<2x64xf32> to vector<2x32xf32>
    %c0_12 = arith.constant 0 : index
    %c64 = arith.constant 64 : index
    %23 = vector.load %arg8[%c0_12, %c64] : memref<2x1600xf32, #tpu.memory_space<vmem>>, vector<2x32xf32>
    tpu.vector_store %arg8[%c0_12, %c64], %22 {strides = array<i32>} : memref<2x1600xf32, #tpu.memory_space<vmem>>, vector<2x32xf32>,
    %24 = vector.extract_strided_slice %21 {offsets = [0, 32], sizes = [2, 32], strides = [1, 1]} : vector<2x64xf32> to vector<2x32xf32>
    %c0_13 = arith.constant 0 : index
    %c864 = arith.constant 864 : index
    %25 = vector.load %arg8[%c0_13, %c864] : memref<2x1600xf32, #tpu.memory_space<vmem>>, vector<2x32xf32>
    tpu.vector_store %arg8[%c0_13, %c864], %24 {strides = array<i32>} : memref<2x1600xf32, #tpu.memory_space<vmem>>, vector<2x32xf32>,
    %26 = vector.extract_strided_slice %10 {offsets = [6, 0], sizes = [2, 64], strides = [1, 1]} : vector<50x64xf32> to vector<2x64xf32>
    %27 = vector.extract_strided_slice %26 {offsets = [0, 0], sizes = [2, 32], strides = [1, 1]} : vector<2x64xf32> to vector<2x32xf32>
    %c0_14 = arith.constant 0 : index
    %c96 = arith.constant 96 : index
    %28 = vector.load %arg8[%c0_14, %c96] : memref<2x1600xf32, #tpu.memory_space<vmem>>, vector<2x32xf32>
    tpu.vector_store %arg8[%c0_14, %c96], %27 {strides = array<i32>} : memref<2x1600xf32, #tpu.memory_space<vmem>>, vector<2x32xf32>,
    %29 = vector.extract_strided_slice %26 {offsets = [0, 32], sizes = [2, 32], strides = [1, 1]} : vector<2x64xf32> to vector<2x32xf32>
    %c0_15 = arith.constant 0 : index
    %c896 = arith.constant 896 : index
    %30 = vector.load %arg8[%c0_15, %c896] : memref<2x1600xf32, #tpu.memory_space<vmem>>, vector<2x32xf32>
    tpu.vector_store %arg8[%c0_15, %c896], %29 {strides = array<i32>} : memref<2x1600xf32, #tpu.memory_space<vmem>>, vector<2x32xf32>,
    %31 = vector.extract_strided_slice %10 {offsets = [8, 0], sizes = [2, 64], strides = [1, 1]} : vector<50x64xf32> to vector<2x64xf32>
    %32 = vector.extract_strided_slice %31 {offsets = [0, 0], sizes = [2, 32], strides = [1, 1]} : vector<2x64xf32> to vector<2x32xf32>
    %c0_16 = arith.constant 0 : index
    %c128 = arith.constant 128 : index
    %33 = vector.load %arg8[%c0_16, %c128] : memref<2x1600xf32, #tpu.memory_space<vmem>>, vector<2x32xf32>
    tpu.vector_store %arg8[%c0_16, %c128], %32 {strides = array<i32>} : memref<2x1600xf32, #tpu.memory_space<vmem>>, vector<2x32xf32>,
    %34 = vector.extract_strided_slice %31 {offsets = [0, 32], sizes = [2, 32], strides = [1, 1]} : vector<2x64xf32> to vector<2x32xf32>
    %c0_17 = arith.constant 0 : index
    %c928 = arith.constant 928 : index
    %35 = vector.load %arg8[%c0_17, %c928] : memref<2x1600xf32, #tpu.memory_space<vmem>>, vector<2x32xf32>
    tpu.vector_store %arg8[%c0_17, %c928], %34 {strides = array<i32>} : memref<2x1600xf32, #tpu.memory_space<vmem>>, vector<2x32xf32>,
    %36 = vector.extract_strided_slice %10 {offsets = [10, 0], sizes = [2, 64], strides = [1, 1]} : vector<50x64xf32> to vector<2x64xf32>
    %37 = vector.extract_strided_slice %36 {offsets = [0, 0], sizes = [2, 32], strides = [1, 1]} : vector<2x64xf32> to vector<2x32xf32>
    %c0_18 = arith.constant 0 : index
    %c160 = arith.constant 160 : index
    %38 = vector.load %arg8[%c0_18, %c160] : memref<2x1600xf32, #tpu.memory_space<vmem>>, vector<2x32xf32>
    tpu.vector_store %arg8[%c0_18, %c160], %37 {strides = array<i32>} : memref<2x1600xf32, #tpu.memory_space<vmem>>, vector<2x32xf32>,
    %39 = vector.extract_strided_slice %36 {offsets = [0, 32], sizes = [2, 32], strides = [1, 1]} : vector<2x64xf32> to vector<2x32xf32>
    %c0_19 = arith.constant 0 : index
    %c960 = arith.constant 960 : index
    %40 = vector.load %arg8[%c0_19, %c960] : memref<2x1600xf32, #tpu.memory_space<vmem>>, vector<2x32xf32>
    tpu.vector_store %arg8[%c0_19, %c960], %39 {strides = array<i32>} : memref<2x1600xf32, #tpu.memory_space<vmem>>, vector<2x32xf32>,
    %41 = vector.extract_strided_slice %10 {offsets = [12, 0], sizes = [2, 64], strides = [1, 1]} : vector<50x64xf32> to vector<2x64xf32>
    %42 = vector.extract_strided_slice %41 {offsets = [0, 0], sizes = [2, 32], strides = [1, 1]} : vector<2x64xf32> to vector<2x32xf32>
    %c0_20 = arith.constant 0 : index
    %c192 = arith.constant 192 : index
    %43 = vector.load %arg8[%c0_20, %c192] : memref<2x1600xf32, #tpu.memory_space<vmem>>, vector<2x32xf32>
    tpu.vector_store %arg8[%c0_20, %c192], %42 {strides = array<i32>} : memref<2x1600xf32, #tpu.memory_space<vmem>>, vector<2x32xf32>,
    %44 = vector.extract_strided_slice %41 {offsets = [0, 32], sizes = [2, 32], strides = [1, 1]} : vector<2x64xf32> to vector<2x32xf32>
    %c0_21 = arith.constant 0 : index
    %c992 = arith.constant 992 : index
    %45 = vector.load %arg8[%c0_21, %c992] : memref<2x1600xf32, #tpu.memory_space<vmem>>, vector<2x32xf32>
    tpu.vector_store %arg8[%c0_21, %c992], %44 {strides = array<i32>} : memref<2x1600xf32, #tpu.memory_space<vmem>>, vector<2x32xf32>,
    %46 = vector.extract_strided_slice %10 {offsets = [14, 0], sizes = [2, 64], strides = [1, 1]} : vector<50x64xf32> to vector<2x64xf32>
    %47 = vector.extract_strided_slice %46 {offsets = [0, 0], sizes = [2, 32], strides = [1, 1]} : vector<2x64xf32> to vector<2x32xf32>
    %c0_22 = arith.constant 0 : index
    %c224 = arith.constant 224 : index
    %48 = vector.load %arg8[%c0_22, %c224] : memref<2x1600xf32, #tpu.memory_space<vmem>>, vector<2x32xf32>
    tpu.vector_store %arg8[%c0_22, %c224], %47 {strides = array<i32>} : memref<2x1600xf32, #tpu.memory_space<vmem>>, vector<2x32xf32>,
    %49 = vector.extract_strided_slice %46 {offsets = [0, 32], sizes = [2, 32], strides = [1, 1]} : vector<2x64xf32> to vector<2x32xf32>
    %c0_23 = arith.constant 0 : index
    %c1024 = arith.constant 1024 : index
    %50 = vector.load %arg8[%c0_23, %c1024] : memref<2x1600xf32, #tpu.memory_space<vmem>>, vector<2x32xf32>
    tpu.vector_store %arg8[%c0_23, %c1024], %49 {strides = array<i32>} : memref<2x1600xf32, #tpu.memory_space<vmem>>, vector<2x32xf32>,
    %51 = vector.extract_strided_slice %10 {offsets = [16, 0], sizes = [2, 64], strides = [1, 1]} : vector<50x64xf32> to vector<2x64xf32>
    %52 = vector.extract_strided_slice %51 {offsets = [0, 0], sizes = [2, 32], strides = [1, 1]} : vector<2x64xf32> to vector<2x32xf32>
    %c0_24 = arith.constant 0 : index
    %c256 = arith.constant 256 : index
    %53 = vector.load %arg8[%c0_24, %c256] : memref<2x1600xf32, #tpu.memory_space<vmem>>, vector<2x32xf32>
    tpu.vector_store %arg8[%c0_24, %c256], %52 {strides = array<i32>} : memref<2x1600xf32, #tpu.memory_space<vmem>>, vector<2x32xf32>,
    %54 = vector.extract_strided_slice %51 {offsets = [0, 32], sizes = [2, 32], strides = [1, 1]} : vector<2x64xf32> to vector<2x32xf32>
    %c0_25 = arith.constant 0 : index
    %c1056 = arith.constant 1056 : index
    %55 = vector.load %arg8[%c0_25, %c1056] : memref<2x1600xf32, #tpu.memory_space<vmem>>, vector<2x32xf32>
    tpu.vector_store %arg8[%c0_25, %c1056], %54 {strides = array<i32>} : memref<2x1600xf32, #tpu.memory_space<vmem>>, vector<2x32xf32>,
    %56 = vector.extract_strided_slice %10 {offsets = [18, 0], sizes = [2, 64], strides = [1, 1]} : vector<50x64xf32> to vector<2x64xf32>
    %57 = vector.extract_strided_slice %56 {offsets = [0, 0], sizes = [2, 32], strides = [1, 1]} : vector<2x64xf32> to vector<2x32xf32>
    %c0_26 = arith.constant 0 : index
    %c288 = arith.constant 288 : index
    %58 = vector.load %arg8[%c0_26, %c288] : memref<2x1600xf32, #tpu.memory_space<vmem>>, vector<2x32xf32>
    tpu.vector_store %arg8[%c0_26, %c288], %57 {strides = array<i32>} : memref<2x1600xf32, #tpu.memory_space<vmem>>, vector<2x32xf32>,
    %59 = vector.extract_strided_slice %56 {offsets = [0, 32], sizes = [2, 32], strides = [1, 1]} : vector<2x64xf32> to vector<2x32xf32>
    %c0_27 = arith.constant 0 : index
    %c1088 = arith.constant 1088 : index
    %60 = vector.load %arg8[%c0_27, %c1088] : memref<2x1600xf32, #tpu.memory_space<vmem>>, vector<2x32xf32>
    tpu.vector_store %arg8[%c0_27, %c1088], %59 {strides = array<i32>} : memref<2x1600xf32, #tpu.memory_space<vmem>>, vector<2x32xf32>,
    %61 = vector.extract_strided_slice %10 {offsets = [20, 0], sizes = [2, 64], strides = [1, 1]} : vector<50x64xf32> to vector<2x64xf32>
    %62 = vector.extract_strided_slice %61 {offsets = [0, 0], sizes = [2, 32], strides = [1, 1]} : vector<2x64xf32> to vector<2x32xf32>
    %c0_28 = arith.constant 0 : index
    %c320 = arith.constant 320 : index
    %63 = vector.load %arg8[%c0_28, %c320] : memref<2x1600xf32, #tpu.memory_space<vmem>>, vector<2x32xf32>
    tpu.vector_store %arg8[%c0_28, %c320], %62 {strides = array<i32>} : memref<2x1600xf32, #tpu.memory_space<vmem>>, vector<2x32xf32>,
    %64 = vector.extract_strided_slice %61 {offsets = [0, 32], sizes = [2, 32], strides = [1, 1]} : vector<2x64xf32> to vector<2x32xf32>
    %c0_29 = arith.constant 0 : index
    %c1120 = arith.constant 1120 : index
    %65 = vector.load %arg8[%c0_29, %c1120] : memref<2x1600xf32, #tpu.memory_space<vmem>>, vector<2x32xf32>
    tpu.vector_store %arg8[%c0_29, %c1120], %64 {strides = array<i32>} : memref<2x1600xf32, #tpu.memory_space<vmem>>, vector<2x32xf32>,
    %66 = vector.extract_strided_slice %10 {offsets = [22, 0], sizes = [2, 64], strides = [1, 1]} : vector<50x64xf32> to vector<2x64xf32>
    %67 = vector.extract_strided_slice %66 {offsets = [0, 0], sizes = [2, 32], strides = [1, 1]} : vector<2x64xf32> to vector<2x32xf32>
    %c0_30 = arith.constant 0 : index
    %c352 = arith.constant 352 : index
    %68 = vector.load %arg8[%c0_30, %c352] : memref<2x1600xf32, #tpu.memory_space<vmem>>, vector<2x32xf32>
    tpu.vector_store %arg8[%c0_30, %c352], %67 {strides = array<i32>} : memref<2x1600xf32, #tpu.memory_space<vmem>>, vector<2x32xf32>,
    %69 = vector.extract_strided_slice %66 {offsets = [0, 32], sizes = [2, 32], strides = [1, 1]} : vector<2x64xf32> to vector<2x32xf32>
    %c0_31 = arith.constant 0 : index
    %c1152 = arith.constant 1152 : index
    %70 = vector.load %arg8[%c0_31, %c1152] : memref<2x1600xf32, #tpu.memory_space<vmem>>, vector<2x32xf32>
    tpu.vector_store %arg8[%c0_31, %c1152], %69 {strides = array<i32>} : memref<2x1600xf32, #tpu.memory_space<vmem>>, vector<2x32xf32>,
    %71 = vector.extract_strided_slice %10 {offsets = [24, 0], sizes = [2, 64], strides = [1, 1]} : vector<50x64xf32> to vector<2x64xf32>
    %72 = vector.extract_strided_slice %71 {offsets = [0, 0], sizes = [2, 32], strides = [1, 1]} : vector<2x64xf32> to vector<2x32xf32>
    %c0_32 = arith.constant 0 : index
    %c384 = arith.constant 384 : index
    %73 = vector.load %arg8[%c0_32, %c384] : memref<2x1600xf32, #tpu.memory_space<vmem>>, vector<2x32xf32>
    tpu.vector_store %arg8[%c0_32, %c384], %72 {strides = array<i32>} : memref<2x1600xf32, #tpu.memory_space<vmem>>, vector<2x32xf32>,
    %74 = vector.extract_strided_slice %71 {offsets = [0, 32], sizes = [2, 32], strides = [1, 1]} : vector<2x64xf32> to vector<2x32xf32>
    %c0_33 = arith.constant 0 : index
    %c1184 = arith.constant 1184 : index
    %75 = vector.load %arg8[%c0_33, %c1184] : memref<2x1600xf32, #tpu.memory_space<vmem>>, vector<2x32xf32>
    tpu.vector_store %arg8[%c0_33, %c1184], %74 {strides = array<i32>} : memref<2x1600xf32, #tpu.memory_space<vmem>>, vector<2x32xf32>,
    %76 = vector.extract_strided_slice %10 {offsets = [26, 0], sizes = [2, 64], strides = [1, 1]} : vector<50x64xf32> to vector<2x64xf32>
    %77 = vector.extract_strided_slice %76 {offsets = [0, 0], sizes = [2, 32], strides = [1, 1]} : vector<2x64xf32> to vector<2x32xf32>
    %c0_34 = arith.constant 0 : index
    %c416 = arith.constant 416 : index
    %78 = vector.load %arg8[%c0_34, %c416] : memref<2x1600xf32, #tpu.memory_space<vmem>>, vector<2x32xf32>
    tpu.vector_store %arg8[%c0_34, %c416], %77 {strides = array<i32>} : memref<2x1600xf32, #tpu.memory_space<vmem>>, vector<2x32xf32>,
    %79 = vector.extract_strided_slice %76 {offsets = [0, 32], sizes = [2, 32], strides = [1, 1]} : vector<2x64xf32> to vector<2x32xf32>
    %c0_35 = arith.constant 0 : index
    %c1216 = arith.constant 1216 : index
    %80 = vector.load %arg8[%c0_35, %c1216] : memref<2x1600xf32, #tpu.memory_space<vmem>>, vector<2x32xf32>
    tpu.vector_store %arg8[%c0_35, %c1216], %79 {strides = array<i32>} : memref<2x1600xf32, #tpu.memory_space<vmem>>, vector<2x32xf32>,
    %81 = vector.extract_strided_slice %10 {offsets = [28, 0], sizes = [2, 64], strides = [1, 1]} : vector<50x64xf32> to vector<2x64xf32>
    %82 = vector.extract_strided_slice %81 {offsets = [0, 0], sizes = [2, 32], strides = [1, 1]} : vector<2x64xf32> to vector<2x32xf32>
    %c0_36 = arith.constant 0 : index
    %c448 = arith.constant 448 : index
    %83 = vector.load %arg8[%c0_36, %c448] : memref<2x1600xf32, #tpu.memory_space<vmem>>, vector<2x32xf32>
    tpu.vector_store %arg8[%c0_36, %c448], %82 {strides = array<i32>} : memref<2x1600xf32, #tpu.memory_space<vmem>>, vector<2x32xf32>,
    %84 = vector.extract_strided_slice %81 {offsets = [0, 32], sizes = [2, 32], strides = [1, 1]} : vector<2x64xf32> to vector<2x32xf32>
    %c0_37 = arith.constant 0 : index
    %c1248 = arith.constant 1248 : index
    %85 = vector.load %arg8[%c0_37, %c1248] : memref<2x1600xf32, #tpu.memory_space<vmem>>, vector<2x32xf32>
    tpu.vector_store %arg8[%c0_37, %c1248], %84 {strides = array<i32>} : memref<2x1600xf32, #tpu.memory_space<vmem>>, vector<2x32xf32>,
    %86 = vector.extract_strided_slice %10 {offsets = [30, 0], sizes = [2, 64], strides = [1, 1]} : vector<50x64xf32> to vector<2x64xf32>
    %87 = vector.extract_strided_slice %86 {offsets = [0, 0], sizes = [2, 32], strides = [1, 1]} : vector<2x64xf32> to vector<2x32xf32>
    %c0_38 = arith.constant 0 : index
    %c480 = arith.constant 480 : index
    %88 = vector.load %arg8[%c0_38, %c480] : memref<2x1600xf32, #tpu.memory_space<vmem>>, vector<2x32xf32>
    tpu.vector_store %arg8[%c0_38, %c480], %87 {strides = array<i32>} : memref<2x1600xf32, #tpu.memory_space<vmem>>, vector<2x32xf32>,
    %89 = vector.extract_strided_slice %86 {offsets = [0, 32], sizes = [2, 32], strides = [1, 1]} : vector<2x64xf32> to vector<2x32xf32>
    %c0_39 = arith.constant 0 : index
    %c1280 = arith.constant 1280 : index
    %90 = vector.load %arg8[%c0_39, %c1280] : memref<2x1600xf32, #tpu.memory_space<vmem>>, vector<2x32xf32>
    tpu.vector_store %arg8[%c0_39, %c1280], %89 {strides = array<i32>} : memref<2x1600xf32, #tpu.memory_space<vmem>>, vector<2x32xf32>,
    %91 = vector.extract_strided_slice %10 {offsets = [32, 0], sizes = [2, 64], strides = [1, 1]} : vector<50x64xf32> to vector<2x64xf32>
    %92 = vector.extract_strided_slice %91 {offsets = [0, 0], sizes = [2, 32], strides = [1, 1]} : vector<2x64xf32> to vector<2x32xf32>
    %c0_40 = arith.constant 0 : index
    %c512 = arith.constant 512 : index
    %93 = vector.load %arg8[%c0_40, %c512] : memref<2x1600xf32, #tpu.memory_space<vmem>>, vector<2x32xf32>
    tpu.vector_store %arg8[%c0_40, %c512], %92 {strides = array<i32>} : memref<2x1600xf32, #tpu.memory_space<vmem>>, vector<2x32xf32>,
    %94 = vector.extract_strided_slice %91 {offsets = [0, 32], sizes = [2, 32], strides = [1, 1]} : vector<2x64xf32> to vector<2x32xf32>
    %c0_41 = arith.constant 0 : index
    %c1312 = arith.constant 1312 : index
    %95 = vector.load %arg8[%c0_41, %c1312] : memref<2x1600xf32, #tpu.memory_space<vmem>>, vector<2x32xf32>
    tpu.vector_store %arg8[%c0_41, %c1312], %94 {strides = array<i32>} : memref<2x1600xf32, #tpu.memory_space<vmem>>, vector<2x32xf32>,
    %96 = vector.extract_strided_slice %10 {offsets = [34, 0], sizes = [2, 64], strides = [1, 1]} : vector<50x64xf32> to vector<2x64xf32>
    %97 = vector.extract_strided_slice %96 {offsets = [0, 0], sizes = [2, 32], strides = [1, 1]} : vector<2x64xf32> to vector<2x32xf32>
    %c0_42 = arith.constant 0 : index
    %c544 = arith.constant 544 : index
    %98 = vector.load %arg8[%c0_42, %c544] : memref<2x1600xf32, #tpu.memory_space<vmem>>, vector<2x32xf32>
    tpu.vector_store %arg8[%c0_42, %c544], %97 {strides = array<i32>} : memref<2x1600xf32, #tpu.memory_space<vmem>>, vector<2x32xf32>,
    %99 = vector.extract_strided_slice %96 {offsets = [0, 32], sizes = [2, 32], strides = [1, 1]} : vector<2x64xf32> to vector<2x32xf32>
    %c0_43 = arith.constant 0 : index
    %c1344 = arith.constant 1344 : index
    %100 = vector.load %arg8[%c0_43, %c1344] : memref<2x1600xf32, #tpu.memory_space<vmem>>, vector<2x32xf32>
    tpu.vector_store %arg8[%c0_43, %c1344], %99 {strides = array<i32>} : memref<2x1600xf32, #tpu.memory_space<vmem>>, vector<2x32xf32>,
    %101 = vector.extract_strided_slice %10 {offsets = [36, 0], sizes = [2, 64], strides = [1, 1]} : vector<50x64xf32> to vector<2x64xf32>
    %102 = vector.extract_strided_slice %101 {offsets = [0, 0], sizes = [2, 32], strides = [1, 1]} : vector<2x64xf32> to vector<2x32xf32>
    %c0_44 = arith.constant 0 : index
    %c576 = arith.constant 576 : index
    %103 = vector.load %arg8[%c0_44, %c576] : memref<2x1600xf32, #tpu.memory_space<vmem>>, vector<2x32xf32>
    tpu.vector_store %arg8[%c0_44, %c576], %102 {strides = array<i32>} : memref<2x1600xf32, #tpu.memory_space<vmem>>, vector<2x32xf32>,
    %104 = vector.extract_strided_slice %101 {offsets = [0, 32], sizes = [2, 32], strides = [1, 1]} : vector<2x64xf32> to vector<2x32xf32>
    %c0_45 = arith.constant 0 : index
    %c1376 = arith.constant 1376 : index
    %105 = vector.load %arg8[%c0_45, %c1376] : memref<2x1600xf32, #tpu.memory_space<vmem>>, vector<2x32xf32>
    tpu.vector_store %arg8[%c0_45, %c1376], %104 {strides = array<i32>} : memref<2x1600xf32, #tpu.memory_space<vmem>>, vector<2x32xf32>,
    %106 = vector.extract_strided_slice %10 {offsets = [38, 0], sizes = [2, 64], strides = [1, 1]} : vector<50x64xf32> to vector<2x64xf32>
    %107 = vector.extract_strided_slice %106 {offsets = [0, 0], sizes = [2, 32], strides = [1, 1]} : vector<2x64xf32> to vector<2x32xf32>
    %c0_46 = arith.constant 0 : index
    %c608 = arith.constant 608 : index
    %108 = vector.load %arg8[%c0_46, %c608] : memref<2x1600xf32, #tpu.memory_space<vmem>>, vector<2x32xf32>
    tpu.vector_store %arg8[%c0_46, %c608], %107 {strides = array<i32>} : memref<2x1600xf32, #tpu.memory_space<vmem>>, vector<2x32xf32>,
    %109 = vector.extract_strided_slice %106 {offsets = [0, 32], sizes = [2, 32], strides = [1, 1]} : vector<2x64xf32> to vector<2x32xf32>
    %c0_47 = arith.constant 0 : index
    %c1408 = arith.constant 1408 : index
    %110 = vector.load %arg8[%c0_47, %c1408] : memref<2x1600xf32, #tpu.memory_space<vmem>>, vector<2x32xf32>
    tpu.vector_store %arg8[%c0_47, %c1408], %109 {strides = array<i32>} : memref<2x1600xf32, #tpu.memory_space<vmem>>, vector<2x32xf32>,
    %111 = vector.extract_strided_slice %10 {offsets = [40, 0], sizes = [2, 64], strides = [1, 1]} : vector<50x64xf32> to vector<2x64xf32>
    %112 = vector.extract_strided_slice %111 {offsets = [0, 0], sizes = [2, 32], strides = [1, 1]} : vector<2x64xf32> to vector<2x32xf32>
    %c0_48 = arith.constant 0 : index
    %c640 = arith.constant 640 : index
    %113 = vector.load %arg8[%c0_48, %c640] : memref<2x1600xf32, #tpu.memory_space<vmem>>, vector<2x32xf32>
    tpu.vector_store %arg8[%c0_48, %c640], %112 {strides = array<i32>} : memref<2x1600xf32, #tpu.memory_space<vmem>>, vector<2x32xf32>,
    %114 = vector.extract_strided_slice %111 {offsets = [0, 32], sizes = [2, 32], strides = [1, 1]} : vector<2x64xf32> to vector<2x32xf32>
    %c0_49 = arith.constant 0 : index
    %c1440 = arith.constant 1440 : index
    %115 = vector.load %arg8[%c0_49, %c1440] : memref<2x1600xf32, #tpu.memory_space<vmem>>, vector<2x32xf32>
    tpu.vector_store %arg8[%c0_49, %c1440], %114 {strides = array<i32>} : memref<2x1600xf32, #tpu.memory_space<vmem>>, vector<2x32xf32>,
    %116 = vector.extract_strided_slice %10 {offsets = [42, 0], sizes = [2, 64], strides = [1, 1]} : vector<50x64xf32> to vector<2x64xf32>
    %117 = vector.extract_strided_slice %116 {offsets = [0, 0], sizes = [2, 32], strides = [1, 1]} : vector<2x64xf32> to vector<2x32xf32>
    %c0_50 = arith.constant 0 : index
    %c672 = arith.constant 672 : index
    %118 = vector.load %arg8[%c0_50, %c672] : memref<2x1600xf32, #tpu.memory_space<vmem>>, vector<2x32xf32>
    tpu.vector_store %arg8[%c0_50, %c672], %117 {strides = array<i32>} : memref<2x1600xf32, #tpu.memory_space<vmem>>, vector<2x32xf32>,
    %119 = vector.extract_strided_slice %116 {offsets = [0, 32], sizes = [2, 32], strides = [1, 1]} : vector<2x64xf32> to vector<2x32xf32>
    %c0_51 = arith.constant 0 : index
    %c1472 = arith.constant 1472 : index
    %120 = vector.load %arg8[%c0_51, %c1472] : memref<2x1600xf32, #tpu.memory_space<vmem>>, vector<2x32xf32>
    tpu.vector_store %arg8[%c0_51, %c1472], %119 {strides = array<i32>} : memref<2x1600xf32, #tpu.memory_space<vmem>>, vector<2x32xf32>,
    %121 = vector.extract_strided_slice %10 {offsets = [44, 0], sizes = [2, 64], strides = [1, 1]} : vector<50x64xf32> to vector<2x64xf32>
    %122 = vector.extract_strided_slice %121 {offsets = [0, 0], sizes = [2, 32], strides = [1, 1]} : vector<2x64xf32> to vector<2x32xf32>
    %c0_52 = arith.constant 0 : index
    %c704 = arith.constant 704 : index
    %123 = vector.load %arg8[%c0_52, %c704] : memref<2x1600xf32, #tpu.memory_space<vmem>>, vector<2x32xf32>
    tpu.vector_store %arg8[%c0_52, %c704], %122 {strides = array<i32>} : memref<2x1600xf32, #tpu.memory_space<vmem>>, vector<2x32xf32>,
    %124 = vector.extract_strided_slice %121 {offsets = [0, 32], sizes = [2, 32], strides = [1, 1]} : vector<2x64xf32> to vector<2x32xf32>
    %c0_53 = arith.constant 0 : index
    %c1504 = arith.constant 1504 : index
    %125 = vector.load %arg8[%c0_53, %c1504] : memref<2x1600xf32, #tpu.memory_space<vmem>>, vector<2x32xf32>
    tpu.vector_store %arg8[%c0_53, %c1504], %124 {strides = array<i32>} : memref<2x1600xf32, #tpu.memory_space<vmem>>, vector<2x32xf32>,
    %126 = vector.extract_strided_slice %10 {offsets = [46, 0], sizes = [2, 64], strides = [1, 1]} : vector<50x64xf32> to vector<2x64xf32>
    %127 = vector.extract_strided_slice %126 {offsets = [0, 0], sizes = [2, 32], strides = [1, 1]} : vector<2x64xf32> to vector<2x32xf32>
    %c0_54 = arith.constant 0 : index
    %c736 = arith.constant 736 : index
    %128 = vector.load %arg8[%c0_54, %c736] : memref<2x1600xf32, #tpu.memory_space<vmem>>, vector<2x32xf32>
    tpu.vector_store %arg8[%c0_54, %c736], %127 {strides = array<i32>} : memref<2x1600xf32, #tpu.memory_space<vmem>>, vector<2x32xf32>,
    %129 = vector.extract_strided_slice %126 {offsets = [0, 32], sizes = [2, 32], strides = [1, 1]} : vector<2x64xf32> to vector<2x32xf32>
    %c0_55 = arith.constant 0 : index
    %c1536 = arith.constant 1536 : index
    %130 = vector.load %arg8[%c0_55, %c1536] : memref<2x1600xf32, #tpu.memory_space<vmem>>, vector<2x32xf32>
    tpu.vector_store %arg8[%c0_55, %c1536], %129 {strides = array<i32>} : memref<2x1600xf32, #tpu.memory_space<vmem>>, vector<2x32xf32>,
    %131 = vector.extract_strided_slice %10 {offsets = [48, 0], sizes = [2, 64], strides = [1, 1]} : vector<50x64xf32> to vector<2x64xf32>
    %132 = vector.extract_strided_slice %131 {offsets = [0, 0], sizes = [2, 32], strides = [1, 1]} : vector<2x64xf32> to vector<2x32xf32>
    %c0_56 = arith.constant 0 : index
    %c768 = arith.constant 768 : index
    %133 = vector.load %arg8[%c0_56, %c768] : memref<2x1600xf32, #tpu.memory_space<vmem>>, vector<2x32xf32>
    tpu.vector_store %arg8[%c0_56, %c768], %132 {strides = array<i32>} : memref<2x1600xf32, #tpu.memory_space<vmem>>, vector<2x32xf32>,
    %134 = vector.extract_strided_slice %131 {offsets = [0, 32], sizes = [2, 32], strides = [1, 1]} : vector<2x64xf32> to vector<2x32xf32>
    %c0_57 = arith.constant 0 : index
    %c1568 = arith.constant 1568 : index
    %135 = vector.load %arg8[%c0_57, %c1568] : memref<2x1600xf32, #tpu.memory_space<vmem>>, vector<2x32xf32>
    tpu.vector_store %arg8[%c0_57, %c1568], %134 {strides = array<i32>} : memref<2x1600xf32, #tpu.memory_space<vmem>>, vector<2x32xf32>,
    %c0_58 = arith.constant 0 : index
    %c0_59 = arith.constant 0 : index
    %136 = vector.load %arg8[%c0_58, %c0_59] : memref<2x1600xf32, #tpu.memory_space<vmem>>, vector<2x1600xf32>
    %c0_60 = arith.constant 0 : index
    %c0_61 = arith.constant 0 : index
    %137 = vector.load %arg3[%c0_60, %c0_61] : memref<1600x256xbf16, #tpu.memory_space<vmem>>, vector<1600x256xbf16>
    %138 = arith.truncf %136 : vector<2x1600xf32> to vector<2x1600xbf16>
    %cst_62 = arith.constant dense<0.000000e+00> : vector<2x256xf32>
    %139 = tpu.matmul %138, %137, %cst_62 {dimension_numbers = #tpu.dot_dimension_numbers<[1], [0], [0], [1], [0, 0, 1, 1], [], []>} : vector<2x1600xbf16>, vector<1600x256xbf16>, vector<2x256xf32> -> vector<2x256xf32>
    %c0_63 = arith.constant 0 : index
    %c0_64 = arith.constant 0 : index
    %140 = vector.load %arg4[%c0_63, %c0_64] : memref<1x256xf32, #tpu.memory_space<vmem>>, vector<1x256xf32>
    %141 = vector.broadcast %140 : vector<1x256xf32> to vector<2x256xf32>
    %142 = arith.addf %139, %141 : vector<2x256xf32>
    %cst_65 = arith.constant -1.000000e+00 : f32
    %cst_66 = arith.constant 1.000000e+00 : f32
    %143 = vector.broadcast %cst_65 : f32 to vector<2x256xf32>
    %144 = arith.maximumf %143, %142 : vector<2x256xf32>
    %145 = vector.broadcast %cst_66 : f32 to vector<2x256xf32>
    %146 = arith.minimumf %145, %144 : vector<2x256xf32>
    %c0_67 = arith.constant 0 : index
    %c0_68 = arith.constant 0 : index
    %147 = vector.load %arg5[%c0_67, %c0_68] : memref<256x32xbf16, #tpu.memory_space<vmem>>, vector<256x32xbf16>
    %148 = arith.truncf %146 : vector<2x256xf32> to vector<2x256xbf16>
    %cst_69 = arith.constant dense<0.000000e+00> : vector<2x32xf32>
    %149 = tpu.matmul %148, %147, %cst_69 {dimension_numbers = #tpu.dot_dimension_numbers<[1], [0], [0], [1], [0, 0, 1, 1], [], []>} : vector<2x256xbf16>, vector<256x32xbf16>, vector<2x32xf32> -> vector<2x32xf32>
    %c0_70 = arith.constant 0 : index
    %c0_71 = arith.constant 0 : index
    %150 = vector.load %arg6[%c0_70, %c0_71] : memref<1x32xf32, #tpu.memory_space<vmem>>, vector<1x32xf32>
    %151 = vector.broadcast %150 : vector<1x32xf32> to vector<2x32xf32>
    %152 = arith.addf %149, %151 : vector<2x32xf32>
    %c0_72 = arith.constant 0 : index
    %c0_73 = arith.constant 0 : index
    %153 = vector.load %arg7[%c0_72, %c0_73] : memref<2x32xf32, #tpu.memory_space<vmem>>, vector<2x32xf32>
    tpu.vector_store %arg7[%c0_72, %c0_73], %152 {strides = array<i32>} : memref<2x32xf32, #tpu.memory_space<vmem>>, vector<2x32xf32>,
    return
  }
}

</mosaic_0001>

<llo_original>
// kernel: encoder_forward.3
$region0: #{encoder_forward.3}
  #allocation0 [shape = 'u32[]', space=smem, size = 0x4, offset = 0x4, fixed_abs, tag = 'smem constant byte address 0x4 - core index']
  #allocation1 [shape = 'u32[144,128]{1,0:T(1,128)}', space=vmem, size = 0x12000, scoped, tag = 'internal scratch']
  %s0 = inlined_call_operand.vmem [shape: f32[1152,18], index: 0, kind: input, shape index: {}]
  %s1 = inlined_call_operand.vmem [shape: bf16[18,16], index: 1, kind: input, shape index: {}]
  %s2 = inlined_call_operand.vmem [shape: f32[1,16], index: 2, kind: input, shape index: {}]
  %s3 = inlined_call_operand.vmem [shape: f32[1152,16], index: 3, kind: output, shape index: {}]
  %s4 = sld [smem:[#allocation0]]
  $region45: #{encoder_forward.3} parent=0
    _
  %s6 = ssub.s32 1, %s4
  %s7 = scalar_select 0, %s6, %s4
  loop: start=0, step=1, limit=4
  $region2: #{encoder_forward.3} parent=0 // loop_pre_header
    _
  $region3: #{encoder_forward.3} parent=0 // loop_header
    %s9 = sphi 0, %s13
    %p10 = scmp.ge.s32.totalorder %s9, 4
    %s19 = sphi 0, %s21
    %s22 = sphi 0, %s19
    %s23 = sphi 0, %s22
    %s39 = sphi 0, %s23
    %s43 = sphi 0, %s43
    %s45 = sphi 0, %s43
    %s46 = sphi 0, %s45
    %s60 = sphi 0, %s46
    %s64 = sphi 0, %s64
    %s66 = sphi 0, %s64
    %s67 = sphi 0, %s66
    %s81 = sphi 0, %s67
    %s87 = sphi 0, %s89
    %s90 = sphi 0, %s87
    %s91 = sphi 0, %s90
    %s107 = sphi 0, %s91
  $region4: #{encoder_forward.3} parent=0 // loop_header_branch
    %12 = sbr.rel (%p10) target = $region8
  $region5: #{encoder_forward.3} parent=0 // loop_body
    %s14 = ssub.s32 %s9, 1
    %s15 = ssub.s32 %s9, 2
    %s16 = sadd.s32 %s9, 1
    %s17 = ssub.s32 %s9, %s16
    %p18 = scmp.eq.s32.totalorder %s17, 0
    %s20 = sadd.s32 %s19, 1
    %s21 = scalar_select %p18, %s19, %s20
    %p24 = pneg %p18
    %p25 = scmp.eq.s32.totalorder %s9, 1
    %p26 = por %p24, %p25
    %p27 = scmp.ne.s32.totalorder %s19, %s22
    %p28 = scmp.eq.s32.totalorder %s9, 0
    %p29 = por %p27, %p28
    %p30 = scmp.ne.s32.totalorder %s19, %s22
    %p31 = scmp.eq.s32.totalorder %s14, 1
    %p32 = por %p30, %p31
    %p33 = scmp.ne.s32.totalorder %s22, %s23
    %p34 = scmp.eq.s32.totalorder %s14, 0
    %p35 = por %p33, %p34
    %p36 = scmp.ne.s32.totalorder %s22, %s23
    %p37 = scmp.eq.s32.totalorder %s15, 1
    %p38 = por %p36, %p37
    %p40 = scmp.ne.s32.totalorder %s23, %s39
    %p41 = scmp.eq.s32.totalorder %s15, 0
    %p42 = por %p40, %p41
    %s44 = sadd.s32 %s43, 1
    %p47 = scmp.eq.s32.totalorder %s9, 1
    %p48 = scmp.ne.s32.totalorder %s43, %s45
    %p49 = scmp.eq.s32.totalorder %s9, 0
    %p50 = por %p48, %p49
    %p51 = scmp.ne.s32.totalorder %s43, %s45
    %p52 = scmp.eq.s32.totalorder %s14, 1
    %p53 = por %p51, %p52
    %p54 = scmp.ne.s32.totalorder %s45, %s46
    %p55 = scmp.eq.s32.totalorder %s14, 0
    %p56 = por %p54, %p55
    %p57 = scmp.ne.s32.totalorder %s45, %s46
    %p58 = scmp.eq.s32.totalorder %s15, 1
    %p59 = por %p57, %p58
    %p61 = scmp.ne.s32.totalorder %s46, %s60
    %p62 = scmp.eq.s32.totalorder %s15, 0
    %p63 = por %p61, %p62
    %s65 = sadd.s32 %s64, 1
    %p68 = scmp.eq.s32.totalorder %s9, 1
    %p69 = scmp.ne.s32.totalorder %s64, %s66
    %p70 = scmp.eq.s32.totalorder %s9, 0
    %p71 = por %p69, %p70
    %p72 = scmp.ne.s32.totalorder %s64, %s66
    %p73 = scmp.eq.s32.totalorder %s14, 1
    %p74 = por %p72, %p73
    %p75 = scmp.ne.s32.totalorder %s66, %s67
    %p76 = scmp.eq.s32.totalorder %s14, 0
    %p77 = por %p75, %p76
    %p78 = scmp.ne.s32.totalorder %s66, %s67
    %p79 = scmp.eq.s32.totalorder %s15, 1
    %p80 = por %p78, %p79
    %p82 = scmp.ne.s32.totalorder %s67, %s81
    %p83 = scmp.eq.s32.totalorder %s15, 0
    %p84 = por %p82, %p83
    %s85 = ssub.s32 %s9, %s16
    %p86 = scmp.eq.s32.totalorder %s85, 0
    %s88 = sadd.s32 %s87, 1
    %s89 = scalar_select %p86, %s87, %s88
    %p92 = pneg %p86
    %p93 = scmp.eq.s32.totalorder %s9, 1
    %p94 = por %p92, %p93
    %p95 = scmp.ne.s32.totalorder %s87, %s90
    %p96 = scmp.eq.s32.totalorder %s9, 0
    %p97 = por %p95, %p96
    %p98 = scmp.ne.s32.totalorder %s87, %s90
    %p99 = scmp.eq.s32.totalorder %s14, 1
    %p100 = por %p98, %p99
    %p101 = scmp.ne.s32.totalorder %s90, %s91
    %p102 = scmp.eq.s32.totalorder %s14, 0
    %p103 = por %p101, %p102
    %p104 = scmp.ne.s32.totalorder %s90, %s91
    %p105 = scmp.eq.s32.totalorder %s15, 1
    %p106 = por %p104, %p105
    %p108 = scmp.ne.s32.totalorder %s91, %s107
    %p109 = scmp.eq.s32.totalorder %s15, 0
    %p110 = por %p108, %p109
    %p111 = scmp.le.s32.totalorder 1, %s9
    %p112 = scmp.lt.s32.totalorder %s9, 3
    %p113 = pnand %p111, %p112
    %p114 = pneg %p113
    // Predicated region
    $region9: #{encoder_forward.3} parent=5 // pred_check
      _
    $region10: #{encoder_forward.3} parent=5 // pred_check_branch
      %116 = sbr.rel (%p113) target = $region12
    $region11: #{encoder_forward.3} parent=5 // pred_region
      %s117 = ssub.s32 %s9, 1
      // Predicated region
      $region13: #{encoder_forward.3} parent=11 // pred_check
        %p118 = pneg %p56
      $region14: #{encoder_forward.3} parent=11 // pred_check_branch
        %120 = sbr.rel (%p118) target = $region16
      $region15: #{encoder_forward.3} parent=11 // pred_region
        _
      $region16: #{encoder_forward.3} parent=11 // pred_fallthru
        _
      // Predicated region
      $region17: #{encoder_forward.3} parent=11 // pred_check
        %p121 = pneg %p77
      $region18: #{encoder_forward.3} parent=11 // pred_check_branch
        %123 = sbr.rel (%p121) target = $region20
      $region19: #{encoder_forward.3} parent=11 // pred_region
        _
      $region20: #{encoder_forward.3} parent=11 // pred_fallthru
        _
    $region12: #{encoder_forward.3} parent=5 // pred_fallthru
      _
    %p124 = scmp.lt.s32.totalorder %s9, 2
    // Predicated region
    $region21: #{encoder_forward.3} parent=5 // pred_check
      %p125 = pneg %p124
    $region22: #{encoder_forward.3} parent=5 // pred_check_branch
      %127 = sbr.rel (%p125) target = $region24
    $region23: #{encoder_forward.3} parent=5 // pred_region
      // Predicated region
      $region25: #{encoder_forward.3} parent=23 // pred_check
        %p128 = pneg %p29
      $region26: #{encoder_forward.3} parent=23 // pred_check_branch
        %130 = sbr.rel (%p128) target = $region28
      $region27: #{encoder_forward.3} parent=23 // pred_region
        %s131 = smul.u32 72, %s9
        %p132 = scmp.lt.s32.totalorder %s131, 143
        %s133 = scalar_select %p132, %s131, 143
        %s134 = smul.addr %s133, 8
        %s135 = scalar_lea.vmem %s0, %s134
        %s136 = smul.u32 72, %s9
      $region28: #{encoder_forward.3} parent=23 // pred_fallthru
        _
    $region24: #{encoder_forward.3} parent=5 // pred_fallthru
      _
    %p137 = scmp.le.s32.totalorder 1, %s9
    %p138 = scmp.lt.s32.totalorder %s9, 3
    %p139 = pnand %p137, %p138
    %p140 = pneg %p139
    // Predicated region
    $region29: #{encoder_forward.3} parent=5 // pred_check
      _
    $region30: #{encoder_forward.3} parent=5 // pred_check_branch
      %142 = sbr.rel (%p139) target = $region32
    $region31: #{encoder_forward.3} parent=5 // pred_region
      %s143 = ssub.s32 %s9, 1
      %s144 = smul.u32 72, %s14
      %p145 = scmp.lt.s32.totalorder %s144, 143
      %s146 = scalar_select %p145, %s144, 143
      %s147 = smul.addr %s146, 8
      %s148 = scalar_lea.vmem %s0, %s147
      %p149 = pneg %p35
      %p150 = pneg %p32
      %p151 = pneg %p56
      %p152 = pneg %p53
      %p153 = pneg %p77
      %p154 = pneg %p74
      %p155 = pneg %p103
      %p156 = pneg %p100
      %s157 = smul.u32 72, %s14
      %p158 = scmp.lt.s32.totalorder %s157, 143
      %s159 = scalar_select %p158, %s157, 143
      %s160 = smul.addr %s159, 8
      %s161 = scalar_lea.vmem %s3, %s160
      %s162 = smul.u32 72, %s14
      %p163 = scmp.lt.s32.totalorder %s162, 143
      %s164 = scalar_select %p163, %s162, 143
      %s165 = smul.addr %s164, 8
      %s166 = scalar_lea.vmem %s0, %s165
      %s167 = smul.u32 72, %s14
      %s168 = smul.u32 72, %s14
      %p169 = scmp.lt.s32.totalorder %s168, 143
      %s170 = scalar_select %p169, %s168, 143
      %s171 = smul.addr %s170, 8
      %s172 = scalar_lea.vmem %s3, %s171
      %s173 = smul.u32 72, %s14
      %v175 = vld [vmem:[%s166] sm:$0xff]
      %v176 = vld [vmem:[%s166 + $0x8] sm:$0xff]
      %v177 = vld [vmem:[%s166 + $0x10] sm:$0xff]
      %v178 = vld [vmem:[%s166 + $0x18] sm:$0xff]
      %v179 = vld [vmem:[%s166 + $0x20] sm:$0xff]
      %v180 = vld [vmem:[%s166 + $0x28] sm:$0xff]
      %v181 = vld [vmem:[%s166 + $0x30] sm:$0xff]
      %v182 = vld [vmem:[%s166 + $0x38] sm:$0xff]
      %v183 = vld [vmem:[%s166 + $0x40] sm:$0xff]
      %v184 = vld [vmem:[%s166 + $0x48] sm:$0xff]
      %v185 = vld [vmem:[%s166 + $0x50] sm:$0xff]
      %v186 = vld [vmem:[%s166 + $0x58] sm:$0xff]
      %v187 = vld [vmem:[%s166 + $0x60] sm:$0xff]
      %v188 = vld [vmem:[%s166 + $0x68] sm:$0xff]
      %v189 = vld [vmem:[%s166 + $0x70] sm:$0xff]
      %v190 = vld [vmem:[%s166 + $0x78] sm:$0xff]
      %v191 = vld [vmem:[%s166 + $0x80] sm:$0xff]
      %v192 = vld [vmem:[%s166 + $0x88] sm:$0xff]
      %v193 = vld [vmem:[%s166 + $0x90] sm:$0xff]
      %v194 = vld [vmem:[%s166 + $0x98] sm:$0xff]
      %v195 = vld [vmem:[%s166 + $0xa0] sm:$0xff]
      %v196 = vld [vmem:[%s166 + $0xa8] sm:$0xff]
      %v197 = vld [vmem:[%s166 + $0xb0] sm:$0xff]
      %v198 = vld [vmem:[%s166 + $0xb8] sm:$0xff]
      %v199 = vld [vmem:[%s166 + $0xc0] sm:$0xff]
      %v200 = vld [vmem:[%s166 + $0xc8] sm:$0xff]
      %v201 = vld [vmem:[%s166 + $0xd0] sm:$0xff]
      %v202 = vld [vmem:[%s166 + $0xd8] sm:$0xff]
      %v203 = vld [vmem:[%s166 + $0xe0] sm:$0xff]
      %v204 = vld [vmem:[%s166 + $0xe8] sm:$0xff]
      %v205 = vld [vmem:[%s166 + $0xf0] sm:$0xff]
      %v206 = vld [vmem:[%s166 + $0xf8] sm:$0xff]
      %v207 = vld [vmem:[%s166 + $0x100] sm:$0xff]
      %v208 = vld [vmem:[%s166 + $0x108] sm:$0xff]
      %v209 = vld [vmem:[%s166 + $0x110] sm:$0xff]
      %v210 = vld [vmem:[%s166 + $0x118] sm:$0xff]
      %v211 = vld [vmem:[%s166 + $0x120] sm:$0xff]
      %v212 = vld [vmem:[%s166 + $0x128] sm:$0xff]
      %v213 = vld [vmem:[%s166 + $0x130] sm:$0xff]
      %v214 = vld [vmem:[%s166 + $0x138] sm:$0xff]
      %v215 = vld [vmem:[%s166 + $0x140] sm:$0xff]
      %v216 = vld [vmem:[%s166 + $0x148] sm:$0xff]
      %v217 = vld [vmem:[%s166 + $0x150] sm:$0xff]
      %v218 = vld [vmem:[%s166 + $0x158] sm:$0xff]
      %v219 = vld [vmem:[%s166 + $0x160] sm:$0xff]
      %v220 = vld [vmem:[%s166 + $0x168] sm:$0xff]
      %v221 = vld [vmem:[%s166 + $0x170] sm:$0xff]
      %v222 = vld [vmem:[%s166 + $0x178] sm:$0xff]
      %v223 = vld [vmem:[%s166 + $0x180] sm:$0xff]
      %v224 = vld [vmem:[%s166 + $0x188] sm:$0xff]
      %v225 = vld [vmem:[%s166 + $0x190] sm:$0xff]
      %v226 = vld [vmem:[%s166 + $0x198] sm:$0xff]
      %v227 = vld [vmem:[%s166 + $0x1a0] sm:$0xff]
      %v228 = vld [vmem:[%s166 + $0x1a8] sm:$0xff]
      %v229 = vld [vmem:[%s166 + $0x1b0] sm:$0xff]
      %v230 = vld [vmem:[%s166 + $0x1b8] sm:$0xff]
      %v231 = vld [vmem:[%s166 + $0x1c0] sm:$0xff]
      %v232 = vld [vmem:[%s166 + $0x1c8] sm:$0xff]
      %v233 = vld [vmem:[%s166 + $0x1d0] sm:$0xff]
      %v234 = vld [vmem:[%s166 + $0x1d8] sm:$0xff]
      %v235 = vld [vmem:[%s166 + $0x1e0] sm:$0xff]
      %v236 = vld [vmem:[%s166 + $0x1e8] sm:$0xff]
      %v237 = vld [vmem:[%s166 + $0x1f0] sm:$0xff]
      %v238 = vld [vmem:[%s166 + $0x1f8] sm:$0xff]
      %v239 = vld [vmem:[%s166 + $0x200] sm:$0xff]
      %v240 = vld [vmem:[%s166 + $0x208] sm:$0xff]
      %v241 = vld [vmem:[%s166 + $0x210] sm:$0xff]
      %v242 = vld [vmem:[%s166 + $0x218] sm:$0xff]
      %v243 = vld [vmem:[%s166 + $0x220] sm:$0xff]
      %v244 = vld [vmem:[%s166 + $0x228] sm:$0xff]
      %v245 = vld [vmem:[%s166 + $0x230] sm:$0xff]
      %v246 = vld [vmem:[%s166 + $0x238] sm:$0xff]
      %v247 = vld [vmem:[%s1] sm:$0xf]
      %v248 = vld [vmem:[%s1 + $0x4] sm:$0xf]
      %v249 = vld [vmem:[%s1 + $0x8] sm:$0x1]
      %v250 = vpack.c.bf16 %v176, %v175
      %v251 = vpack.c.bf16 %v178, %v177
      %v252 = vpack.c.bf16 %v180, %v179
      %v253 = vpack.c.bf16 %v182, %v181
      %v254 = vpack.c.bf16 %v184, %v183
      %v255 = vpack.c.bf16 %v186, %v185
      %v256 = vpack.c.bf16 %v188, %v187
      %v257 = vpack.c.bf16 %v190, %v189
      %v258 = vpack.c.bf16 %v192, %v191
      %v259 = vpack.c.bf16 %v194, %v193
      %v260 = vpack.c.bf16 %v196, %v195
      %v261 = vpack.c.bf16 %v198, %v197
      %v262 = vpack.c.bf16 %v200, %v199
      %v263 = vpack.c.bf16 %v202, %v201
      %v264 = vpack.c.bf16 %v204, %v203
      %v265 = vpack.c.bf16 %v206, %v205
      %v266 = vpack.c.bf16 %v208, %v207
      %v267 = vpack.c.bf16 %v210, %v209
      %v268 = vpack.c.bf16 %v212, %v211
      %v269 = vpack.c.bf16 %v214, %v213
      %v270 = vpack.c.bf16 %v216, %v215
      %v271 = vpack.c.bf16 %v218, %v217
      %v272 = vpack.c.bf16 %v220, %v219
      %v273 = vpack.c.bf16 %v222, %v221
      %v274 = vpack.c.bf16 %v224, %v223
      %v275 = vpack.c.bf16 %v226, %v225
      %v276 = vpack.c.bf16 %v228, %v227
      %v277 = vpack.c.bf16 %v230, %v229
      %v278 = vpack.c.bf16 %v232, %v231
      %v279 = vpack.c.bf16 %v234, %v233
      %v280 = vpack.c.bf16 %v236, %v235
      %v281 = vpack.c.bf16 %v238, %v237
      %v282 = vpack.c.bf16 %v240, %v239
      %v283 = vpack.c.bf16 %v242, %v241
      %v284 = vpack.c.bf16 %v244, %v243
      %v285 = vpack.c.bf16 %v246, %v245
      %v286 = vld [vmem:[%s2] sm:$0x1]
      %v288 = vlaneseq
      %v289 = vshrl.u32 %v288, 7
      %v290 = vsub.s32 0, %v289
      %v291 = vrot.slane %v286, %v290
      %v296 = vunpack.c.l.b16 %v247
      %v297 = vunpack.c.l.b16 %v248
      %v298 = vunpack.c.l.b16 %v249
      %v299 = vpack.c.b16 %v297, %v296
      %v300 = vpack.c.b16 %v298, %v298
      %vm302 = vcmask 146432
      %v304 = vsel %vm302, %v250, 0
      %v307 = vsel %vm302, %v251, 0
      %v310 = vsel %vm302, %v252, 0
      %v313 = vsel %vm302, %v253, 0
      %v316 = vsel %vm302, %v254, 0
      %v319 = vsel %vm302, %v255, 0
      %v322 = vsel %vm302, %v256, 0
      %v325 = vsel %vm302, %v257, 0
      %v328 = vsel %vm302, %v258, 0
      %v331 = vsel %vm302, %v259, 0
      %v334 = vsel %vm302, %v260, 0
      %v337 = vsel %vm302, %v261, 0
      %v340 = vsel %vm302, %v262, 0
      %v343 = vsel %vm302, %v263, 0
      %v346 = vsel %vm302, %v264, 0
      %v349 = vsel %vm302, %v265, 0
      %v352 = vsel %vm302, %v266, 0
      %v355 = vsel %vm302, %v267, 0
      %v358 = vsel %vm302, %v268, 0
      %v361 = vsel %vm302, %v269, 0
      %v364 = vsel %vm302, %v270, 0
      %v367 = vsel %vm302, %v271, 0
      %v370 = vsel %vm302, %v272, 0
      %v373 = vsel %vm302, %v273, 0
      %v376 = vsel %vm302, %v274, 0
      %v379 = vsel %vm302, %v275, 0
      %v382 = vsel %vm302, %v276, 0
      %v385 = vsel %vm302, %v277, 0
      %v388 = vsel %vm302, %v278, 0
      %v391 = vsel %vm302, %v279, 0
      %v394 = vsel %vm302, %v280, 0
      %v397 = vsel %vm302, %v281, 0
      %v400 = vsel %vm302, %v282, 0
      %v403 = vsel %vm302, %v283, 0
      %v406 = vsel %vm302, %v284, 0
      %v409 = vsel %vm302, %v285, 0
      %vm411 = vcmask 1040384
      %v413 = vsel %vm411, %v300, 0
      %415 = vmatprep.subr.bf16.mxu0 0
      %416 = vmatpush1.bf16.msra.mxu0 %v299
      %417 = vmatprep.subr.bf16.mxu0 0
      %418 = vmatpush1.bf16.msra.mxu0 %v413
      %419 = vmatprep.subr.bf16.mxu0 0
      %420 = vmatpush1.bf16.msra.mxu0 0
      %421 = vmatprep.subr.bf16.mxu0 0
      %422 = vmatpush1.bf16.msra.mxu0 0
      %423 = vmatprep.subr.bf16.mxu0 0
      %424 = vmatpush1.bf16.msra.mxu0 0
      %425 = vmatprep.subr.bf16.mxu0 0
      %426 = vmatpush1.bf16.msra.mxu0 0
      %427 = vmatprep.subr.bf16.mxu0 0
      %428 = vmatpush1.bf16.msra.mxu0 0
      %429 = vmatprep.subr.bf16.mxu0 0
      %430 = vmatpush1.bf16.msra.mxu0 0
      %431 = vmatprep.subr.bf16.mxu0 0
      %432 = vmatpush1.bf16.msra.mxu0 0
      %433 = vmatprep.subr.bf16.mxu0 0
      %434 = vmatpush1.bf16.msra.mxu0 0
      %435 = vmatprep.subr.bf16.mxu0 0
      %436 = vmatpush1.bf16.msra.mxu0 0
      %437 = vmatprep.subr.bf16.mxu0 0
      %438 = vmatpush1.bf16.msra.mxu0 0
      %439 = vmatprep.subr.bf16.mxu0 0
      %440 = vmatpush1.bf16.msra.mxu0 0
      %441 = vmatprep.subr.bf16.mxu0 0
      %442 = vmatpush1.bf16.msra.mxu0 0
      %443 = vmatprep.subr.bf16.mxu0 0
      %444 = vmatpush1.bf16.msra.mxu0 0
      %445 = vmatprep.subr.bf16.mxu0 0
      %446 = vmatpush1.bf16.msra.mxu0 0
      %447 = vmatprep.mubr.bf16.mxu0 0
      %448 = vmatmul.mubr.bf16.gmra.mrb[0].mxu0 %v304
      %v449 = vpop.f32.mrb[0].mxu0
      %v450 = vadd.f32 %v291, %v449
      %v451 = vpop.f32.mrb[0].mxu0
      %v452 = vpop.f32.mrb[0].mxu0
      %v453 = vadd.f32 %v291, %v452
      %v454 = vpop.f32.mrb[0].mxu0
      %455 = vmatprep.mubr.bf16.mxu0 0
      %456 = vmatmul.mubr.bf16.gmra.mrb[0].mxu0 %v307
      %v457 = vpop.f32.mrb[0].mxu0
      %v458 = vadd.f32 %v291, %v457
      %v459 = vpop.f32.mrb[0].mxu0
      %v460 = vpop.f32.mrb[0].mxu0
      %v461 = vadd.f32 %v291, %v460
      %v462 = vpop.f32.mrb[0].mxu0
      %463 = vmatprep.mubr.bf16.mxu0 0
      %464 = vmatmul.mubr.bf16.gmra.mrb[0].mxu0 %v310
      %v465 = vpop.f32.mrb[0].mxu0
      %v466 = vadd.f32 %v291, %v465
      %v467 = vpop.f32.mrb[0].mxu0
      %v468 = vpop.f32.mrb[0].mxu0
      %v469 = vadd.f32 %v291, %v468
      %v470 = vpop.f32.mrb[0].mxu0
      %471 = vmatprep.mubr.bf16.mxu0 0
      %472 = vmatmul.mubr.bf16.gmra.mrb[0].mxu0 %v313
      %v473 = vpop.f32.mrb[0].mxu0
      %v474 = vadd.f32 %v291, %v473
      %v475 = vpop.f32.mrb[0].mxu0
      %v476 = vpop.f32.mrb[0].mxu0
      %v477 = vadd.f32 %v291, %v476
      %v478 = vpop.f32.mrb[0].mxu0
      %479 = vmatprep.mubr.bf16.mxu0 0
      %480 = vmatmul.mubr.bf16.gmra.mrb[0].mxu0 %v316
      %v481 = vpop.f32.mrb[0].mxu0
      %v482 = vadd.f32 %v291, %v481
      %v483 = vpop.f32.mrb[0].mxu0
      %v484 = vpop.f32.mrb[0].mxu0
      %v485 = vadd.f32 %v291, %v484
      %v486 = vpop.f32.mrb[0].mxu0
      %487 = vmatprep.mubr.bf16.mxu0 0
      %488 = vmatmul.mubr.bf16.gmra.mrb[0].mxu0 %v319
      %v489 = vpop.f32.mrb[0].mxu0
      %v490 = vadd.f32 %v291, %v489
      %v491 = vpop.f32.mrb[0].mxu0
      %v492 = vpop.f32.mrb[0].mxu0
      %v493 = vadd.f32 %v291, %v492
      %v494 = vpop.f32.mrb[0].mxu0
      %495 = vmatprep.mubr.bf16.mxu0 0
      %496 = vmatmul.mubr.bf16.gmra.mrb[0].mxu0 %v322
      %v497 = vpop.f32.mrb[0].mxu0
      %v498 = vadd.f32 %v291, %v497
      %v499 = vpop.f32.mrb[0].mxu0
      %v500 = vpop.f32.mrb[0].mxu0
      %v501 = vadd.f32 %v291, %v500
      %v502 = vpop.f32.mrb[0].mxu0
      %503 = vmatprep.mubr.bf16.mxu0 0
      %504 = vmatmul.mubr.bf16.gmra.mrb[0].mxu0 %v325
      %v505 = vpop.f32.mrb[0].mxu0
      %v506 = vadd.f32 %v291, %v505
      %v507 = vpop.f32.mrb[0].mxu0
      %v508 = vpop.f32.mrb[0].mxu0
      %v509 = vadd.f32 %v291, %v508
      %v510 = vpop.f32.mrb[0].mxu0
      %511 = vmatprep.mubr.bf16.mxu0 0
      %512 = vmatmul.mubr.bf16.gmra.mrb[0].mxu0 %v328
      %v513 = vpop.f32.mrb[0].mxu0
      %v514 = vadd.f32 %v291, %v513
      %v515 = vpop.f32.mrb[0].mxu0
      %v516 = vpop.f32.mrb[0].mxu0
      %v517 = vadd.f32 %v291, %v516
      %v518 = vpop.f32.mrb[0].mxu0
      %519 = vmatprep.mubr.bf16.mxu0 0
      %520 = vmatmul.mubr.bf16.gmra.mrb[0].mxu0 %v331
      %v521 = vpop.f32.mrb[0].mxu0
      %v522 = vadd.f32 %v291, %v521
      %v523 = vpop.f32.mrb[0].mxu0
      %v524 = vpop.f32.mrb[0].mxu0
      %v525 = vadd.f32 %v291, %v524
      %v526 = vpop.f32.mrb[0].mxu0
      %527 = vmatprep.mubr.bf16.mxu0 0
      %528 = vmatmul.mubr.bf16.gmra.mrb[0].mxu0 %v334
      %v529 = vpop.f32.mrb[0].mxu0
      %v530 = vadd.f32 %v291, %v529
      %v531 = vpop.f32.mrb[0].mxu0
      %v532 = vpop.f32.mrb[0].mxu0
      %v533 = vadd.f32 %v291, %v532
      %v534 = vpop.f32.mrb[0].mxu0
      %535 = vmatprep.mubr.bf16.mxu0 0
      %536 = vmatmul.mubr.bf16.gmra.mrb[0].mxu0 %v337
      %v537 = vpop.f32.mrb[0].mxu0
      %v538 = vadd.f32 %v291, %v537
      %v539 = vpop.f32.mrb[0].mxu0
      %v540 = vpop.f32.mrb[0].mxu0
      %v541 = vadd.f32 %v291, %v540
      %v542 = vpop.f32.mrb[0].mxu0
      %543 = vmatprep.mubr.bf16.mxu0 0
      %544 = vmatmul.mubr.bf16.gmra.mrb[0].mxu0 %v340
      %v545 = vpop.f32.mrb[0].mxu0
      %v546 = vadd.f32 %v291, %v545
      %v547 = vpop.f32.mrb[0].mxu0
      %v548 = vpop.f32.mrb[0].mxu0
      %v549 = vadd.f32 %v291, %v548
      %v550 = vpop.f32.mrb[0].mxu0
      %551 = vmatprep.mubr.bf16.mxu0 0
      %552 = vmatmul.mubr.bf16.gmra.mrb[0].mxu0 %v343
      %v553 = vpop.f32.mrb[0].mxu0
      %v554 = vadd.f32 %v291, %v553
      %v555 = vpop.f32.mrb[0].mxu0
      %v556 = vpop.f32.mrb[0].mxu0
      %v557 = vadd.f32 %v291, %v556
      %v558 = vpop.f32.mrb[0].mxu0
      %559 = vmatprep.mubr.bf16.mxu0 0
      %560 = vmatmul.mubr.bf16.gmra.mrb[0].mxu0 %v346
      %v561 = vpop.f32.mrb[0].mxu0
      %v562 = vadd.f32 %v291, %v561
      %v563 = vpop.f32.mrb[0].mxu0
      %v564 = vpop.f32.mrb[0].mxu0
      %v565 = vadd.f32 %v291, %v564
      %v566 = vpop.f32.mrb[0].mxu0
      %567 = vmatprep.mubr.bf16.mxu0 0
      %568 = vmatmul.mubr.bf16.gmra.mrb[0].mxu0 %v349
      %v569 = vpop.f32.mrb[0].mxu0
      %v570 = vadd.f32 %v291, %v569
      %v571 = vpop.f32.mrb[0].mxu0
      %v572 = vpop.f32.mrb[0].mxu0
      %v573 = vadd.f32 %v291, %v572
      %v574 = vpop.f32.mrb[0].mxu0
      %575 = vmatprep.mubr.bf16.mxu0 0
      %576 = vmatmul.mubr.bf16.gmra.mrb[0].mxu0 %v352
      %v577 = vpop.f32.mrb[0].mxu0
      %v578 = vadd.f32 %v291, %v577
      %v579 = vpop.f32.mrb[0].mxu0
      %v580 = vpop.f32.mrb[0].mxu0
      %v581 = vadd.f32 %v291, %v580
      %v582 = vpop.f32.mrb[0].mxu0
      %583 = vmatprep.mubr.bf16.mxu0 0
      %584 = vmatmul.mubr.bf16.gmra.mrb[0].mxu0 %v355
      %v585 = vpop.f32.mrb[0].mxu0
      %v586 = vadd.f32 %v291, %v585
      %v587 = vpop.f32.mrb[0].mxu0
      %v588 = vpop.f32.mrb[0].mxu0
      %v589 = vadd.f32 %v291, %v588
      %v590 = vpop.f32.mrb[0].mxu0
      %591 = vmatprep.mubr.bf16.mxu0 0
      %592 = vmatmul.mubr.bf16.gmra.mrb[0].mxu0 %v358
      %v593 = vpop.f32.mrb[0].mxu0
      %v594 = vadd.f32 %v291, %v593
      %v595 = vpop.f32.mrb[0].mxu0
      %v596 = vpop.f32.mrb[0].mxu0
      %v597 = vadd.f32 %v291, %v596
      %v598 = vpop.f32.mrb[0].mxu0
      %599 = vmatprep.mubr.bf16.mxu0 0
      %600 = vmatmul.mubr.bf16.gmra.mrb[0].mxu0 %v361
      %v601 = vpop.f32.mrb[0].mxu0
      %v602 = vadd.f32 %v291, %v601
      %v603 = vpop.f32.mrb[0].mxu0
      %v604 = vpop.f32.mrb[0].mxu0
      %v605 = vadd.f32 %v291, %v604
      %v606 = vpop.f32.mrb[0].mxu0
      %607 = vmatprep.mubr.bf16.mxu0 0
      %608 = vmatmul.mubr.bf16.gmra.mrb[0].mxu0 %v364
      %v609 = vpop.f32.mrb[0].mxu0
      %v610 = vadd.f32 %v291, %v609
      %v611 = vpop.f32.mrb[0].mxu0
      %v612 = vpop.f32.mrb[0].mxu0
      %v613 = vadd.f32 %v291, %v612
      %v614 = vpop.f32.mrb[0].mxu0
      %615 = vmatprep.mubr.bf16.mxu0 0
      %616 = vmatmul.mubr.bf16.gmra.mrb[0].mxu0 %v367
      %v617 = vpop.f32.mrb[0].mxu0
      %v618 = vadd.f32 %v291, %v617
      %v619 = vpop.f32.mrb[0].mxu0
      %v620 = vpop.f32.mrb[0].mxu0
      %v621 = vadd.f32 %v291, %v620
      %v622 = vpop.f32.mrb[0].mxu0
      %623 = vmatprep.mubr.bf16.mxu0 0
      %624 = vmatmul.mubr.bf16.gmra.mrb[0].mxu0 %v370
      %v625 = vpop.f32.mrb[0].mxu0
      %v626 = vadd.f32 %v291, %v625
      %v627 = vpop.f32.mrb[0].mxu0
      %v628 = vpop.f32.mrb[0].mxu0
      %v629 = vadd.f32 %v291, %v628
      %v630 = vpop.f32.mrb[0].mxu0
      %631 = vmatprep.mubr.bf16.mxu0 0
      %632 = vmatmul.mubr.bf16.gmra.mrb[0].mxu0 %v373
      %v633 = vpop.f32.mrb[0].mxu0
      %v634 = vadd.f32 %v291, %v633
      %v635 = vpop.f32.mrb[0].mxu0
      %v636 = vpop.f32.mrb[0].mxu0
      %v637 = vadd.f32 %v291, %v636
      %v638 = vpop.f32.mrb[0].mxu0
      %639 = vmatprep.mubr.bf16.mxu0 0
      %640 = vmatmul.mubr.bf16.gmra.mrb[0].mxu0 %v376
      %v641 = vpop.f32.mrb[0].mxu0
      %v642 = vadd.f32 %v291, %v641
      %v643 = vpop.f32.mrb[0].mxu0
      %v644 = vpop.f32.mrb[0].mxu0
      %v645 = vadd.f32 %v291, %v644
      %v646 = vpop.f32.mrb[0].mxu0
      %647 = vmatprep.mubr.bf16.mxu0 0
      %648 = vmatmul.mubr.bf16.gmra.mrb[0].mxu0 %v379
      %v649 = vpop.f32.mrb[0].mxu0
      %v650 = vadd.f32 %v291, %v649
      %v651 = vpop.f32.mrb[0].mxu0
      %v652 = vpop.f32.mrb[0].mxu0
      %v653 = vadd.f32 %v291, %v652
      %v654 = vpop.f32.mrb[0].mxu0
      %655 = vmatprep.mubr.bf16.mxu0 0
      %656 = vmatmul.mubr.bf16.gmra.mrb[0].mxu0 %v382
      %v657 = vpop.f32.mrb[0].mxu0
      %v658 = vadd.f32 %v291, %v657
      %v659 = vpop.f32.mrb[0].mxu0
      %v660 = vpop.f32.mrb[0].mxu0
      %v661 = vadd.f32 %v291, %v660
      %v662 = vpop.f32.mrb[0].mxu0
      %663 = vmatprep.mubr.bf16.mxu0 0
      %664 = vmatmul.mubr.bf16.gmra.mrb[0].mxu0 %v385
      %v665 = vpop.f32.mrb[0].mxu0
      %v666 = vadd.f32 %v291, %v665
      %v667 = vpop.f32.mrb[0].mxu0
      %v668 = vpop.f32.mrb[0].mxu0
      %v669 = vadd.f32 %v291, %v668
      %v670 = vpop.f32.mrb[0].mxu0
      %671 = vmatprep.mubr.bf16.mxu0 0
      %672 = vmatmul.mubr.bf16.gmra.mrb[0].mxu0 %v388
      %v673 = vpop.f32.mrb[0].mxu0
      %v674 = vadd.f32 %v291, %v673
      %v675 = vpop.f32.mrb[0].mxu0
      %v676 = vpop.f32.mrb[0].mxu0
      %v677 = vadd.f32 %v291, %v676
      %v678 = vpop.f32.mrb[0].mxu0
      %679 = vmatprep.mubr.bf16.mxu0 0
      %680 = vmatmul.mubr.bf16.gmra.mrb[0].mxu0 %v391
      %v681 = vpop.f32.mrb[0].mxu0
      %v682 = vadd.f32 %v291, %v681
      %v683 = vpop.f32.mrb[0].mxu0
      %v684 = vpop.f32.mrb[0].mxu0
      %v685 = vadd.f32 %v291, %v684
      %v686 = vpop.f32.mrb[0].mxu0
      %687 = vmatprep.mubr.bf16.mxu0 0
      %688 = vmatmul.mubr.bf16.gmra.mrb[0].mxu0 %v394
      %v689 = vpop.f32.mrb[0].mxu0
      %v690 = vadd.f32 %v291, %v689
      %v691 = vpop.f32.mrb[0].mxu0
      %v692 = vpop.f32.mrb[0].mxu0
      %v693 = vadd.f32 %v291, %v692
      %v694 = vpop.f32.mrb[0].mxu0
      %695 = vmatprep.mubr.bf16.mxu0 0
      %696 = vmatmul.mubr.bf16.gmra.mrb[0].mxu0 %v397
      %v697 = vpop.f32.mrb[0].mxu0
      %v698 = vadd.f32 %v291, %v697
      %v699 = vpop.f32.mrb[0].mxu0
      %v700 = vpop.f32.mrb[0].mxu0
      %v701 = vadd.f32 %v291, %v700
      %v702 = vpop.f32.mrb[0].mxu0
      %703 = vmatprep.mubr.bf16.mxu0 0
      %704 = vmatmul.mubr.bf16.gmra.mrb[0].mxu0 %v400
      %v705 = vpop.f32.mrb[0].mxu0
      %v706 = vadd.f32 %v291, %v705
      %v707 = vpop.f32.mrb[0].mxu0
      %v708 = vpop.f32.mrb[0].mxu0
      %v709 = vadd.f32 %v291, %v708
      %v710 = vpop.f32.mrb[0].mxu0
      %711 = vmatprep.mubr.bf16.mxu0 0
      %712 = vmatmul.mubr.bf16.gmra.mrb[0].mxu0 %v403
      %v713 = vpop.f32.mrb[0].mxu0
      %v714 = vadd.f32 %v291, %v713
      %v715 = vpop.f32.mrb[0].mxu0
      %v716 = vpop.f32.mrb[0].mxu0
      %v717 = vadd.f32 %v291, %v716
      %v718 = vpop.f32.mrb[0].mxu0
      %719 = vmatprep.mubr.bf16.mxu0 0
      %720 = vmatmul.mubr.bf16.gmra.mrb[0].mxu0 %v406
      %v721 = vpop.f32.mrb[0].mxu0
      %v722 = vadd.f32 %v291, %v721
      %v723 = vpop.f32.mrb[0].mxu0
      %v724 = vpop.f32.mrb[0].mxu0
      %v725 = vadd.f32 %v291, %v724
      %v726 = vpop.f32.mrb[0].mxu0
      %727 = vmatprep.mubr.bf16.mxu0 0
      %728 = vmatmul.mubr.bf16.gmra.mrb[0].mxu0 %v409
      %v729 = vpop.f32.mrb[0].mxu0
      %v730 = vadd.f32 %v291, %v729
      %v731 = vpop.f32.mrb[0].mxu0
      %v732 = vpop.f32.mrb[0].mxu0
      %v733 = vadd.f32 %v291, %v732
      %v734 = vpop.f32.mrb[0].mxu0
      %735 = vdwg.mxu0
      %v736 = vmax.f32 %v450, -1.0
      %v737 = vmax.f32 %v453, -1.0
      %v738 = vmax.f32 %v458, -1.0
      %v739 = vmax.f32 %v461, -1.0
      %v740 = vmax.f32 %v466, -1.0
      %v741 = vmax.f32 %v469, -1.0
      %v742 = vmax.f32 %v474, -1.0
      %v743 = vmax.f32 %v477, -1.0
      %v744 = vmax.f32 %v482, -1.0
      %v745 = vmax.f32 %v485, -1.0
      %v746 = vmax.f32 %v490, -1.0
      %v747 = vmax.f32 %v493, -1.0
      %v748 = vmax.f32 %v498, -1.0
      %v749 = vmax.f32 %v501, -1.0
      %v750 = vmax.f32 %v506, -1.0
      %v751 = vmax.f32 %v509, -1.0
      %v752 = vmax.f32 %v514, -1.0
      %v753 = vmax.f32 %v517, -1.0
      %v754 = vmax.f32 %v522, -1.0
      %v755 = vmax.f32 %v525, -1.0
      %v756 = vmax.f32 %v530, -1.0
      %v757 = vmax.f32 %v533, -1.0
      %v758 = vmax.f32 %v538, -1.0
      %v759 = vmax.f32 %v541, -1.0
      %v760 = vmax.f32 %v546, -1.0
      %v761 = vmax.f32 %v549, -1.0
      %v762 = vmax.f32 %v554, -1.0
      %v763 = vmax.f32 %v557, -1.0
      %v764 = vmax.f32 %v562, -1.0
      %v765 = vmax.f32 %v565, -1.0
      %v766 = vmax.f32 %v570, -1.0
      %v767 = vmax.f32 %v573, -1.0
      %v768 = vmax.f32 %v578, -1.0
      %v769 = vmax.f32 %v581, -1.0
      %v770 = vmax.f32 %v586, -1.0
      %v771 = vmax.f32 %v589, -1.0
      %v772 = vmax.f32 %v594, -1.0
      %v773 = vmax.f32 %v597, -1.0
      %v774 = vmax.f32 %v602, -1.0
      %v775 = vmax.f32 %v605, -1.0
      %v776 = vmax.f32 %v610, -1.0
      %v777 = vmax.f32 %v613, -1.0
      %v778 = vmax.f32 %v618, -1.0
      %v779 = vmax.f32 %v621, -1.0
      %v780 = vmax.f32 %v626, -1.0
      %v781 = vmax.f32 %v629, -1.0
      %v782 = vmax.f32 %v634, -1.0
      %v783 = vmax.f32 %v637, -1.0
      %v784 = vmax.f32 %v642, -1.0
      %v785 = vmax.f32 %v645, -1.0
      %v786 = vmax.f32 %v650, -1.0
      %v787 = vmax.f32 %v653, -1.0
      %v788 = vmax.f32 %v658, -1.0
      %v789 = vmax.f32 %v661, -1.0
      %v790 = vmax.f32 %v666, -1.0
      %v791 = vmax.f32 %v669, -1.0
      %v792 = vmax.f32 %v674, -1.0
      %v793 = vmax.f32 %v677, -1.0
      %v794 = vmax.f32 %v682, -1.0
      %v795 = vmax.f32 %v685, -1.0
      %v796 = vmax.f32 %v690, -1.0
      %v797 = vmax.f32 %v693, -1.0
      %v798 = vmax.f32 %v698, -1.0
      %v799 = vmax.f32 %v701, -1.0
      %v800 = vmax.f32 %v706, -1.0
      %v801 = vmax.f32 %v709, -1.0
      %v802 = vmax.f32 %v714, -1.0
      %v803 = vmax.f32 %v717, -1.0
      %v804 = vmax.f32 %v722, -1.0
      %v805 = vmax.f32 %v725, -1.0
      %v806 = vmax.f32 %v730, -1.0
      %v807 = vmax.f32 %v733, -1.0
      %v808 = vmin.f32 %v736, 1.0
      %v809 = vmin.f32 %v737, 1.0
      %v810 = vmin.f32 %v738, 1.0
      %v811 = vmin.f32 %v739, 1.0
      %v812 = vmin.f32 %v740, 1.0
      %v813 = vmin.f32 %v741, 1.0
      %v814 = vmin.f32 %v742, 1.0
      %v815 = vmin.f32 %v743, 1.0
      %v816 = vmin.f32 %v744, 1.0
      %v817 = vmin.f32 %v745, 1.0
      %v818 = vmin.f32 %v746, 1.0
      %v819 = vmin.f32 %v747, 1.0
      %v820 = vmin.f32 %v748, 1.0
      %v821 = vmin.f32 %v749, 1.0
      %v822 = vmin.f32 %v750, 1.0
      %v823 = vmin.f32 %v751, 1.0
      %v824 = vmin.f32 %v752, 1.0
      %v825 = vmin.f32 %v753, 1.0
      %v826 = vmin.f32 %v754, 1.0
      %v827 = vmin.f32 %v755, 1.0
      %v828 = vmin.f32 %v756, 1.0
      %v829 = vmin.f32 %v757, 1.0
      %v830 = vmin.f32 %v758, 1.0
      %v831 = vmin.f32 %v759, 1.0
      %v832 = vmin.f32 %v760, 1.0
      %v833 = vmin.f32 %v761, 1.0
      %v834 = vmin.f32 %v762, 1.0
      %v835 = vmin.f32 %v763, 1.0
      %v836 = vmin.f32 %v764, 1.0
      %v837 = vmin.f32 %v765, 1.0
      %v838 = vmin.f32 %v766, 1.0
      %v839 = vmin.f32 %v767, 1.0
      %v840 = vmin.f32 %v768, 1.0
      %v841 = vmin.f32 %v769, 1.0
      %v842 = vmin.f32 %v770, 1.0
      %v843 = vmin.f32 %v771, 1.0
      %v844 = vmin.f32 %v772, 1.0
      %v845 = vmin.f32 %v773, 1.0
      %v846 = vmin.f32 %v774, 1.0
      %v847 = vmin.f32 %v775, 1.0
      %v848 = vmin.f32 %v776, 1.0
      %v849 = vmin.f32 %v777, 1.0
      %v850 = vmin.f32 %v778, 1.0
      %v851 = vmin.f32 %v779, 1.0
      %v852 = vmin.f32 %v780, 1.0
      %v853 = vmin.f32 %v781, 1.0
      %v854 = vmin.f32 %v782, 1.0
      %v855 = vmin.f32 %v783, 1.0
      %v856 = vmin.f32 %v784, 1.0
      %v857 = vmin.f32 %v785, 1.0
      %v858 = vmin.f32 %v786, 1.0
      %v859 = vmin.f32 %v787, 1.0
      %v860 = vmin.f32 %v788, 1.0
      %v861 = vmin.f32 %v789, 1.0
      %v862 = vmin.f32 %v790, 1.0
      %v863 = vmin.f32 %v791, 1.0
      %v864 = vmin.f32 %v792, 1.0
      %v865 = vmin.f32 %v793, 1.0
      %v866 = vmin.f32 %v794, 1.0
      %v867 = vmin.f32 %v795, 1.0
      %v868 = vmin.f32 %v796, 1.0
      %v869 = vmin.f32 %v797, 1.0
      %v870 = vmin.f32 %v798, 1.0
      %v871 = vmin.f32 %v799, 1.0
      %v872 = vmin.f32 %v800, 1.0
      %v873 = vmin.f32 %v801, 1.0
      %v874 = vmin.f32 %v802, 1.0
      %v875 = vmin.f32 %v803, 1.0
      %v876 = vmin.f32 %v804, 1.0
      %v877 = vmin.f32 %v805, 1.0
      %v878 = vmin.f32 %v806, 1.0
      %v879 = vmin.f32 %v807, 1.0
      %vm880 = vcmask 130048
      %881 = vst.msk [vmem:[%s172] sm:$0xff] %vm880, %v808
      %882 = vst.msk [vmem:[%s172 + $0x8] sm:$0xff] %vm880, %v809
      %883 = vst.msk [vmem:[%s172 + $0x10] sm:$0xff] %vm880, %v810
      %884 = vst.msk [vmem:[%s172 + $0x18] sm:$0xff] %vm880, %v811
      %885 = vst.msk [vmem:[%s172 + $0x20] sm:$0xff] %vm880, %v812
      %886 = vst.msk [vmem:[%s172 + $0x28] sm:$0xff] %vm880, %v813
      %887 = vst.msk [vmem:[%s172 + $0x30] sm:$0xff] %vm880, %v814
      %888 = vst.msk [vmem:[%s172 + $0x38] sm:$0xff] %vm880, %v815
      %889 = vst.msk [vmem:[%s172 + $0x40] sm:$0xff] %vm880, %v816
      %890 = vst.msk [vmem:[%s172 + $0x48] sm:$0xff] %vm880, %v817
      %891 = vst.msk [vmem:[%s172 + $0x50] sm:$0xff] %vm880, %v818
      %892 = vst.msk [vmem:[%s172 + $0x58] sm:$0xff] %vm880, %v819
      %893 = vst.msk [vmem:[%s172 + $0x60] sm:$0xff] %vm880, %v820
      %894 = vst.msk [vmem:[%s172 + $0x68] sm:$0xff] %vm880, %v821
      %895 = vst.msk [vmem:[%s172 + $0x70] sm:$0xff] %vm880, %v822
      %896 = vst.msk [vmem:[%s172 + $0x78] sm:$0xff] %vm880, %v823
      %897 = vst.msk [vmem:[%s172 + $0x80] sm:$0xff] %vm880, %v824
      %898 = vst.msk [vmem:[%s172 + $0x88] sm:$0xff] %vm880, %v825
      %899 = vst.msk [vmem:[%s172 + $0x90] sm:$0xff] %vm880, %v826
      %900 = vst.msk [vmem:[%s172 + $0x98] sm:$0xff] %vm880, %v827
      %901 = vst.msk [vmem:[%s172 + $0xa0] sm:$0xff] %vm880, %v828
      %902 = vst.msk [vmem:[%s172 + $0xa8] sm:$0xff] %vm880, %v829
      %903 = vst.msk [vmem:[%s172 + $0xb0] sm:$0xff] %vm880, %v830
      %904 = vst.msk [vmem:[%s172 + $0xb8] sm:$0xff] %vm880, %v831
      %905 = vst.msk [vmem:[%s172 + $0xc0] sm:$0xff] %vm880, %v832
      %906 = vst.msk [vmem:[%s172 + $0xc8] sm:$0xff] %vm880, %v833
      %907 = vst.msk [vmem:[%s172 + $0xd0] sm:$0xff] %vm880, %v834
      %908 = vst.msk [vmem:[%s172 + $0xd8] sm:$0xff] %vm880, %v835
      %909 = vst.msk [vmem:[%s172 + $0xe0] sm:$0xff] %vm880, %v836
      %910 = vst.msk [vmem:[%s172 + $0xe8] sm:$0xff] %vm880, %v837
      %911 = vst.msk [vmem:[%s172 + $0xf0] sm:$0xff] %vm880, %v838
      %912 = vst.msk [vmem:[%s172 + $0xf8] sm:$0xff] %vm880, %v839
      %913 = vst.msk [vmem:[%s172 + $0x100] sm:$0xff] %vm880, %v840
      %914 = vst.msk [vmem:[%s172 + $0x108] sm:$0xff] %vm880, %v841
      %915 = vst.msk [vmem:[%s172 + $0x110] sm:$0xff] %vm880, %v842
      %916 = vst.msk [vmem:[%s172 + $0x118] sm:$0xff] %vm880, %v843
      %917 = vst.msk [vmem:[%s172 + $0x120] sm:$0xff] %vm880, %v844
      %918 = vst.msk [vmem:[%s172 + $0x128] sm:$0xff] %vm880, %v845
      %919 = vst.msk [vmem:[%s172 + $0x130] sm:$0xff] %vm880, %v846
      %920 = vst.msk [vmem:[%s172 + $0x138] sm:$0xff] %vm880, %v847
      %921 = vst.msk [vmem:[%s172 + $0x140] sm:$0xff] %vm880, %v848
      %922 = vst.msk [vmem:[%s172 + $0x148] sm:$0xff] %vm880, %v849
      %923 = vst.msk [vmem:[%s172 + $0x150] sm:$0xff] %vm880, %v850
      %924 = vst.msk [vmem:[%s172 + $0x158] sm:$0xff] %vm880, %v851
      %925 = vst.msk [vmem:[%s172 + $0x160] sm:$0xff] %vm880, %v852
      %926 = vst.msk [vmem:[%s172 + $0x168] sm:$0xff] %vm880, %v853
      %927 = vst.msk [vmem:[%s172 + $0x170] sm:$0xff] %vm880, %v854
      %928 = vst.msk [vmem:[%s172 + $0x178] sm:$0xff] %vm880, %v855
      %929 = vst.msk [vmem:[%s172 + $0x180] sm:$0xff] %vm880, %v856
      %930 = vst.msk [vmem:[%s172 + $0x188] sm:$0xff] %vm880, %v857
      %931 = vst.msk [vmem:[%s172 + $0x190] sm:$0xff] %vm880, %v858
      %932 = vst.msk [vmem:[%s172 + $0x198] sm:$0xff] %vm880, %v859
      %933 = vst.msk [vmem:[%s172 + $0x1a0] sm:$0xff] %vm880, %v860
      %934 = vst.msk [vmem:[%s172 + $0x1a8] sm:$0xff] %vm880, %v861
      %935 = vst.msk [vmem:[%s172 + $0x1b0] sm:$0xff] %vm880, %v862
      %936 = vst.msk [vmem:[%s172 + $0x1b8] sm:$0xff] %vm880, %v863
      %937 = vst.msk [vmem:[%s172 + $0x1c0] sm:$0xff] %vm880, %v864
      %938 = vst.msk [vmem:[%s172 + $0x1c8] sm:$0xff] %vm880, %v865
      %939 = vst.msk [vmem:[%s172 + $0x1d0] sm:$0xff] %vm880, %v866
      %940 = vst.msk [vmem:[%s172 + $0x1d8] sm:$0xff] %vm880, %v867
      %941 = vst.msk [vmem:[%s172 + $0x1e0] sm:$0xff] %vm880, %v868
      %942 = vst.msk [vmem:[%s172 + $0x1e8] sm:$0xff] %vm880, %v869
      %943 = vst.msk [vmem:[%s172 + $0x1f0] sm:$0xff] %vm880, %v870
      %944 = vst.msk [vmem:[%s172 + $0x1f8] sm:$0xff] %vm880, %v871
      %945 = vst.msk [vmem:[%s172 + $0x200] sm:$0xff] %vm880, %v872
      %946 = vst.msk [vmem:[%s172 + $0x208] sm:$0xff] %vm880, %v873
      %947 = vst.msk [vmem:[%s172 + $0x210] sm:$0xff] %vm880, %v874
      %948 = vst.msk [vmem:[%s172 + $0x218] sm:$0xff] %vm880, %v875
      %949 = vst.msk [vmem:[%s172 + $0x220] sm:$0xff] %vm880, %v876
      %950 = vst.msk [vmem:[%s172 + $0x228] sm:$0xff] %vm880, %v877
      %951 = vst.msk [vmem:[%s172 + $0x230] sm:$0xff] %vm880, %v878
      %952 = vst.msk [vmem:[%s172 + $0x238] sm:$0xff] %vm880, %v879
      %s953 = smul.u32 72, %s14
      %p954 = scmp.lt.s32.totalorder %s953, 143
      %s955 = scalar_select %p954, %s953, 143
      %s956 = smul.addr %s955, 8
      %s957 = scalar_lea.vmem %s3, %s956
      // Predicated region
      $region33: #{encoder_forward.3} parent=31 // pred_check
        %p958 = pneg %p100
      $region34: #{encoder_forward.3} parent=31 // pred_check_branch
        %960 = sbr.rel (%p958) target = $region36
      $region35: #{encoder_forward.3} parent=31 // pred_region
        %s961 = smul.u32 72, %s14
      $region36: #{encoder_forward.3} parent=31 // pred_fallthru
        _
    $region32: #{encoder_forward.3} parent=5 // pred_fallthru
      _
    %p962 = scmp.le.s32.totalorder 2, %s9
    // Predicated region
    $region37: #{encoder_forward.3} parent=5 // pred_check
      %p963 = pneg %p962
    $region38: #{encoder_forward.3} parent=5 // pred_check_branch
      %965 = sbr.rel (%p963) target = $region40
    $region39: #{encoder_forward.3} parent=5 // pred_region
      %s966 = ssub.s32 %s9, 2
      // Predicated region
      $region41: #{encoder_forward.3} parent=39 // pred_check
        %p967 = pneg %p106
      $region42: #{encoder_forward.3} parent=39 // pred_check_branch
        %969 = sbr.rel (%p967) target = $region44
      $region43: #{encoder_forward.3} parent=39 // pred_region
        %s970 = smul.u32 72, %s15
        %p971 = scmp.lt.s32.totalorder %s970, 143
        %s972 = scalar_select %p971, %s970, 143
        %s973 = smul.addr %s972, 8
        %s974 = scalar_lea.vmem %s3, %s973
      $region44: #{encoder_forward.3} parent=39 // pred_fallthru
        _
    $region40: #{encoder_forward.3} parent=5 // pred_fallthru
      _
  $region6: #{encoder_forward.3} parent=0 // loop_footer
    %s13 = sadd.s32 1, %s9
  $region7: #{encoder_forward.3} parent=0 // loop_footer_branch
    %8 = sbr.rel target = $region3
  $region8: #{encoder_forward.3} parent=0 // loop_exit
    _

// kernel: encoder_forward.4
$region0: #{encoder_forward.4}
  #allocation0 [shape = 'u32[]', space=smem, size = 0x4, offset = 0x4, fixed_abs, tag = 'smem constant byte address 0x4 - core index']
  #allocation1 [shape = 'u32[144,128]{1,0:T(1,128)}', space=vmem, size = 0x12000, scoped, tag = 'internal scratch']
  %s0 = inlined_call_operand.vmem [shape: f32[288,144], index: 0, kind: input, shape index: {}]
  %s1 = inlined_call_operand.vmem [shape: bf16[144,32], index: 1, kind: input, shape index: {}]
  %s2 = inlined_call_operand.vmem [shape: f32[1,32], index: 2, kind: input, shape index: {}]
  %s3 = inlined_call_operand.vmem [shape: f32[5,16], index: 3, kind: input, shape index: {}]
  %s4 = inlined_call_operand.vmem [shape: f32[288,32], index: 4, kind: output, shape index: {}]
  %s5 = sld [smem:[#allocation0]]
  $region26: #{encoder_forward.4} parent=0
    _
  %s7 = ssub.s32 1, %s5
  %s8 = scalar_select 0, %s7, %s5
  // Predicated region
  $region2: #{encoder_forward.4} parent=0 // pred_check
    _
  $region3: #{encoder_forward.4} parent=0 // pred_check_branch
    %10 = sbr.rel (0) target = $region5
  $region4: #{encoder_forward.4} parent=0 // pred_region
    _
  $region5: #{encoder_forward.4} parent=0 // pred_fallthru
    _
  // Predicated region
  $region6: #{encoder_forward.4} parent=0 // pred_check
    _
  $region7: #{encoder_forward.4} parent=0 // pred_check_branch
    %12 = sbr.rel (0) target = $region9
  $region8: #{encoder_forward.4} parent=0 // pred_region
    _
  $region9: #{encoder_forward.4} parent=0 // pred_fallthru
    _
  // Predicated region
  $region10: #{encoder_forward.4} parent=0 // pred_check
    _
  $region11: #{encoder_forward.4} parent=0 // pred_check_branch
    %14 = sbr.rel (0) target = $region13
  $region12: #{encoder_forward.4} parent=0 // pred_region
    _
  $region13: #{encoder_forward.4} parent=0 // pred_fallthru
    _
  // Predicated region
  $region14: #{encoder_forward.4} parent=0 // pred_check
    _
  $region15: #{encoder_forward.4} parent=0 // pred_check_branch
    %16 = sbr.rel (0) target = $region17
  $region16: #{encoder_forward.4} parent=0 // pred_region
    _
  $region17: #{encoder_forward.4} parent=0 // pred_fallthru
    _
  %v18 = vld [vmem:[%s0] sm:$0xff]
  %v19 = vld [vmem:[%s0 + $0x8] sm:$0xff]
  %v20 = vld [vmem:[%s0 + $0x10] sm:$0xff]
  %v21 = vld [vmem:[%s0 + $0x18] sm:$0xff]
  %v22 = vld [vmem:[%s0 + $0x20] sm:$0xff]
  %v23 = vld [vmem:[%s0 + $0x28] sm:$0xff]
  %v24 = vld [vmem:[%s0 + $0x30] sm:$0xff]
  %v25 = vld [vmem:[%s0 + $0x38] sm:$0xff]
  %v26 = vld [vmem:[%s0 + $0x40] sm:$0xff]
  %v27 = vld [vmem:[%s0 + $0x48] sm:$0xff]
  %v28 = vld [vmem:[%s0 + $0x50] sm:$0xff]
  %v29 = vld [vmem:[%s0 + $0x58] sm:$0xff]
  %v30 = vld [vmem:[%s0 + $0x60] sm:$0xff]
  %v31 = vld [vmem:[%s0 + $0x68] sm:$0xff]
  %v32 = vld [vmem:[%s0 + $0x70] sm:$0xff]
  %v33 = vld [vmem:[%s0 + $0x78] sm:$0xff]
  %v34 = vld [vmem:[%s0 + $0x80] sm:$0xff]
  %v35 = vld [vmem:[%s0 + $0x88] sm:$0xff]
  %v36 = vld [vmem:[%s0 + $0x90] sm:$0xff]
  %v37 = vld [vmem:[%s0 + $0x98] sm:$0xff]
  %v38 = vld [vmem:[%s0 + $0xa0] sm:$0xff]
  %v39 = vld [vmem:[%s0 + $0xa8] sm:$0xff]
  %v40 = vld [vmem:[%s0 + $0xb0] sm:$0xff]
  %v41 = vld [vmem:[%s0 + $0xb8] sm:$0xff]
  %v42 = vld [vmem:[%s0 + $0xc0] sm:$0xff]
  %v43 = vld [vmem:[%s0 + $0xc8] sm:$0xff]
  %v44 = vld [vmem:[%s0 + $0xd0] sm:$0xff]
  %v45 = vld [vmem:[%s0 + $0xd8] sm:$0xff]
  %v46 = vld [vmem:[%s0 + $0xe0] sm:$0xff]
  %v47 = vld [vmem:[%s0 + $0xe8] sm:$0xff]
  %v48 = vld [vmem:[%s0 + $0xf0] sm:$0xff]
  %v49 = vld [vmem:[%s0 + $0xf8] sm:$0xff]
  %v50 = vld [vmem:[%s0 + $0x100] sm:$0xff]
  %v51 = vld [vmem:[%s0 + $0x108] sm:$0xff]
  %v52 = vld [vmem:[%s0 + $0x110] sm:$0xff]
  %v53 = vld [vmem:[%s0 + $0x118] sm:$0xff]
  %v54 = vld [vmem:[%s0 + $0x120] sm:$0xff]
  %v55 = vld [vmem:[%s0 + $0x128] sm:$0xff]
  %v56 = vld [vmem:[%s0 + $0x130] sm:$0xff]
  %v57 = vld [vmem:[%s0 + $0x138] sm:$0xff]
  %v58 = vld [vmem:[%s0 + $0x140] sm:$0xff]
  %v59 = vld [vmem:[%s0 + $0x148] sm:$0xff]
  %v60 = vld [vmem:[%s0 + $0x150] sm:$0xff]
  %v61 = vld [vmem:[%s0 + $0x158] sm:$0xff]
  %v62 = vld [vmem:[%s0 + $0x160] sm:$0xff]
  %v63 = vld [vmem:[%s0 + $0x168] sm:$0xff]
  %v64 = vld [vmem:[%s0 + $0x170] sm:$0xff]
  %v65 = vld [vmem:[%s0 + $0x178] sm:$0xff]
  %v66 = vld [vmem:[%s0 + $0x180] sm:$0xff]
  %v67 = vld [vmem:[%s0 + $0x188] sm:$0xff]
  %v68 = vld [vmem:[%s0 + $0x190] sm:$0xff]
  %v69 = vld [vmem:[%s0 + $0x198] sm:$0xff]
  %v70 = vld [vmem:[%s0 + $0x1a0] sm:$0xff]
  %v71 = vld [vmem:[%s0 + $0x1a8] sm:$0xff]
  %v72 = vld [vmem:[%s0 + $0x1b0] sm:$0xff]
  %v73 = vld [vmem:[%s0 + $0x1b8] sm:$0xff]
  %v74 = vld [vmem:[%s0 + $0x1c0] sm:$0xff]
  %v75 = vld [vmem:[%s0 + $0x1c8] sm:$0xff]
  %v76 = vld [vmem:[%s0 + $0x1d0] sm:$0xff]
  %v77 = vld [vmem:[%s0 + $0x1d8] sm:$0xff]
  %v78 = vld [vmem:[%s0 + $0x1e0] sm:$0xff]
  %v79 = vld [vmem:[%s0 + $0x1e8] sm:$0xff]
  %v80 = vld [vmem:[%s0 + $0x1f0] sm:$0xff]
  %v81 = vld [vmem:[%s0 + $0x1f8] sm:$0xff]
  %v82 = vld [vmem:[%s0 + $0x200] sm:$0xff]
  %v83 = vld [vmem:[%s0 + $0x208] sm:$0xff]
  %v84 = vld [vmem:[%s0 + $0x210] sm:$0xff]
  %v85 = vld [vmem:[%s0 + $0x218] sm:$0xff]
  %v86 = vld [vmem:[%s0 + $0x220] sm:$0xff]
  %v87 = vld [vmem:[%s0 + $0x228] sm:$0xff]
  %v88 = vld [vmem:[%s0 + $0x230] sm:$0xff]
  %v89 = vld [vmem:[%s0 + $0x238] sm:$0xff]
  %v90 = vld [vmem:[%s1] sm:$0xf]
  %v91 = vld [vmem:[%s1 + $0x4] sm:$0xf]
  %v92 = vld [vmem:[%s1 + $0x8] sm:$0xf]
  %v93 = vld [vmem:[%s1 + $0xc] sm:$0xf]
  %v94 = vld [vmem:[%s1 + $0x10] sm:$0xf]
  %v95 = vld [vmem:[%s1 + $0x14] sm:$0xf]
  %v96 = vld [vmem:[%s1 + $0x18] sm:$0xf]
  %v97 = vld [vmem:[%s1 + $0x1c] sm:$0xf]
  %v98 = vld [vmem:[%s1 + $0x20] sm:$0xf]
  %v99 = vld [vmem:[%s1 + $0x24] sm:$0xf]
  %v100 = vld [vmem:[%s1 + $0x28] sm:$0xf]
  %v101 = vld [vmem:[%s1 + $0x2c] sm:$0xf]
  %v102 = vld [vmem:[%s1 + $0x30] sm:$0xf]
  %v103 = vld [vmem:[%s1 + $0x34] sm:$0xf]
  %v104 = vld [vmem:[%s1 + $0x38] sm:$0xf]
  %v105 = vld [vmem:[%s1 + $0x3c] sm:$0xf]
  %v106 = vld [vmem:[%s1 + $0x40] sm:$0xf]
  %v107 = vld [vmem:[%s1 + $0x44] sm:$0xf]
  %v108 = vpack.c.bf16 %v20, %v18
  %v109 = vpack.c.bf16 %v21, %v19
  %v110 = vpack.c.bf16 %v24, %v22
  %v111 = vpack.c.bf16 %v25, %v23
  %v112 = vpack.c.bf16 %v28, %v26
  %v113 = vpack.c.bf16 %v29, %v27
  %v114 = vpack.c.bf16 %v32, %v30
  %v115 = vpack.c.bf16 %v33, %v31
  %v116 = vpack.c.bf16 %v36, %v34
  %v117 = vpack.c.bf16 %v37, %v35
  %v118 = vpack.c.bf16 %v40, %v38
  %v119 = vpack.c.bf16 %v41, %v39
  %v120 = vpack.c.bf16 %v44, %v42
  %v121 = vpack.c.bf16 %v45, %v43
  %v122 = vpack.c.bf16 %v48, %v46
  %v123 = vpack.c.bf16 %v49, %v47
  %v124 = vpack.c.bf16 %v52, %v50
  %v125 = vpack.c.bf16 %v53, %v51
  %v126 = vpack.c.bf16 %v56, %v54
  %v127 = vpack.c.bf16 %v57, %v55
  %v128 = vpack.c.bf16 %v60, %v58
  %v129 = vpack.c.bf16 %v61, %v59
  %v130 = vpack.c.bf16 %v64, %v62
  %v131 = vpack.c.bf16 %v65, %v63
  %v132 = vpack.c.bf16 %v68, %v66
  %v133 = vpack.c.bf16 %v69, %v67
  %v134 = vpack.c.bf16 %v72, %v70
  %v135 = vpack.c.bf16 %v73, %v71
  %v136 = vpack.c.bf16 %v76, %v74
  %v137 = vpack.c.bf16 %v77, %v75
  %v138 = vpack.c.bf16 %v80, %v78
  %v139 = vpack.c.bf16 %v81, %v79
  %v140 = vpack.c.bf16 %v84, %v82
  %v141 = vpack.c.bf16 %v85, %v83
  %v142 = vpack.c.bf16 %v88, %v86
  %v143 = vpack.c.bf16 %v89, %v87
  %v144 = vld [vmem:[%s2] sm:$0x1]
  %v146 = vlaneseq
  %v147 = vshrl.u32 %v146, 7
  %v148 = vsub.s32 0, %v147
  %v149 = vrot.slane %v144, %v148
  %v169 = vunpack.c.l.b16 %v90
  %v170 = vunpack.c.l.b16 %v91
  %v171 = vunpack.c.l.b16 %v92
  %v172 = vunpack.c.l.b16 %v93
  %v173 = vunpack.c.l.b16 %v94
  %v174 = vunpack.c.l.b16 %v95
  %v175 = vunpack.c.l.b16 %v96
  %v176 = vunpack.c.l.b16 %v97
  %v177 = vunpack.c.l.b16 %v98
  %v178 = vunpack.c.l.b16 %v99
  %v179 = vunpack.c.l.b16 %v100
  %v180 = vunpack.c.l.b16 %v101
  %v181 = vunpack.c.l.b16 %v102
  %v182 = vunpack.c.l.b16 %v103
  %v183 = vunpack.c.l.b16 %v104
  %v184 = vunpack.c.l.b16 %v105
  %v185 = vunpack.c.l.b16 %v106
  %v186 = vunpack.c.l.b16 %v107
  %v187 = vpack.c.b16 %v170, %v169
  %v188 = vpack.c.b16 %v172, %v171
  %v189 = vpack.c.b16 %v174, %v173
  %v190 = vpack.c.b16 %v176, %v175
  %v191 = vpack.c.b16 %v178, %v177
  %v192 = vpack.c.b16 %v180, %v179
  %v193 = vpack.c.b16 %v182, %v181
  %v194 = vpack.c.b16 %v184, %v183
  %v195 = vpack.c.b16 %v186, %v185
  %vm205 = vcmask 130048
  %v207 = vsel %vm205, %v109, 0
  %v210 = vsel %vm205, %v111, 0
  %v213 = vsel %vm205, %v113, 0
  %v216 = vsel %vm205, %v115, 0
  %v219 = vsel %vm205, %v117, 0
  %v222 = vsel %vm205, %v119, 0
  %v225 = vsel %vm205, %v121, 0
  %v228 = vsel %vm205, %v123, 0
  %v231 = vsel %vm205, %v125, 0
  %v234 = vsel %vm205, %v127, 0
  %v237 = vsel %vm205, %v129, 0
  %v240 = vsel %vm205, %v131, 0
  %v243 = vsel %vm205, %v133, 0
  %v246 = vsel %vm205, %v135, 0
  %v249 = vsel %vm205, %v137, 0
  %v252 = vsel %vm205, %v139, 0
  %v255 = vsel %vm205, %v141, 0
  %v258 = vsel %vm205, %v143, 0
  %260 = vmatprep.subr.bf16.mxu0 0
  %261 = vmatpush1.bf16.msra.mxu0 %v187
  %262 = vmatprep.subr.bf16.mxu0 0
  %263 = vmatpush1.bf16.msra.mxu0 %v188
  %264 = vmatprep.subr.bf16.mxu0 0
  %265 = vmatpush1.bf16.msra.mxu0 %v189
  %266 = vmatprep.subr.bf16.mxu0 0
  %267 = vmatpush1.bf16.msra.mxu0 %v190
  %268 = vmatprep.subr.bf16.mxu0 0
  %269 = vmatpush1.bf16.msra.mxu0 %v191
  %270 = vmatprep.subr.bf16.mxu0 0
  %271 = vmatpush1.bf16.msra.mxu0 %v192
  %272 = vmatprep.subr.bf16.mxu0 0
  %273 = vmatpush1.bf16.msra.mxu0 %v193
  %274 = vmatprep.subr.bf16.mxu0 0
  %275 = vmatpush1.bf16.msra.mxu0 %v194
  %276 = vmatprep.subr.bf16.mxu0 0
  %277 = vmatpush1.bf16.msra.mxu0 %v195
  %278 = vmatprep.subr.bf16.mxu0 0
  %279 = vmatpush1.bf16.msra.mxu0 0
  %280 = vmatprep.subr.bf16.mxu0 0
  %281 = vmatpush1.bf16.msra.mxu0 0
  %282 = vmatprep.subr.bf16.mxu0 0
  %283 = vmatpush1.bf16.msra.mxu0 0
  %284 = vmatprep.subr.bf16.mxu0 0
  %285 = vmatpush1.bf16.msra.mxu0 0
  %286 = vmatprep.subr.bf16.mxu0 0
  %287 = vmatpush1.bf16.msra.mxu0 0
  %288 = vmatprep.subr.bf16.mxu0 0
  %289 = vmatpush1.bf16.msra.mxu0 0
  %290 = vmatprep.subr.bf16.mxu0 0
  %291 = vmatpush1.bf16.msra.mxu0 0
  %292 = vmatprep.mubr.bf16.mxu0 %v207
  %293 = vmatmul.mubr.bf16.gmra.mrb[0].mxu0 %v108
  %v294 = vpop.f32.mrb[0].mxu0
  %v295 = vadd.f32 %v149, %v294
  %v296 = vpop.f32.mrb[0].mxu0
  %v297 = vpop.f32.mrb[0].mxu0
  %v298 = vadd.f32 %v149, %v297
  %v299 = vpop.f32.mrb[0].mxu0
  %300 = vmatprep.mubr.bf16.mxu0 %v210
  %301 = vmatmul.mubr.bf16.gmra.mrb[0].mxu0 %v110
  %v302 = vpop.f32.mrb[0].mxu0
  %v303 = vadd.f32 %v149, %v302
  %v304 = vpop.f32.mrb[0].mxu0
  %v305 = vpop.f32.mrb[0].mxu0
  %v306 = vadd.f32 %v149, %v305
  %v307 = vpop.f32.mrb[0].mxu0
  %308 = vmatprep.mubr.bf16.mxu0 %v213
  %309 = vmatmul.mubr.bf16.gmra.mrb[0].mxu0 %v112
  %v310 = vpop.f32.mrb[0].mxu0
  %v311 = vadd.f32 %v149, %v310
  %v312 = vpop.f32.mrb[0].mxu0
  %v313 = vpop.f32.mrb[0].mxu0
  %v314 = vadd.f32 %v149, %v313
  %v315 = vpop.f32.mrb[0].mxu0
  %316 = vmatprep.mubr.bf16.mxu0 %v216
  %317 = vmatmul.mubr.bf16.gmra.mrb[0].mxu0 %v114
  %v318 = vpop.f32.mrb[0].mxu0
  %v319 = vadd.f32 %v149, %v318
  %v320 = vpop.f32.mrb[0].mxu0
  %v321 = vpop.f32.mrb[0].mxu0
  %v322 = vadd.f32 %v149, %v321
  %v323 = vpop.f32.mrb[0].mxu0
  %324 = vmatprep.mubr.bf16.mxu0 %v219
  %325 = vmatmul.mubr.bf16.gmra.mrb[0].mxu0 %v116
  %v326 = vpop.f32.mrb[0].mxu0
  %v327 = vadd.f32 %v149, %v326
  %v328 = vpop.f32.mrb[0].mxu0
  %v329 = vpop.f32.mrb[0].mxu0
  %v330 = vadd.f32 %v149, %v329
  %v331 = vpop.f32.mrb[0].mxu0
  %332 = vmatprep.mubr.bf16.mxu0 %v222
  %333 = vmatmul.mubr.bf16.gmra.mrb[0].mxu0 %v118
  %v334 = vpop.f32.mrb[0].mxu0
  %v335 = vadd.f32 %v149, %v334
  %v336 = vpop.f32.mrb[0].mxu0
  %v337 = vpop.f32.mrb[0].mxu0
  %v338 = vadd.f32 %v149, %v337
  %v339 = vpop.f32.mrb[0].mxu0
  %340 = vmatprep.mubr.bf16.mxu0 %v225
  %341 = vmatmul.mubr.bf16.gmra.mrb[0].mxu0 %v120
  %v342 = vpop.f32.mrb[0].mxu0
  %v343 = vadd.f32 %v149, %v342
  %v344 = vpop.f32.mrb[0].mxu0
  %v345 = vpop.f32.mrb[0].mxu0
  %v346 = vadd.f32 %v149, %v345
  %v347 = vpop.f32.mrb[0].mxu0
  %348 = vmatprep.mubr.bf16.mxu0 %v228
  %349 = vmatmul.mubr.bf16.gmra.mrb[0].mxu0 %v122
  %v350 = vpop.f32.mrb[0].mxu0
  %v351 = vadd.f32 %v149, %v350
  %v352 = vpop.f32.mrb[0].mxu0
  %v353 = vpop.f32.mrb[0].mxu0
  %v354 = vadd.f32 %v149, %v353
  %v355 = vpop.f32.mrb[0].mxu0
  %356 = vmatprep.mubr.bf16.mxu0 %v231
  %357 = vmatmul.mubr.bf16.gmra.mrb[0].mxu0 %v124
  %v358 = vpop.f32.mrb[0].mxu0
  %v359 = vadd.f32 %v149, %v358
  %v360 = vpop.f32.mrb[0].mxu0
  %v361 = vpop.f32.mrb[0].mxu0
  %v362 = vadd.f32 %v149, %v361
  %v363 = vpop.f32.mrb[0].mxu0
  %364 = vmatprep.mubr.bf16.mxu0 %v234
  %365 = vmatmul.mubr.bf16.gmra.mrb[0].mxu0 %v126
  %v366 = vpop.f32.mrb[0].mxu0
  %v367 = vadd.f32 %v149, %v366
  %v368 = vpop.f32.mrb[0].mxu0
  %v369 = vpop.f32.mrb[0].mxu0
  %v370 = vadd.f32 %v149, %v369
  %v371 = vpop.f32.mrb[0].mxu0
  %372 = vmatprep.mubr.bf16.mxu0 %v237
  %373 = vmatmul.mubr.bf16.gmra.mrb[0].mxu0 %v128
  %v374 = vpop.f32.mrb[0].mxu0
  %v375 = vadd.f32 %v149, %v374
  %v376 = vpop.f32.mrb[0].mxu0
  %v377 = vpop.f32.mrb[0].mxu0
  %v378 = vadd.f32 %v149, %v377
  %v379 = vpop.f32.mrb[0].mxu0
  %380 = vmatprep.mubr.bf16.mxu0 %v240
  %381 = vmatmul.mubr.bf16.gmra.mrb[0].mxu0 %v130
  %v382 = vpop.f32.mrb[0].mxu0
  %v383 = vadd.f32 %v149, %v382
  %v384 = vpop.f32.mrb[0].mxu0
  %v385 = vpop.f32.mrb[0].mxu0
  %v386 = vadd.f32 %v149, %v385
  %v387 = vpop.f32.mrb[0].mxu0
  %388 = vmatprep.mubr.bf16.mxu0 %v243
  %389 = vmatmul.mubr.bf16.gmra.mrb[0].mxu0 %v132
  %v390 = vpop.f32.mrb[0].mxu0
  %v391 = vadd.f32 %v149, %v390
  %v392 = vpop.f32.mrb[0].mxu0
  %v393 = vpop.f32.mrb[0].mxu0
  %v394 = vadd.f32 %v149, %v393
  %v395 = vpop.f32.mrb[0].mxu0
  %396 = vmatprep.mubr.bf16.mxu0 %v246
  %397 = vmatmul.mubr.bf16.gmra.mrb[0].mxu0 %v134
  %v398 = vpop.f32.mrb[0].mxu0
  %v399 = vadd.f32 %v149, %v398
  %v400 = vpop.f32.mrb[0].mxu0
  %v401 = vpop.f32.mrb[0].mxu0
  %v402 = vadd.f32 %v149, %v401
  %v403 = vpop.f32.mrb[0].mxu0
  %404 = vmatprep.mubr.bf16.mxu0 %v249
  %405 = vmatmul.mubr.bf16.gmra.mrb[0].mxu0 %v136
  %v406 = vpop.f32.mrb[0].mxu0
  %v407 = vadd.f32 %v149, %v406
  %v408 = vpop.f32.mrb[0].mxu0
  %v409 = vpop.f32.mrb[0].mxu0
  %v410 = vadd.f32 %v149, %v409
  %v411 = vpop.f32.mrb[0].mxu0
  %412 = vmatprep.mubr.bf16.mxu0 %v252
  %413 = vmatmul.mubr.bf16.gmra.mrb[0].mxu0 %v138
  %v414 = vpop.f32.mrb[0].mxu0
  %v415 = vadd.f32 %v149, %v414
  %v416 = vpop.f32.mrb[0].mxu0
  %v417 = vpop.f32.mrb[0].mxu0
  %v418 = vadd.f32 %v149, %v417
  %v419 = vpop.f32.mrb[0].mxu0
  %420 = vmatprep.mubr.bf16.mxu0 %v255
  %421 = vmatmul.mubr.bf16.gmra.mrb[0].mxu0 %v140
  %v422 = vpop.f32.mrb[0].mxu0
  %v423 = vadd.f32 %v149, %v422
  %v424 = vpop.f32.mrb[0].mxu0
  %v425 = vpop.f32.mrb[0].mxu0
  %v426 = vadd.f32 %v149, %v425
  %v427 = vpop.f32.mrb[0].mxu0
  %428 = vmatprep.mubr.bf16.mxu0 %v258
  %429 = vmatmul.mubr.bf16.gmra.mrb[0].mxu0 %v142
  %v430 = vpop.f32.mrb[0].mxu0
  %v431 = vadd.f32 %v149, %v430
  %v432 = vpop.f32.mrb[0].mxu0
  %v433 = vpop.f32.mrb[0].mxu0
  %v434 = vadd.f32 %v149, %v433
  %v435 = vpop.f32.mrb[0].mxu0
  %436 = vdwg.mxu0
  %v437 = vsel %vm205, %v295, 0.0
  %v438 = vsel %vm205, %v298, 0.0
  %v439 = vadd.f32 %v437, %v438
  %v440 = vsel %vm205, %v303, 0.0
  %v441 = vadd.f32 %v439, %v440
  %v442 = vsel %vm205, %v306, 0.0
  %v443 = vadd.f32 %v441, %v442
  %v444 = vsel %vm205, %v311, 0.0
  %v445 = vadd.f32 %v443, %v444
  %v446 = vsel %vm205, %v314, 0.0
  %v447 = vadd.f32 %v445, %v446
  %v448 = vsel %vm205, %v319, 0.0
  %v449 = vadd.f32 %v447, %v448
  %v450 = vsel %vm205, %v322, 0.0
  %v451 = vadd.f32 %v449, %v450
  %v452 = vsel %vm205, %v327, 0.0
  %v453 = vadd.f32 %v451, %v452
  %v454 = vsel %vm205, %v330, 0.0
  %v455 = vadd.f32 %v453, %v454
  %v456 = vsel %vm205, %v335, 0.0
  %v457 = vadd.f32 %v455, %v456
  %v458 = vsel %vm205, %v338, 0.0
  %v459 = vadd.f32 %v457, %v458
  %v460 = vsel %vm205, %v343, 0.0
  %v461 = vadd.f32 %v459, %v460
  %v462 = vsel %vm205, %v346, 0.0
  %v463 = vadd.f32 %v461, %v462
  %v464 = vsel %vm205, %v351, 0.0
  %v465 = vadd.f32 %v463, %v464
  %v466 = vsel %vm205, %v354, 0.0
  %v467 = vadd.f32 %v465, %v466
  %v468 = vsel %vm205, %v359, 0.0
  %v469 = vadd.f32 %v467, %v468
  %v470 = vsel %vm205, %v362, 0.0
  %v471 = vadd.f32 %v469, %v470
  %v472 = vsel %vm205, %v367, 0.0
  %v473 = vadd.f32 %v471, %v472
  %v474 = vsel %vm205, %v370, 0.0
  %v475 = vadd.f32 %v473, %v474
  %v476 = vsel %vm205, %v375, 0.0
  %v477 = vadd.f32 %v475, %v476
  %v478 = vsel %vm205, %v378, 0.0
  %v479 = vadd.f32 %v477, %v478
  %v480 = vsel %vm205, %v383, 0.0
  %v481 = vadd.f32 %v479, %v480
  %v482 = vsel %vm205, %v386, 0.0
  %v483 = vadd.f32 %v481, %v482
  %v484 = vsel %vm205, %v391, 0.0
  %v485 = vadd.f32 %v483, %v484
  %v486 = vsel %vm205, %v394, 0.0
  %v487 = vadd.f32 %v485, %v486
  %v488 = vsel %vm205, %v399, 0.0
  %v489 = vadd.f32 %v487, %v488
  %v490 = vsel %vm205, %v402, 0.0
  %v491 = vadd.f32 %v489, %v490
  %v492 = vsel %vm205, %v407, 0.0
  %v493 = vadd.f32 %v491, %v492
  %v494 = vsel %vm205, %v410, 0.0
  %v495 = vadd.f32 %v493, %v494
  %v496 = vsel %vm205, %v415, 0.0
  %v497 = vadd.f32 %v495, %v496
  %v498 = vsel %vm205, %v418, 0.0
  %v499 = vadd.f32 %v497, %v498
  %v500 = vsel %vm205, %v423, 0.0
  %v501 = vadd.f32 %v499, %v500
  %v502 = vsel %vm205, %v426, 0.0
  %v503 = vadd.f32 %v501, %v502
  %v504 = vsel %vm205, %v431, 0.0
  %v505 = vadd.f32 %v503, %v504
  %v506 = vsel %vm205, %v434, 0.0
  %v507 = vadd.f32 %v505, %v506
  %v508 = vrot.slane %v507, 4
  %v509 = vadd.f32 %v507, %v508
  %v510 = vrot.slane %v509, 2
  %v511 = vadd.f32 %v509, %v510
  %v512 = vrot.slane %v511, 1
  %v513 = vadd.f32 %v511, %v512
  %v514 = vrcp.pop 288.0
  %v515 = vmul.f32 %v513, %v514
  %vm516 = vcmask 261248
  %v517 = vsel %vm516, %v295, 0.0
  %v518 = vsel %vm516, %v298, 0.0
  %v519 = vadd.f32 %v517, %v518
  %v520 = vsel %vm516, %v303, 0.0
  %v521 = vadd.f32 %v519, %v520
  %v522 = vsel %vm516, %v306, 0.0
  %v523 = vadd.f32 %v521, %v522
  %v524 = vsel %vm516, %v311, 0.0
  %v525 = vadd.f32 %v523, %v524
  %v526 = vsel %vm516, %v314, 0.0
  %v527 = vadd.f32 %v525, %v526
  %v528 = vsel %vm516, %v319, 0.0
  %v529 = vadd.f32 %v527, %v528
  %v530 = vsel %vm516, %v322, 0.0
  %v531 = vadd.f32 %v529, %v530
  %v532 = vsel %vm516, %v327, 0.0
  %v533 = vadd.f32 %v531, %v532
  %v534 = vsel %vm516, %v330, 0.0
  %v535 = vadd.f32 %v533, %v534
  %v536 = vsel %vm516, %v335, 0.0
  %v537 = vadd.f32 %v535, %v536
  %v538 = vsel %vm516, %v338, 0.0
  %v539 = vadd.f32 %v537, %v538
  %v540 = vsel %vm516, %v343, 0.0
  %v541 = vadd.f32 %v539, %v540
  %v542 = vsel %vm516, %v346, 0.0
  %v543 = vadd.f32 %v541, %v542
  %v544 = vsel %vm516, %v351, 0.0
  %v545 = vadd.f32 %v543, %v544
  %v546 = vsel %vm516, %v354, 0.0
  %v547 = vadd.f32 %v545, %v546
  %v548 = vsel %vm516, %v359, 0.0
  %v549 = vadd.f32 %v547, %v548
  %v550 = vsel %vm516, %v362, 0.0
  %v551 = vadd.f32 %v549, %v550
  %v552 = vsel %vm516, %v367, 0.0
  %v553 = vadd.f32 %v551, %v552
  %v554 = vsel %vm516, %v370, 0.0
  %v555 = vadd.f32 %v553, %v554
  %v556 = vsel %vm516, %v375, 0.0
  %v557 = vadd.f32 %v555, %v556
  %v558 = vsel %vm516, %v378, 0.0
  %v559 = vadd.f32 %v557, %v558
  %v560 = vsel %vm516, %v383, 0.0
  %v561 = vadd.f32 %v559, %v560
  %v562 = vsel %vm516, %v386, 0.0
  %v563 = vadd.f32 %v561, %v562
  %v564 = vsel %vm516, %v391, 0.0
  %v565 = vadd.f32 %v563, %v564
  %v566 = vsel %vm516, %v394, 0.0
  %v567 = vadd.f32 %v565, %v566
  %v568 = vsel %vm516, %v399, 0.0
  %v569 = vadd.f32 %v567, %v568
  %v570 = vsel %vm516, %v402, 0.0
  %v571 = vadd.f32 %v569, %v570
  %v572 = vsel %vm516, %v407, 0.0
  %v573 = vadd.f32 %v571, %v572
  %v574 = vsel %vm516, %v410, 0.0
  %v575 = vadd.f32 %v573, %v574
  %v576 = vsel %vm516, %v415, 0.0
  %v577 = vadd.f32 %v575, %v576
  %v578 = vsel %vm516, %v418, 0.0
  %v579 = vadd.f32 %v577, %v578
  %v580 = vsel %vm516, %v423, 0.0
  %v581 = vadd.f32 %v579, %v580
  %v582 = vsel %vm516, %v426, 0.0
  %v583 = vadd.f32 %v581, %v582
  %v584 = vsel %vm516, %v431, 0.0
  %v585 = vadd.f32 %v583, %v584
  %v586 = vsel %vm516, %v434, 0.0
  %v587 = vadd.f32 %v585, %v586
  %v588 = vrot.slane %v587, 4
  %v589 = vadd.f32 %v587, %v588
  %v590 = vrot.slane %v589, 2
  %v591 = vadd.f32 %v589, %v590
  %v592 = vrot.slane %v591, 1
  %v593 = vadd.f32 %v591, %v592
  %v594 = vmul.f32 %v593, %v514
  %v595 = vsub.f32 %v295, %v515
  %v596 = vsub.f32 %v298, %v515
  %v597 = vsub.f32 %v303, %v515
  %v598 = vsub.f32 %v306, %v515
  %v599 = vsub.f32 %v311, %v515
  %v600 = vsub.f32 %v314, %v515
  %v601 = vsub.f32 %v319, %v515
  %v602 = vsub.f32 %v322, %v515
  %v603 = vsub.f32 %v327, %v515
  %v604 = vsub.f32 %v330, %v515
  %v605 = vsub.f32 %v335, %v515
  %v606 = vsub.f32 %v338, %v515
  %v607 = vsub.f32 %v343, %v515
  %v608 = vsub.f32 %v346, %v515
  %v609 = vsub.f32 %v351, %v515
  %v610 = vsub.f32 %v354, %v515
  %v611 = vsub.f32 %v359, %v515
  %v612 = vsub.f32 %v362, %v515
  %v613 = vsub.f32 %v367, %v515
  %v614 = vsub.f32 %v370, %v515
  %v615 = vsub.f32 %v375, %v515
  %v616 = vsub.f32 %v378, %v515
  %v617 = vsub.f32 %v383, %v515
  %v618 = vsub.f32 %v386, %v515
  %v619 = vsub.f32 %v391, %v515
  %v620 = vsub.f32 %v394, %v515
  %v621 = vsub.f32 %v399, %v515
  %v622 = vsub.f32 %v402, %v515
  %v623 = vsub.f32 %v407, %v515
  %v624 = vsub.f32 %v410, %v515
  %v625 = vsub.f32 %v415, %v515
  %v626 = vsub.f32 %v418, %v515
  %v627 = vsub.f32 %v423, %v515
  %v628 = vsub.f32 %v426, %v515
  %v629 = vsub.f32 %v431, %v515
  %v630 = vsub.f32 %v434, %v515
  %v631 = vsub.f32 %v295, %v594
  %v632 = vsub.f32 %v298, %v594
  %v633 = vsub.f32 %v303, %v594
  %v634 = vsub.f32 %v306, %v594
  %v635 = vsub.f32 %v311, %v594
  %v636 = vsub.f32 %v314, %v594
  %v637 = vsub.f32 %v319, %v594
  %v638 = vsub.f32 %v322, %v594
  %v639 = vsub.f32 %v327, %v594
  %v640 = vsub.f32 %v330, %v594
  %v641 = vsub.f32 %v335, %v594
  %v642 = vsub.f32 %v338, %v594
  %v643 = vsub.f32 %v343, %v594
  %v644 = vsub.f32 %v346, %v594
  %v645 = vsub.f32 %v351, %v594
  %v646 = vsub.f32 %v354, %v594
  %v647 = vsub.f32 %v359, %v594
  %v648 = vsub.f32 %v362, %v594
  %v649 = vsub.f32 %v367, %v594
  %v650 = vsub.f32 %v370, %v594
  %v651 = vsub.f32 %v375, %v594
  %v652 = vsub.f32 %v378, %v594
  %v653 = vsub.f32 %v383, %v594
  %v654 = vsub.f32 %v386, %v594
  %v655 = vsub.f32 %v391, %v594
  %v656 = vsub.f32 %v394, %v594
  %v657 = vsub.f32 %v399, %v594
  %v658 = vsub.f32 %v402, %v594
  %v659 = vsub.f32 %v407, %v594
  %v660 = vsub.f32 %v410, %v594
  %v661 = vsub.f32 %v415, %v594
  %v662 = vsub.f32 %v418, %v594
  %v663 = vsub.f32 %v423, %v594
  %v664 = vsub.f32 %v426, %v594
  %v665 = vsub.f32 %v431, %v594
  %v666 = vsub.f32 %v434, %v594
  %v667 = vmul.f32 %v595, %v595
  %v668 = vmul.f32 %v596, %v596
  %v669 = vmul.f32 %v597, %v597
  %v670 = vmul.f32 %v598, %v598
  %v671 = vmul.f32 %v599, %v599
  %v672 = vmul.f32 %v600, %v600
  %v673 = vmul.f32 %v601, %v601
  %v674 = vmul.f32 %v602, %v602
  %v675 = vmul.f32 %v603, %v603
  %v676 = vmul.f32 %v604, %v604
  %v677 = vmul.f32 %v605, %v605
  %v678 = vmul.f32 %v606, %v606
  %v679 = vmul.f32 %v607, %v607
  %v680 = vmul.f32 %v608, %v608
  %v681 = vmul.f32 %v609, %v609
  %v682 = vmul.f32 %v610, %v610
  %v683 = vmul.f32 %v611, %v611
  %v684 = vmul.f32 %v612, %v612
  %v685 = vmul.f32 %v613, %v613
  %v686 = vmul.f32 %v614, %v614
  %v687 = vmul.f32 %v615, %v615
  %v688 = vmul.f32 %v616, %v616
  %v689 = vmul.f32 %v617, %v617
  %v690 = vmul.f32 %v618, %v618
  %v691 = vmul.f32 %v619, %v619
  %v692 = vmul.f32 %v620, %v620
  %v693 = vmul.f32 %v621, %v621
  %v694 = vmul.f32 %v622, %v622
  %v695 = vmul.f32 %v623, %v623
  %v696 = vmul.f32 %v624, %v624
  %v697 = vmul.f32 %v625, %v625
  %v698 = vmul.f32 %v626, %v626
  %v699 = vmul.f32 %v627, %v627
  %v700 = vmul.f32 %v628, %v628
  %v701 = vmul.f32 %v629, %v629
  %v702 = vmul.f32 %v630, %v630
  %v703 = vsel %vm205, %v667, 0.0
  %v704 = vsel %vm205, %v668, 0.0
  %v705 = vadd.f32 %v703, %v704
  %v706 = vsel %vm205, %v669, 0.0
  %v707 = vadd.f32 %v705, %v706
  %v708 = vsel %vm205, %v670, 0.0
  %v709 = vadd.f32 %v707, %v708
  %v710 = vsel %vm205, %v671, 0.0
  %v711 = vadd.f32 %v709, %v710
  %v712 = vsel %vm205, %v672, 0.0
  %v713 = vadd.f32 %v711, %v712
  %v714 = vsel %vm205, %v673, 0.0
  %v715 = vadd.f32 %v713, %v714
  %v716 = vsel %vm205, %v674, 0.0
  %v717 = vadd.f32 %v715, %v716
  %v718 = vsel %vm205, %v675, 0.0
  %v719 = vadd.f32 %v717, %v718
  %v720 = vsel %vm205, %v676, 0.0
  %v721 = vadd.f32 %v719, %v720
  %v722 = vsel %vm205, %v677, 0.0
  %v723 = vadd.f32 %v721, %v722
  %v724 = vsel %vm205, %v678, 0.0
  %v725 = vadd.f32 %v723, %v724
  %v726 = vsel %vm205, %v679, 0.0
  %v727 = vadd.f32 %v725, %v726
  %v728 = vsel %vm205, %v680, 0.0
  %v729 = vadd.f32 %v727, %v728
  %v730 = vsel %vm205, %v681, 0.0
  %v731 = vadd.f32 %v729, %v730
  %v732 = vsel %vm205, %v682, 0.0
  %v733 = vadd.f32 %v731, %v732
  %v734 = vsel %vm205, %v683, 0.0
  %v735 = vadd.f32 %v733, %v734
  %v736 = vsel %vm205, %v684, 0.0
  %v737 = vadd.f32 %v735, %v736
  %v738 = vsel %vm205, %v685, 0.0
  %v739 = vadd.f32 %v737, %v738
  %v740 = vsel %vm205, %v686, 0.0
  %v741 = vadd.f32 %v739, %v740
  %v742 = vsel %vm205, %v687, 0.0
  %v743 = vadd.f32 %v741, %v742
  %v744 = vsel %vm205, %v688, 0.0
  %v745 = vadd.f32 %v743, %v744
  %v746 = vsel %vm205, %v689, 0.0
  %v747 = vadd.f32 %v745, %v746
  %v748 = vsel %vm205, %v690, 0.0
  %v749 = vadd.f32 %v747, %v748
  %v750 = vsel %vm205, %v691, 0.0
  %v751 = vadd.f32 %v749, %v750
  %v752 = vsel %vm205, %v692, 0.0
  %v753 = vadd.f32 %v751, %v752
  %v754 = vsel %vm205, %v693, 0.0
  %v755 = vadd.f32 %v753, %v754
  %v756 = vsel %vm205, %v694, 0.0
  %v757 = vadd.f32 %v755, %v756
  %v758 = vsel %vm205, %v695, 0.0
  %v759 = vadd.f32 %v757, %v758
  %v760 = vsel %vm205, %v696, 0.0
  %v761 = vadd.f32 %v759, %v760
  %v762 = vsel %vm205, %v697, 0.0
  %v763 = vadd.f32 %v761, %v762
  %v764 = vsel %vm205, %v698, 0.0
  %v765 = vadd.f32 %v763, %v764
  %v766 = vsel %vm205, %v699, 0.0
  %v767 = vadd.f32 %v765, %v766
  %v768 = vsel %vm205, %v700, 0.0
  %v769 = vadd.f32 %v767, %v768
  %v770 = vsel %vm205, %v701, 0.0
  %v771 = vadd.f32 %v769, %v770
  %v772 = vsel %vm205, %v702, 0.0
  %v773 = vadd.f32 %v771, %v772
  %v774 = vrot.slane %v773, 4
  %v775 = vadd.f32 %v773, %v774
  %v776 = vrot.slane %v775, 2
  %v777 = vadd.f32 %v775, %v776
  %v778 = vrot.slane %v777, 1
  %v779 = vadd.f32 %v777, %v778
  %v780 = vmul.f32 %v779, %v514
  %v781 = vadd.f32 %v780, 1e-05
  %v782 = vmul.f32 %v631, %v631
  %v783 = vmul.f32 %v632, %v632
  %v784 = vmul.f32 %v633, %v633
  %v785 = vmul.f32 %v634, %v634
  %v786 = vmul.f32 %v635, %v635
  %v787 = vmul.f32 %v636, %v636
  %v788 = vmul.f32 %v637, %v637
  %v789 = vmul.f32 %v638, %v638
  %v790 = vmul.f32 %v639, %v639
  %v791 = vmul.f32 %v640, %v640
  %v792 = vmul.f32 %v641, %v641
  %v793 = vmul.f32 %v642, %v642
  %v794 = vmul.f32 %v643, %v643
  %v795 = vmul.f32 %v644, %v644
  %v796 = vmul.f32 %v645, %v645
  %v797 = vmul.f32 %v646, %v646
  %v798 = vmul.f32 %v647, %v647
  %v799 = vmul.f32 %v648, %v648
  %v800 = vmul.f32 %v649, %v649
  %v801 = vmul.f32 %v650, %v650
  %v802 = vmul.f32 %v651, %v651
  %v803 = vmul.f32 %v652, %v652
  %v804 = vmul.f32 %v653, %v653
  %v805 = vmul.f32 %v654, %v654
  %v806 = vmul.f32 %v655, %v655
  %v807 = vmul.f32 %v656, %v656
  %v808 = vmul.f32 %v657, %v657
  %v809 = vmul.f32 %v658, %v658
  %v810 = vmul.f32 %v659, %v659
  %v811 = vmul.f32 %v660, %v660
  %v812 = vmul.f32 %v661, %v661
  %v813 = vmul.f32 %v662, %v662
  %v814 = vmul.f32 %v663, %v663
  %v815 = vmul.f32 %v664, %v664
  %v816 = vmul.f32 %v665, %v665
  %v817 = vmul.f32 %v666, %v666
  %v818 = vsel %vm516, %v782, 0.0
  %v819 = vsel %vm516, %v783, 0.0
  %v820 = vadd.f32 %v818, %v819
  %v821 = vsel %vm516, %v784, 0.0
  %v822 = vadd.f32 %v820, %v821
  %v823 = vsel %vm516, %v785, 0.0
  %v824 = vadd.f32 %v822, %v823
  %v825 = vsel %vm516, %v786, 0.0
  %v826 = vadd.f32 %v824, %v825
  %v827 = vsel %vm516, %v787, 0.0
  %v828 = vadd.f32 %v826, %v827
  %v829 = vsel %vm516, %v788, 0.0
  %v830 = vadd.f32 %v828, %v829
  %v831 = vsel %vm516, %v789, 0.0
  %v832 = vadd.f32 %v830, %v831
  %v833 = vsel %vm516, %v790, 0.0
  %v834 = vadd.f32 %v832, %v833
  %v835 = vsel %vm516, %v791, 0.0
  %v836 = vadd.f32 %v834, %v835
  %v837 = vsel %vm516, %v792, 0.0
  %v838 = vadd.f32 %v836, %v837
  %v839 = vsel %vm516, %v793, 0.0
  %v840 = vadd.f32 %v838, %v839
  %v841 = vsel %vm516, %v794, 0.0
  %v842 = vadd.f32 %v840, %v841
  %v843 = vsel %vm516, %v795, 0.0
  %v844 = vadd.f32 %v842, %v843
  %v845 = vsel %vm516, %v796, 0.0
  %v846 = vadd.f32 %v844, %v845
  %v847 = vsel %vm516, %v797, 0.0
  %v848 = vadd.f32 %v846, %v847
  %v849 = vsel %vm516, %v798, 0.0
  %v850 = vadd.f32 %v848, %v849
  %v851 = vsel %vm516, %v799, 0.0
  %v852 = vadd.f32 %v850, %v851
  %v853 = vsel %vm516, %v800, 0.0
  %v854 = vadd.f32 %v852, %v853
  %v855 = vsel %vm516, %v801, 0.0
  %v856 = vadd.f32 %v854, %v855
  %v857 = vsel %vm516, %v802, 0.0
  %v858 = vadd.f32 %v856, %v857
  %v859 = vsel %vm516, %v803, 0.0
  %v860 = vadd.f32 %v858, %v859
  %v861 = vsel %vm516, %v804, 0.0
  %v862 = vadd.f32 %v860, %v861
  %v863 = vsel %vm516, %v805, 0.0
  %v864 = vadd.f32 %v862, %v863
  %v865 = vsel %vm516, %v806, 0.0
  %v866 = vadd.f32 %v864, %v865
  %v867 = vsel %vm516, %v807, 0.0
  %v868 = vadd.f32 %v866, %v867
  %v869 = vsel %vm516, %v808, 0.0
  %v870 = vadd.f32 %v868, %v869
  %v871 = vsel %vm516, %v809, 0.0
  %v872 = vadd.f32 %v870, %v871
  %v873 = vsel %vm516, %v810, 0.0
  %v874 = vadd.f32 %v872, %v873
  %v875 = vsel %vm516, %v811, 0.0
  %v876 = vadd.f32 %v874, %v875
  %v877 = vsel %vm516, %v812, 0.0
  %v878 = vadd.f32 %v876, %v877
  %v879 = vsel %vm516, %v813, 0.0
  %v880 = vadd.f32 %v878, %v879
  %v881 = vsel %vm516, %v814, 0.0
  %v882 = vadd.f32 %v880, %v881
  %v883 = vsel %vm516, %v815, 0.0
  %v884 = vadd.f32 %v882, %v883
  %v885 = vsel %vm516, %v816, 0.0
  %v886 = vadd.f32 %v884, %v885
  %v887 = vsel %vm516, %v817, 0.0
  %v888 = vadd.f32 %v886, %v887
  %v889 = vrot.slane %v888, 4
  %v890 = vadd.f32 %v888, %v889
  %v891 = vrot.slane %v890, 2
  %v892 = vadd.f32 %v890, %v891
  %v893 = vrot.slane %v892, 1
  %v894 = vadd.f32 %v892, %v893
  %v895 = vmul.f32 %v894, %v514
  %v896 = vadd.f32 %v895, 1e-05
  %933 = vrot.lane.b32.xlu0 %v631, 112
  %v934 = vpop.permute.xlu0 %933
  %935 = vrot.lane.b32.xlu0 %v632, 112
  %v936 = vpop.permute.xlu0 %935
  %937 = vrot.lane.b32.xlu0 %v633, 112
  %v938 = vpop.permute.xlu0 %937
  %939 = vrot.lane.b32.xlu0 %v634, 112
  %v940 = vpop.permute.xlu0 %939
  %941 = vrot.lane.b32.xlu0 %v635, 112
  %v942 = vpop.permute.xlu0 %941
  %943 = vrot.lane.b32.xlu0 %v636, 112
  %v944 = vpop.permute.xlu0 %943
  %945 = vrot.lane.b32.xlu0 %v637, 112
  %v946 = vpop.permute.xlu0 %945
  %947 = vrot.lane.b32.xlu0 %v638, 112
  %v948 = vpop.permute.xlu0 %947
  %949 = vrot.lane.b32.xlu0 %v639, 112
  %v950 = vpop.permute.xlu0 %949
  %951 = vrot.lane.b32.xlu0 %v640, 112
  %v952 = vpop.permute.xlu0 %951
  %953 = vrot.lane.b32.xlu0 %v641, 112
  %v954 = vpop.permute.xlu0 %953
  %955 = vrot.lane.b32.xlu0 %v642, 112
  %v956 = vpop.permute.xlu0 %955
  %957 = vrot.lane.b32.xlu0 %v643, 112
  %v958 = vpop.permute.xlu0 %957
  %959 = vrot.lane.b32.xlu0 %v644, 112
  %v960 = vpop.permute.xlu0 %959
  %961 = vrot.lane.b32.xlu0 %v645, 112
  %v962 = vpop.permute.xlu0 %961
  %963 = vrot.lane.b32.xlu0 %v646, 112
  %v964 = vpop.permute.xlu0 %963
  %965 = vrot.lane.b32.xlu0 %v647, 112
  %v966 = vpop.permute.xlu0 %965
  %967 = vrot.lane.b32.xlu0 %v648, 112
  %v968 = vpop.permute.xlu0 %967
  %969 = vrot.lane.b32.xlu0 %v649, 112
  %v970 = vpop.permute.xlu0 %969
  %971 = vrot.lane.b32.xlu0 %v650, 112
  %v972 = vpop.permute.xlu0 %971
  %973 = vrot.lane.b32.xlu0 %v651, 112
  %v974 = vpop.permute.xlu0 %973
  %975 = vrot.lane.b32.xlu0 %v652, 112
  %v976 = vpop.permute.xlu0 %975
  %977 = vrot.lane.b32.xlu0 %v653, 112
  %v978 = vpop.permute.xlu0 %977
  %979 = vrot.lane.b32.xlu0 %v654, 112
  %v980 = vpop.permute.xlu0 %979
  %981 = vrot.lane.b32.xlu0 %v655, 112
  %v982 = vpop.permute.xlu0 %981
  %983 = vrot.lane.b32.xlu0 %v656, 112
  %v984 = vpop.permute.xlu0 %983
  %985 = vrot.lane.b32.xlu0 %v657, 112
  %v986 = vpop.permute.xlu0 %985
  %987 = vrot.lane.b32.xlu0 %v658, 112
  %v988 = vpop.permute.xlu0 %987
  %989 = vrot.lane.b32.xlu0 %v659, 112
  %v990 = vpop.permute.xlu0 %989
  %991 = vrot.lane.b32.xlu0 %v660, 112
  %v992 = vpop.permute.xlu0 %991
  %993 = vrot.lane.b32.xlu0 %v661, 112
  %v994 = vpop.permute.xlu0 %993
  %995 = vrot.lane.b32.xlu0 %v662, 112
  %v996 = vpop.permute.xlu0 %995
  %997 = vrot.lane.b32.xlu0 %v663, 112
  %v998 = vpop.permute.xlu0 %997
  %999 = vrot.lane.b32.xlu0 %v664, 112
  %v1000 = vpop.permute.xlu0 %999
  %1001 = vrot.lane.b32.xlu0 %v665, 112
  %v1002 = vpop.permute.xlu0 %1001
  %1003 = vrot.lane.b32.xlu0 %v666, 112
  %v1004 = vpop.permute.xlu0 %1003
  %v1041 = vmul.f32 %v595, %v934
  %v1042 = vmul.f32 %v596, %v936
  %v1043 = vmul.f32 %v597, %v938
  %v1044 = vmul.f32 %v598, %v940
  %v1045 = vmul.f32 %v599, %v942
  %v1046 = vmul.f32 %v600, %v944
  %v1047 = vmul.f32 %v601, %v946
  %v1048 = vmul.f32 %v602, %v948
  %v1049 = vmul.f32 %v603, %v950
  %v1050 = vmul.f32 %v604, %v952
  %v1051 = vmul.f32 %v605, %v954
  %v1052 = vmul.f32 %v606, %v956
  %v1053 = vmul.f32 %v607, %v958
  %v1054 = vmul.f32 %v608, %v960
  %v1055 = vmul.f32 %v609, %v962
  %v1056 = vmul.f32 %v610, %v964
  %v1057 = vmul.f32 %v611, %v966
  %v1058 = vmul.f32 %v612, %v968
  %v1059 = vmul.f32 %v613, %v970
  %v1060 = vmul.f32 %v614, %v972
  %v1061 = vmul.f32 %v615, %v974
  %v1062 = vmul.f32 %v616, %v976
  %v1063 = vmul.f32 %v617, %v978
  %v1064 = vmul.f32 %v618, %v980
  %v1065 = vmul.f32 %v619, %v982
  %v1066 = vmul.f32 %v620, %v984
  %v1067 = vmul.f32 %v621, %v986
  %v1068 = vmul.f32 %v622, %v988
  %v1069 = vmul.f32 %v623, %v990
  %v1070 = vmul.f32 %v624, %v992
  %v1071 = vmul.f32 %v625, %v994
  %v1072 = vmul.f32 %v626, %v996
  %v1073 = vmul.f32 %v627, %v998
  %v1074 = vmul.f32 %v628, %v1000
  %v1075 = vmul.f32 %v629, %v1002
  %v1076 = vmul.f32 %v630, %v1004
  %v1077 = vsel %vm205, %v1041, 0.0
  %v1078 = vsel %vm205, %v1042, 0.0
  %v1079 = vadd.f32 %v1077, %v1078
  %v1080 = vsel %vm205, %v1043, 0.0
  %v1081 = vadd.f32 %v1079, %v1080
  %v1082 = vsel %vm205, %v1044, 0.0
  %v1083 = vadd.f32 %v1081, %v1082
  %v1084 = vsel %vm205, %v1045, 0.0
  %v1085 = vadd.f32 %v1083, %v1084
  %v1086 = vsel %vm205, %v1046, 0.0
  %v1087 = vadd.f32 %v1085, %v1086
  %v1088 = vsel %vm205, %v1047, 0.0
  %v1089 = vadd.f32 %v1087, %v1088
  %v1090 = vsel %vm205, %v1048, 0.0
  %v1091 = vadd.f32 %v1089, %v1090
  %v1092 = vsel %vm205, %v1049, 0.0
  %v1093 = vadd.f32 %v1091, %v1092
  %v1094 = vsel %vm205, %v1050, 0.0
  %v1095 = vadd.f32 %v1093, %v1094
  %v1096 = vsel %vm205, %v1051, 0.0
  %v1097 = vadd.f32 %v1095, %v1096
  %v1098 = vsel %vm205, %v1052, 0.0
  %v1099 = vadd.f32 %v1097, %v1098
  %v1100 = vsel %vm205, %v1053, 0.0
  %v1101 = vadd.f32 %v1099, %v1100
  %v1102 = vsel %vm205, %v1054, 0.0
  %v1103 = vadd.f32 %v1101, %v1102
  %v1104 = vsel %vm205, %v1055, 0.0
  %v1105 = vadd.f32 %v1103, %v1104
  %v1106 = vsel %vm205, %v1056, 0.0
  %v1107 = vadd.f32 %v1105, %v1106
  %v1108 = vsel %vm205, %v1057, 0.0
  %v1109 = vadd.f32 %v1107, %v1108
  %v1110 = vsel %vm205, %v1058, 0.0
  %v1111 = vadd.f32 %v1109, %v1110
  %v1112 = vsel %vm205, %v1059, 0.0
  %v1113 = vadd.f32 %v1111, %v1112
  %v1114 = vsel %vm205, %v1060, 0.0
  %v1115 = vadd.f32 %v1113, %v1114
  %v1116 = vsel %vm205, %v1061, 0.0
  %v1117 = vadd.f32 %v1115, %v1116
  %v1118 = vsel %vm205, %v1062, 0.0
  %v1119 = vadd.f32 %v1117, %v1118
  %v1120 = vsel %vm205, %v1063, 0.0
  %v1121 = vadd.f32 %v1119, %v1120
  %v1122 = vsel %vm205, %v1064, 0.0
  %v1123 = vadd.f32 %v1121, %v1122
  %v1124 = vsel %vm205, %v1065, 0.0
  %v1125 = vadd.f32 %v1123, %v1124
  %v1126 = vsel %vm205, %v1066, 0.0
  %v1127 = vadd.f32 %v1125, %v1126
  %v1128 = vsel %vm205, %v1067, 0.0
  %v1129 = vadd.f32 %v1127, %v1128
  %v1130 = vsel %vm205, %v1068, 0.0
  %v1131 = vadd.f32 %v1129, %v1130
  %v1132 = vsel %vm205, %v1069, 0.0
  %v1133 = vadd.f32 %v1131, %v1132
  %v1134 = vsel %vm205, %v1070, 0.0
  %v1135 = vadd.f32 %v1133, %v1134
  %v1136 = vsel %vm205, %v1071, 0.0
  %v1137 = vadd.f32 %v1135, %v1136
  %v1138 = vsel %vm205, %v1072, 0.0
  %v1139 = vadd.f32 %v1137, %v1138
  %v1140 = vsel %vm205, %v1073, 0.0
  %v1141 = vadd.f32 %v1139, %v1140
  %v1142 = vsel %vm205, %v1074, 0.0
  %v1143 = vadd.f32 %v1141, %v1142
  %v1144 = vsel %vm205, %v1075, 0.0
  %v1145 = vadd.f32 %v1143, %v1144
  %v1146 = vsel %vm205, %v1076, 0.0
  %v1147 = vadd.f32 %v1145, %v1146
  %v1148 = vrot.slane %v1147, 4
  %v1149 = vadd.f32 %v1147, %v1148
  %v1150 = vrot.slane %v1149, 2
  %v1151 = vadd.f32 %v1149, %v1150
  %v1152 = vrot.slane %v1151, 1
  %v1153 = vadd.f32 %v1151, %v1152
  %v1154 = vmul.f32 %v1153, %v514
  %1156 = vrot.lane.b32.xlu0 %v896, 112
  %v1157 = vpop.permute.xlu0 %1156
  %v1159 = vmul.f32 %v781, %v1157
  %v1160 = vmul.f32 %v1154, %v1154
  %v1161 = vsub.f32 %v1159, %v1160
  %v1162 = vrsqrt.pop %v1161
  %v1163 = vmul.f32 %v1161, %v1162
  %vm1164 = vcmp.eq.f32.partialorder %v1161, inf
  %v1165 = vsel %vm1164, %v1161, %v1163
  %vm1166 = vcmp.eq.f32.partialorder %v1161, 0.0
  %v1167 = vand.u32 %v1161, 2147483648
  %v1168 = vsel %vm1166, %v1167, %v1165
  %v1169 = vadd.f32 %v781, %v1157
  %v1170 = vmul.f32 %v1168, 2.0
  %v1171 = vadd.f32 %v1169, %v1170
  %v1172 = vrsqrt.pop %v1171
  %v1173 = vmul.f32 %v1171, %v1172
  %vm1174 = vcmp.eq.f32.partialorder %v1171, inf
  %v1175 = vsel %vm1174, %v1171, %v1173
  %vm1176 = vcmp.eq.f32.partialorder %v1171, 0.0
  %v1177 = vand.u32 %v1171, 2147483648
  %v1178 = vsel %vm1176, %v1177, %v1175
  %v1179 = vmul.f32 %v1168, %v1178
  %v1180 = vrcp.pop %v1179
  %v1181 = vmul.f32 1.0, %v1180
  %1183 = vrot.lane.b32.xlu0 %v1168, 16
  %v1184 = vpop.permute.xlu0 %1183
  %v1186 = vadd.f32 %v896, %v1184
  %1188 = vrot.lane.b32.xlu0 %v1181, 16
  %v1189 = vpop.permute.xlu0 %1188
  %v1191 = vmul.f32 %v1186, %v1189
  %v1192 = vadd.f32 %v781, %v1168
  %v1193 = vmul.f32 %v1192, %v1181
  %v1194 = vsub.f32 0.0, %v1154
  %v1195 = vmul.f32 %v1194, %v1181
  %v1196 = vlaneseq
  %v1197 = vshrl.u32 %v1196, 7
  %v1198 = vsub.s32 0, %v1197
  %v1199 = vrot.slane %v1191, %v1198
  %1236 = vrot.lane.b32.xlu0 %v595, 16
  %v1237 = vpop.permute.xlu0 %1236
  %1238 = vrot.lane.b32.xlu0 %v596, 16
  %v1239 = vpop.permute.xlu0 %1238
  %1240 = vrot.lane.b32.xlu0 %v597, 16
  %v1241 = vpop.permute.xlu0 %1240
  %1242 = vrot.lane.b32.xlu0 %v598, 16
  %v1243 = vpop.permute.xlu0 %1242
  %1244 = vrot.lane.b32.xlu0 %v599, 16
  %v1245 = vpop.permute.xlu0 %1244
  %1246 = vrot.lane.b32.xlu0 %v600, 16
  %v1247 = vpop.permute.xlu0 %1246
  %1248 = vrot.lane.b32.xlu0 %v601, 16
  %v1249 = vpop.permute.xlu0 %1248
  %1250 = vrot.lane.b32.xlu0 %v602, 16
  %v1251 = vpop.permute.xlu0 %1250
  %1252 = vrot.lane.b32.xlu0 %v603, 16
  %v1253 = vpop.permute.xlu0 %1252
  %1254 = vrot.lane.b32.xlu0 %v604, 16
  %v1255 = vpop.permute.xlu0 %1254
  %1256 = vrot.lane.b32.xlu0 %v605, 16
  %v1257 = vpop.permute.xlu0 %1256
  %1258 = vrot.lane.b32.xlu0 %v606, 16
  %v1259 = vpop.permute.xlu0 %1258
  %1260 = vrot.lane.b32.xlu0 %v607, 16
  %v1261 = vpop.permute.xlu0 %1260
  %1262 = vrot.lane.b32.xlu0 %v608, 16
  %v1263 = vpop.permute.xlu0 %1262
  %1264 = vrot.lane.b32.xlu0 %v609, 16
  %v1265 = vpop.permute.xlu0 %1264
  %1266 = vrot.lane.b32.xlu0 %v610, 16
  %v1267 = vpop.permute.xlu0 %1266
  %1268 = vrot.lane.b32.xlu0 %v611, 16
  %v1269 = vpop.permute.xlu0 %1268
  %1270 = vrot.lane.b32.xlu0 %v612, 16
  %v1271 = vpop.permute.xlu0 %1270
  %1272 = vrot.lane.b32.xlu0 %v613, 16
  %v1273 = vpop.permute.xlu0 %1272
  %1274 = vrot.lane.b32.xlu0 %v614, 16
  %v1275 = vpop.permute.xlu0 %1274
  %1276 = vrot.lane.b32.xlu0 %v615, 16
  %v1277 = vpop.permute.xlu0 %1276
  %1278 = vrot.lane.b32.xlu0 %v616, 16
  %v1279 = vpop.permute.xlu0 %1278
  %1280 = vrot.lane.b32.xlu0 %v617, 16
  %v1281 = vpop.permute.xlu0 %1280
  %1282 = vrot.lane.b32.xlu0 %v618, 16
  %v1283 = vpop.permute.xlu0 %1282
  %1284 = vrot.lane.b32.xlu0 %v619, 16
  %v1285 = vpop.permute.xlu0 %1284
  %1286 = vrot.lane.b32.xlu0 %v620, 16
  %v1287 = vpop.permute.xlu0 %1286
  %1288 = vrot.lane.b32.xlu0 %v621, 16
  %v1289 = vpop.permute.xlu0 %1288
  %1290 = vrot.lane.b32.xlu0 %v622, 16
  %v1291 = vpop.permute.xlu0 %1290
  %1292 = vrot.lane.b32.xlu0 %v623, 16
  %v1293 = vpop.permute.xlu0 %1292
  %1294 = vrot.lane.b32.xlu0 %v624, 16
  %v1295 = vpop.permute.xlu0 %1294
  %1296 = vrot.lane.b32.xlu0 %v625, 16
  %v1297 = vpop.permute.xlu0 %1296
  %1298 = vrot.lane.b32.xlu0 %v626, 16
  %v1299 = vpop.permute.xlu0 %1298
  %1300 = vrot.lane.b32.xlu0 %v627, 16
  %v1301 = vpop.permute.xlu0 %1300
  %1302 = vrot.lane.b32.xlu0 %v628, 16
  %v1303 = vpop.permute.xlu0 %1302
  %1304 = vrot.lane.b32.xlu0 %v629, 16
  %v1305 = vpop.permute.xlu0 %1304
  %1306 = vrot.lane.b32.xlu0 %v630, 16
  %v1307 = vpop.permute.xlu0 %1306
  %v1344 = vmul.f32 %v1199, %v1237
  %v1345 = vmul.f32 %v1199, %v1239
  %v1346 = vmul.f32 %v1199, %v1241
  %v1347 = vmul.f32 %v1199, %v1243
  %v1348 = vmul.f32 %v1199, %v1245
  %v1349 = vmul.f32 %v1199, %v1247
  %v1350 = vmul.f32 %v1199, %v1249
  %v1351 = vmul.f32 %v1199, %v1251
  %v1352 = vmul.f32 %v1199, %v1253
  %v1353 = vmul.f32 %v1199, %v1255
  %v1354 = vmul.f32 %v1199, %v1257
  %v1355 = vmul.f32 %v1199, %v1259
  %v1356 = vmul.f32 %v1199, %v1261
  %v1357 = vmul.f32 %v1199, %v1263
  %v1358 = vmul.f32 %v1199, %v1265
  %v1359 = vmul.f32 %v1199, %v1267
  %v1360 = vmul.f32 %v1199, %v1269
  %v1361 = vmul.f32 %v1199, %v1271
  %v1362 = vmul.f32 %v1199, %v1273
  %v1363 = vmul.f32 %v1199, %v1275
  %v1364 = vmul.f32 %v1199, %v1277
  %v1365 = vmul.f32 %v1199, %v1279
  %v1366 = vmul.f32 %v1199, %v1281
  %v1367 = vmul.f32 %v1199, %v1283
  %v1368 = vmul.f32 %v1199, %v1285
  %v1369 = vmul.f32 %v1199, %v1287
  %v1370 = vmul.f32 %v1199, %v1289
  %v1371 = vmul.f32 %v1199, %v1291
  %v1372 = vmul.f32 %v1199, %v1293
  %v1373 = vmul.f32 %v1199, %v1295
  %v1374 = vmul.f32 %v1199, %v1297
  %v1375 = vmul.f32 %v1199, %v1299
  %v1376 = vmul.f32 %v1199, %v1301
  %v1377 = vmul.f32 %v1199, %v1303
  %v1378 = vmul.f32 %v1199, %v1305
  %v1379 = vmul.f32 %v1199, %v1307
  %v1380 = vlaneseq
  %v1381 = vshrl.u32 %v1380, 7
  %v1382 = vsub.s32 0, %v1381
  %v1383 = vrot.slane %v1195, %v1382
  %v1384 = vmul.f32 %v1383, %v934
  %v1385 = vmul.f32 %v1383, %v936
  %v1386 = vmul.f32 %v1383, %v938
  %v1387 = vmul.f32 %v1383, %v940
  %v1388 = vmul.f32 %v1383, %v942
  %v1389 = vmul.f32 %v1383, %v944
  %v1390 = vmul.f32 %v1383, %v946
  %v1391 = vmul.f32 %v1383, %v948
  %v1392 = vmul.f32 %v1383, %v950
  %v1393 = vmul.f32 %v1383, %v952
  %v1394 = vmul.f32 %v1383, %v954
  %v1395 = vmul.f32 %v1383, %v956
  %v1396 = vmul.f32 %v1383, %v958
  %v1397 = vmul.f32 %v1383, %v960
  %v1398 = vmul.f32 %v1383, %v962
  %v1399 = vmul.f32 %v1383, %v964
  %v1400 = vmul.f32 %v1383, %v966
  %v1401 = vmul.f32 %v1383, %v968
  %v1402 = vmul.f32 %v1383, %v970
  %v1403 = vmul.f32 %v1383, %v972
  %v1404 = vmul.f32 %v1383, %v974
  %v1405 = vmul.f32 %v1383, %v976
  %v1406 = vmul.f32 %v1383, %v978
  %v1407 = vmul.f32 %v1383, %v980
  %v1408 = vmul.f32 %v1383, %v982
  %v1409 = vmul.f32 %v1383, %v984
  %v1410 = vmul.f32 %v1383, %v986
  %v1411 = vmul.f32 %v1383, %v988
  %v1412 = vmul.f32 %v1383, %v990
  %v1413 = vmul.f32 %v1383, %v992
  %v1414 = vmul.f32 %v1383, %v994
  %v1415 = vmul.f32 %v1383, %v996
  %v1416 = vmul.f32 %v1383, %v998
  %v1417 = vmul.f32 %v1383, %v1000
  %v1418 = vmul.f32 %v1383, %v1002
  %v1419 = vmul.f32 %v1383, %v1004
  %1456 = vrot.lane.b32.xlu0 %v1384, 16
  %v1457 = vpop.permute.xlu0 %1456
  %1458 = vrot.lane.b32.xlu0 %v1385, 16
  %v1459 = vpop.permute.xlu0 %1458
  %1460 = vrot.lane.b32.xlu0 %v1386, 16
  %v1461 = vpop.permute.xlu0 %1460
  %1462 = vrot.lane.b32.xlu0 %v1387, 16
  %v1463 = vpop.permute.xlu0 %1462
  %1464 = vrot.lane.b32.xlu0 %v1388, 16
  %v1465 = vpop.permute.xlu0 %1464
  %1466 = vrot.lane.b32.xlu0 %v1389, 16
  %v1467 = vpop.permute.xlu0 %1466
  %1468 = vrot.lane.b32.xlu0 %v1390, 16
  %v1469 = vpop.permute.xlu0 %1468
  %1470 = vrot.lane.b32.xlu0 %v1391, 16
  %v1471 = vpop.permute.xlu0 %1470
  %1472 = vrot.lane.b32.xlu0 %v1392, 16
  %v1473 = vpop.permute.xlu0 %1472
  %1474 = vrot.lane.b32.xlu0 %v1393, 16
  %v1475 = vpop.permute.xlu0 %1474
  %1476 = vrot.lane.b32.xlu0 %v1394, 16
  %v1477 = vpop.permute.xlu0 %1476
  %1478 = vrot.lane.b32.xlu0 %v1395, 16
  %v1479 = vpop.permute.xlu0 %1478
  %1480 = vrot.lane.b32.xlu0 %v1396, 16
  %v1481 = vpop.permute.xlu0 %1480
  %1482 = vrot.lane.b32.xlu0 %v1397, 16
  %v1483 = vpop.permute.xlu0 %1482
  %1484 = vrot.lane.b32.xlu0 %v1398, 16
  %v1485 = vpop.permute.xlu0 %1484
  %1486 = vrot.lane.b32.xlu0 %v1399, 16
  %v1487 = vpop.permute.xlu0 %1486
  %1488 = vrot.lane.b32.xlu0 %v1400, 16
  %v1489 = vpop.permute.xlu0 %1488
  %1490 = vrot.lane.b32.xlu0 %v1401, 16
  %v1491 = vpop.permute.xlu0 %1490
  %1492 = vrot.lane.b32.xlu0 %v1402, 16
  %v1493 = vpop.permute.xlu0 %1492
  %1494 = vrot.lane.b32.xlu0 %v1403, 16
  %v1495 = vpop.permute.xlu0 %1494
  %1496 = vrot.lane.b32.xlu0 %v1404, 16
  %v1497 = vpop.permute.xlu0 %1496
  %1498 = vrot.lane.b32.xlu0 %v1405, 16
  %v1499 = vpop.permute.xlu0 %1498
  %1500 = vrot.lane.b32.xlu0 %v1406, 16
  %v1501 = vpop.permute.xlu0 %1500
  %1502 = vrot.lane.b32.xlu0 %v1407, 16
  %v1503 = vpop.permute.xlu0 %1502
  %1504 = vrot.lane.b32.xlu0 %v1408, 16
  %v1505 = vpop.permute.xlu0 %1504
  %1506 = vrot.lane.b32.xlu0 %v1409, 16
  %v1507 = vpop.permute.xlu0 %1506
  %1508 = vrot.lane.b32.xlu0 %v1410, 16
  %v1509 = vpop.permute.xlu0 %1508
  %1510 = vrot.lane.b32.xlu0 %v1411, 16
  %v1511 = vpop.permute.xlu0 %1510
  %1512 = vrot.lane.b32.xlu0 %v1412, 16
  %v1513 = vpop.permute.xlu0 %1512
  %1514 = vrot.lane.b32.xlu0 %v1413, 16
  %v1515 = vpop.permute.xlu0 %1514
  %1516 = vrot.lane.b32.xlu0 %v1414, 16
  %v1517 = vpop.permute.xlu0 %1516
  %1518 = vrot.lane.b32.xlu0 %v1415, 16
  %v1519 = vpop.permute.xlu0 %1518
  %1520 = vrot.lane.b32.xlu0 %v1416, 16
  %v1521 = vpop.permute.xlu0 %1520
  %1522 = vrot.lane.b32.xlu0 %v1417, 16
  %v1523 = vpop.permute.xlu0 %1522
  %1524 = vrot.lane.b32.xlu0 %v1418, 16
  %v1525 = vpop.permute.xlu0 %1524
  %1526 = vrot.lane.b32.xlu0 %v1419, 16
  %v1527 = vpop.permute.xlu0 %1526
  %v1564 = vadd.f32 %v1344, %v1457
  %v1565 = vadd.f32 %v1345, %v1459
  %v1566 = vadd.f32 %v1346, %v1461
  %v1567 = vadd.f32 %v1347, %v1463
  %v1568 = vadd.f32 %v1348, %v1465
  %v1569 = vadd.f32 %v1349, %v1467
  %v1570 = vadd.f32 %v1350, %v1469
  %v1571 = vadd.f32 %v1351, %v1471
  %v1572 = vadd.f32 %v1352, %v1473
  %v1573 = vadd.f32 %v1353, %v1475
  %v1574 = vadd.f32 %v1354, %v1477
  %v1575 = vadd.f32 %v1355, %v1479
  %v1576 = vadd.f32 %v1356, %v1481
  %v1577 = vadd.f32 %v1357, %v1483
  %v1578 = vadd.f32 %v1358, %v1485
  %v1579 = vadd.f32 %v1359, %v1487
  %v1580 = vadd.f32 %v1360, %v1489
  %v1581 = vadd.f32 %v1361, %v1491
  %v1582 = vadd.f32 %v1362, %v1493
  %v1583 = vadd.f32 %v1363, %v1495
  %v1584 = vadd.f32 %v1364, %v1497
  %v1585 = vadd.f32 %v1365, %v1499
  %v1586 = vadd.f32 %v1366, %v1501
  %v1587 = vadd.f32 %v1367, %v1503
  %v1588 = vadd.f32 %v1368, %v1505
  %v1589 = vadd.f32 %v1369, %v1507
  %v1590 = vadd.f32 %v1370, %v1509
  %v1591 = vadd.f32 %v1371, %v1511
  %v1592 = vadd.f32 %v1372, %v1513
  %v1593 = vadd.f32 %v1373, %v1515
  %v1594 = vadd.f32 %v1374, %v1517
  %v1595 = vadd.f32 %v1375, %v1519
  %v1596 = vadd.f32 %v1376, %v1521
  %v1597 = vadd.f32 %v1377, %v1523
  %v1598 = vadd.f32 %v1378, %v1525
  %v1599 = vadd.f32 %v1379, %v1527
  %v1600 = vlaneseq
  %v1601 = vshrl.u32 %v1600, 7
  %v1602 = vsub.s32 0, %v1601
  %v1603 = vrot.slane %v1193, %v1602
  %v1604 = vmul.f32 %v1603, %v934
  %v1605 = vmul.f32 %v1603, %v936
  %v1606 = vmul.f32 %v1603, %v938
  %v1607 = vmul.f32 %v1603, %v940
  %v1608 = vmul.f32 %v1603, %v942
  %v1609 = vmul.f32 %v1603, %v944
  %v1610 = vmul.f32 %v1603, %v946
  %v1611 = vmul.f32 %v1603, %v948
  %v1612 = vmul.f32 %v1603, %v950
  %v1613 = vmul.f32 %v1603, %v952
  %v1614 = vmul.f32 %v1603, %v954
  %v1615 = vmul.f32 %v1603, %v956
  %v1616 = vmul.f32 %v1603, %v958
  %v1617 = vmul.f32 %v1603, %v960
  %v1618 = vmul.f32 %v1603, %v962
  %v1619 = vmul.f32 %v1603, %v964
  %v1620 = vmul.f32 %v1603, %v966
  %v1621 = vmul.f32 %v1603, %v968
  %v1622 = vmul.f32 %v1603, %v970
  %v1623 = vmul.f32 %v1603, %v972
  %v1624 = vmul.f32 %v1603, %v974
  %v1625 = vmul.f32 %v1603, %v976
  %v1626 = vmul.f32 %v1603, %v978
  %v1627 = vmul.f32 %v1603, %v980
  %v1628 = vmul.f32 %v1603, %v982
  %v1629 = vmul.f32 %v1603, %v984
  %v1630 = vmul.f32 %v1603, %v986
  %v1631 = vmul.f32 %v1603, %v988
  %v1632 = vmul.f32 %v1603, %v990
  %v1633 = vmul.f32 %v1603, %v992
  %v1634 = vmul.f32 %v1603, %v994
  %v1635 = vmul.f32 %v1603, %v996
  %v1636 = vmul.f32 %v1603, %v998
  %v1637 = vmul.f32 %v1603, %v1000
  %v1638 = vmul.f32 %v1603, %v1002
  %v1639 = vmul.f32 %v1603, %v1004
  %v1640 = vmul.f32 %v1383, %v595
  %v1641 = vmul.f32 %v1383, %v596
  %v1642 = vmul.f32 %v1383, %v597
  %v1643 = vmul.f32 %v1383, %v598
  %v1644 = vmul.f32 %v1383, %v599
  %v1645 = vmul.f32 %v1383, %v600
  %v1646 = vmul.f32 %v1383, %v601
  %v1647 = vmul.f32 %v1383, %v602
  %v1648 = vmul.f32 %v1383, %v603
  %v1649 = vmul.f32 %v1383, %v604
  %v1650 = vmul.f32 %v1383, %v605
  %v1651 = vmul.f32 %v1383, %v606
  %v1652 = vmul.f32 %v1383, %v607
  %v1653 = vmul.f32 %v1383, %v608
  %v1654 = vmul.f32 %v1383, %v609
  %v1655 = vmul.f32 %v1383, %v610
  %v1656 = vmul.f32 %v1383, %v611
  %v1657 = vmul.f32 %v1383, %v612
  %v1658 = vmul.f32 %v1383, %v613
  %v1659 = vmul.f32 %v1383, %v614
  %v1660 = vmul.f32 %v1383, %v615
  %v1661 = vmul.f32 %v1383, %v616
  %v1662 = vmul.f32 %v1383, %v617
  %v1663 = vmul.f32 %v1383, %v618
  %v1664 = vmul.f32 %v1383, %v619
  %v1665 = vmul.f32 %v1383, %v620
  %v1666 = vmul.f32 %v1383, %v621
  %v1667 = vmul.f32 %v1383, %v622
  %v1668 = vmul.f32 %v1383, %v623
  %v1669 = vmul.f32 %v1383, %v624
  %v1670 = vmul.f32 %v1383, %v625
  %v1671 = vmul.f32 %v1383, %v626
  %v1672 = vmul.f32 %v1383, %v627
  %v1673 = vmul.f32 %v1383, %v628
  %v1674 = vmul.f32 %v1383, %v629
  %v1675 = vmul.f32 %v1383, %v630
  %v1676 = vadd.f32 %v1604, %v1640
  %v1677 = vadd.f32 %v1605, %v1641
  %v1678 = vadd.f32 %v1606, %v1642
  %v1679 = vadd.f32 %v1607, %v1643
  %v1680 = vadd.f32 %v1608, %v1644
  %v1681 = vadd.f32 %v1609, %v1645
  %v1682 = vadd.f32 %v1610, %v1646
  %v1683 = vadd.f32 %v1611, %v1647
  %v1684 = vadd.f32 %v1612, %v1648
  %v1685 = vadd.f32 %v1613, %v1649
  %v1686 = vadd.f32 %v1614, %v1650
  %v1687 = vadd.f32 %v1615, %v1651
  %v1688 = vadd.f32 %v1616, %v1652
  %v1689 = vadd.f32 %v1617, %v1653
  %v1690 = vadd.f32 %v1618, %v1654
  %v1691 = vadd.f32 %v1619, %v1655
  %v1692 = vadd.f32 %v1620, %v1656
  %v1693 = vadd.f32 %v1621, %v1657
  %v1694 = vadd.f32 %v1622, %v1658
  %v1695 = vadd.f32 %v1623, %v1659
  %v1696 = vadd.f32 %v1624, %v1660
  %v1697 = vadd.f32 %v1625, %v1661
  %v1698 = vadd.f32 %v1626, %v1662
  %v1699 = vadd.f32 %v1627, %v1663
  %v1700 = vadd.f32 %v1628, %v1664
  %v1701 = vadd.f32 %v1629, %v1665
  %v1702 = vadd.f32 %v1630, %v1666
  %v1703 = vadd.f32 %v1631, %v1667
  %v1704 = vadd.f32 %v1632, %v1668
  %v1705 = vadd.f32 %v1633, %v1669
  %v1706 = vadd.f32 %v1634, %v1670
  %v1707 = vadd.f32 %v1635, %v1671
  %v1708 = vadd.f32 %v1636, %v1672
  %v1709 = vadd.f32 %v1637, %v1673
  %v1710 = vadd.f32 %v1638, %v1674
  %v1711 = vadd.f32 %v1639, %v1675
  %v1712 = vld [vmem:[%s3] sm:$0x1f]
  %v1713 = vlaneseq
  %v1714 = vshrl.u32 %v1713, 7
  %v1715 = vsub.s32 0, %v1714
  %v1716 = vrot.slane %v1712, %v1715
  %1753 = vrot.lane.b32.xlu0 %v1564, 112
  %v1754 = vpop.permute.xlu0 %1753
  %1755 = vrot.lane.b32.xlu0 %v1565, 112
  %v1756 = vpop.permute.xlu0 %1755
  %1757 = vrot.lane.b32.xlu0 %v1566, 112
  %v1758 = vpop.permute.xlu0 %1757
  %1759 = vrot.lane.b32.xlu0 %v1567, 112
  %v1760 = vpop.permute.xlu0 %1759
  %1761 = vrot.lane.b32.xlu0 %v1568, 112
  %v1762 = vpop.permute.xlu0 %1761
  %1763 = vrot.lane.b32.xlu0 %v1569, 112
  %v1764 = vpop.permute.xlu0 %1763
  %1765 = vrot.lane.b32.xlu0 %v1570, 112
  %v1766 = vpop.permute.xlu0 %1765
  %1767 = vrot.lane.b32.xlu0 %v1571, 112
  %v1768 = vpop.permute.xlu0 %1767
  %1769 = vrot.lane.b32.xlu0 %v1572, 112
  %v1770 = vpop.permute.xlu0 %1769
  %1771 = vrot.lane.b32.xlu0 %v1573, 112
  %v1772 = vpop.permute.xlu0 %1771
  %1773 = vrot.lane.b32.xlu0 %v1574, 112
  %v1774 = vpop.permute.xlu0 %1773
  %1775 = vrot.lane.b32.xlu0 %v1575, 112
  %v1776 = vpop.permute.xlu0 %1775
  %1777 = vrot.lane.b32.xlu0 %v1576, 112
  %v1778 = vpop.permute.xlu0 %1777
  %1779 = vrot.lane.b32.xlu0 %v1577, 112
  %v1780 = vpop.permute.xlu0 %1779
  %1781 = vrot.lane.b32.xlu0 %v1578, 112
  %v1782 = vpop.permute.xlu0 %1781
  %1783 = vrot.lane.b32.xlu0 %v1579, 112
  %v1784 = vpop.permute.xlu0 %1783
  %1785 = vrot.lane.b32.xlu0 %v1580, 112
  %v1786 = vpop.permute.xlu0 %1785
  %1787 = vrot.lane.b32.xlu0 %v1581, 112
  %v1788 = vpop.permute.xlu0 %1787
  %1789 = vrot.lane.b32.xlu0 %v1582, 112
  %v1790 = vpop.permute.xlu0 %1789
  %1791 = vrot.lane.b32.xlu0 %v1583, 112
  %v1792 = vpop.permute.xlu0 %1791
  %1793 = vrot.lane.b32.xlu0 %v1584, 112
  %v1794 = vpop.permute.xlu0 %1793
  %1795 = vrot.lane.b32.xlu0 %v1585, 112
  %v1796 = vpop.permute.xlu0 %1795
  %1797 = vrot.lane.b32.xlu0 %v1586, 112
  %v1798 = vpop.permute.xlu0 %1797
  %1799 = vrot.lane.b32.xlu0 %v1587, 112
  %v1800 = vpop.permute.xlu0 %1799
  %1801 = vrot.lane.b32.xlu0 %v1588, 112
  %v1802 = vpop.permute.xlu0 %1801
  %1803 = vrot.lane.b32.xlu0 %v1589, 112
  %v1804 = vpop.permute.xlu0 %1803
  %1805 = vrot.lane.b32.xlu0 %v1590, 112
  %v1806 = vpop.permute.xlu0 %1805
  %1807 = vrot.lane.b32.xlu0 %v1591, 112
  %v1808 = vpop.permute.xlu0 %1807
  %1809 = vrot.lane.b32.xlu0 %v1592, 112
  %v1810 = vpop.permute.xlu0 %1809
  %1811 = vrot.lane.b32.xlu0 %v1593, 112
  %v1812 = vpop.permute.xlu0 %1811
  %1813 = vrot.lane.b32.xlu0 %v1594, 112
  %v1814 = vpop.permute.xlu0 %1813
  %1815 = vrot.lane.b32.xlu0 %v1595, 112
  %v1816 = vpop.permute.xlu0 %1815
  %1817 = vrot.lane.b32.xlu0 %v1596, 112
  %v1818 = vpop.permute.xlu0 %1817
  %1819 = vrot.lane.b32.xlu0 %v1597, 112
  %v1820 = vpop.permute.xlu0 %1819
  %1821 = vrot.lane.b32.xlu0 %v1598, 112
  %v1822 = vpop.permute.xlu0 %1821
  %1823 = vrot.lane.b32.xlu0 %v1599, 112
  %v1824 = vpop.permute.xlu0 %1823
  %v1861 = vmul.f32 %v1716, %v1754
  %v1862 = vmul.f32 %v1716, %v1756
  %v1863 = vmul.f32 %v1716, %v1758
  %v1864 = vmul.f32 %v1716, %v1760
  %v1865 = vmul.f32 %v1716, %v1762
  %v1866 = vmul.f32 %v1716, %v1764
  %v1867 = vmul.f32 %v1716, %v1766
  %v1868 = vmul.f32 %v1716, %v1768
  %v1869 = vmul.f32 %v1716, %v1770
  %v1870 = vmul.f32 %v1716, %v1772
  %v1871 = vmul.f32 %v1716, %v1774
  %v1872 = vmul.f32 %v1716, %v1776
  %v1873 = vmul.f32 %v1716, %v1778
  %v1874 = vmul.f32 %v1716, %v1780
  %v1875 = vmul.f32 %v1716, %v1782
  %v1876 = vmul.f32 %v1716, %v1784
  %v1877 = vmul.f32 %v1716, %v1786
  %v1878 = vmul.f32 %v1716, %v1788
  %v1879 = vmul.f32 %v1716, %v1790
  %v1880 = vmul.f32 %v1716, %v1792
  %v1881 = vmul.f32 %v1716, %v1794
  %v1882 = vmul.f32 %v1716, %v1796
  %v1883 = vmul.f32 %v1716, %v1798
  %v1884 = vmul.f32 %v1716, %v1800
  %v1885 = vmul.f32 %v1716, %v1802
  %v1886 = vmul.f32 %v1716, %v1804
  %v1887 = vmul.f32 %v1716, %v1806
  %v1888 = vmul.f32 %v1716, %v1808
  %v1889 = vmul.f32 %v1716, %v1810
  %v1890 = vmul.f32 %v1716, %v1812
  %v1891 = vmul.f32 %v1716, %v1814
  %v1892 = vmul.f32 %v1716, %v1816
  %v1893 = vmul.f32 %v1716, %v1818
  %v1894 = vmul.f32 %v1716, %v1820
  %v1895 = vmul.f32 %v1716, %v1822
  %v1896 = vmul.f32 %v1716, %v1824
  %v1897 = vlaneseq
  %v1898 = vshrl.u32 %v1897, 7
  %v1899 = vsub.s32 2, %v1898
  %v1900 = vrot.slane %v1712, %v1899
  %v1901 = vmul.f32 %v1900, %v1676
  %v1902 = vmul.f32 %v1900, %v1677
  %v1903 = vmul.f32 %v1900, %v1678
  %v1904 = vmul.f32 %v1900, %v1679
  %v1905 = vmul.f32 %v1900, %v1680
  %v1906 = vmul.f32 %v1900, %v1681
  %v1907 = vmul.f32 %v1900, %v1682
  %v1908 = vmul.f32 %v1900, %v1683
  %v1909 = vmul.f32 %v1900, %v1684
  %v1910 = vmul.f32 %v1900, %v1685
  %v1911 = vmul.f32 %v1900, %v1686
  %v1912 = vmul.f32 %v1900, %v1687
  %v1913 = vmul.f32 %v1900, %v1688
  %v1914 = vmul.f32 %v1900, %v1689
  %v1915 = vmul.f32 %v1900, %v1690
  %v1916 = vmul.f32 %v1900, %v1691
  %v1917 = vmul.f32 %v1900, %v1692
  %v1918 = vmul.f32 %v1900, %v1693
  %v1919 = vmul.f32 %v1900, %v1694
  %v1920 = vmul.f32 %v1900, %v1695
  %v1921 = vmul.f32 %v1900, %v1696
  %v1922 = vmul.f32 %v1900, %v1697
  %v1923 = vmul.f32 %v1900, %v1698
  %v1924 = vmul.f32 %v1900, %v1699
  %v1925 = vmul.f32 %v1900, %v1700
  %v1926 = vmul.f32 %v1900, %v1701
  %v1927 = vmul.f32 %v1900, %v1702
  %v1928 = vmul.f32 %v1900, %v1703
  %v1929 = vmul.f32 %v1900, %v1704
  %v1930 = vmul.f32 %v1900, %v1705
  %v1931 = vmul.f32 %v1900, %v1706
  %v1932 = vmul.f32 %v1900, %v1707
  %v1933 = vmul.f32 %v1900, %v1708
  %v1934 = vmul.f32 %v1900, %v1709
  %v1935 = vmul.f32 %v1900, %v1710
  %v1936 = vmul.f32 %v1900, %v1711
  %v1937 = vadd.f32 %v1861, %v1901
  %v1938 = vadd.f32 %v1862, %v1902
  %v1939 = vadd.f32 %v1863, %v1903
  %v1940 = vadd.f32 %v1864, %v1904
  %v1941 = vadd.f32 %v1865, %v1905
  %v1942 = vadd.f32 %v1866, %v1906
  %v1943 = vadd.f32 %v1867, %v1907
  %v1944 = vadd.f32 %v1868, %v1908
  %v1945 = vadd.f32 %v1869, %v1909
  %v1946 = vadd.f32 %v1870, %v1910
  %v1947 = vadd.f32 %v1871, %v1911
  %v1948 = vadd.f32 %v1872, %v1912
  %v1949 = vadd.f32 %v1873, %v1913
  %v1950 = vadd.f32 %v1874, %v1914
  %v1951 = vadd.f32 %v1875, %v1915
  %v1952 = vadd.f32 %v1876, %v1916
  %v1953 = vadd.f32 %v1877, %v1917
  %v1954 = vadd.f32 %v1878, %v1918
  %v1955 = vadd.f32 %v1879, %v1919
  %v1956 = vadd.f32 %v1880, %v1920
  %v1957 = vadd.f32 %v1881, %v1921
  %v1958 = vadd.f32 %v1882, %v1922
  %v1959 = vadd.f32 %v1883, %v1923
  %v1960 = vadd.f32 %v1884, %v1924
  %v1961 = vadd.f32 %v1885, %v1925
  %v1962 = vadd.f32 %v1886, %v1926
  %v1963 = vadd.f32 %v1887, %v1927
  %v1964 = vadd.f32 %v1888, %v1928
  %v1965 = vadd.f32 %v1889, %v1929
  %v1966 = vadd.f32 %v1890, %v1930
  %v1967 = vadd.f32 %v1891, %v1931
  %v1968 = vadd.f32 %v1892, %v1932
  %v1969 = vadd.f32 %v1893, %v1933
  %v1970 = vadd.f32 %v1894, %v1934
  %v1971 = vadd.f32 %v1895, %v1935
  %v1972 = vadd.f32 %v1896, %v1936
  %v1973 = vlaneseq
  %v1974 = vshrl.u32 %v1973, 7
  %v1975 = vsub.s32 3, %v1974
  %v1976 = vrot.slane %v1712, %v1975
  %v1977 = vadd.f32 %v1937, %v1976
  %v1978 = vadd.f32 %v1938, %v1976
  %v1979 = vadd.f32 %v1939, %v1976
  %v1980 = vadd.f32 %v1940, %v1976
  %v1981 = vadd.f32 %v1941, %v1976
  %v1982 = vadd.f32 %v1942, %v1976
  %v1983 = vadd.f32 %v1943, %v1976
  %v1984 = vadd.f32 %v1944, %v1976
  %v1985 = vadd.f32 %v1945, %v1976
  %v1986 = vadd.f32 %v1946, %v1976
  %v1987 = vadd.f32 %v1947, %v1976
  %v1988 = vadd.f32 %v1948, %v1976
  %v1989 = vadd.f32 %v1949, %v1976
  %v1990 = vadd.f32 %v1950, %v1976
  %v1991 = vadd.f32 %v1951, %v1976
  %v1992 = vadd.f32 %v1952, %v1976
  %v1993 = vadd.f32 %v1953, %v1976
  %v1994 = vadd.f32 %v1954, %v1976
  %v1995 = vadd.f32 %v1955, %v1976
  %v1996 = vadd.f32 %v1956, %v1976
  %v1997 = vadd.f32 %v1957, %v1976
  %v1998 = vadd.f32 %v1958, %v1976
  %v1999 = vadd.f32 %v1959, %v1976
  %v2000 = vadd.f32 %v1960, %v1976
  %v2001 = vadd.f32 %v1961, %v1976
  %v2002 = vadd.f32 %v1962, %v1976
  %v2003 = vadd.f32 %v1963, %v1976
  %v2004 = vadd.f32 %v1964, %v1976
  %v2005 = vadd.f32 %v1965, %v1976
  %v2006 = vadd.f32 %v1966, %v1976
  %v2007 = vadd.f32 %v1967, %v1976
  %v2008 = vadd.f32 %v1968, %v1976
  %v2009 = vadd.f32 %v1969, %v1976
  %v2010 = vadd.f32 %v1970, %v1976
  %v2011 = vadd.f32 %v1971, %v1976
  %v2012 = vadd.f32 %v1972, %v1976
  %v2013 = vmax.f32 %v1977, -1.0
  %v2014 = vmax.f32 %v1978, -1.0
  %v2015 = vmax.f32 %v1979, -1.0
  %v2016 = vmax.f32 %v1980, -1.0
  %v2017 = vmax.f32 %v1981, -1.0
  %v2018 = vmax.f32 %v1982, -1.0
  %v2019 = vmax.f32 %v1983, -1.0
  %v2020 = vmax.f32 %v1984, -1.0
  %v2021 = vmax.f32 %v1985, -1.0
  %v2022 = vmax.f32 %v1986, -1.0
  %v2023 = vmax.f32 %v1987, -1.0
  %v2024 = vmax.f32 %v1988, -1.0
  %v2025 = vmax.f32 %v1989, -1.0
  %v2026 = vmax.f32 %v1990, -1.0
  %v2027 = vmax.f32 %v1991, -1.0
  %v2028 = vmax.f32 %v1992, -1.0
  %v2029 = vmax.f32 %v1993, -1.0
  %v2030 = vmax.f32 %v1994, -1.0
  %v2031 = vmax.f32 %v1995, -1.0
  %v2032 = vmax.f32 %v1996, -1.0
  %v2033 = vmax.f32 %v1997, -1.0
  %v2034 = vmax.f32 %v1998, -1.0
  %v2035 = vmax.f32 %v1999, -1.0
  %v2036 = vmax.f32 %v2000, -1.0
  %v2037 = vmax.f32 %v2001, -1.0
  %v2038 = vmax.f32 %v2002, -1.0
  %v2039 = vmax.f32 %v2003, -1.0
  %v2040 = vmax.f32 %v2004, -1.0
  %v2041 = vmax.f32 %v2005, -1.0
  %v2042 = vmax.f32 %v2006, -1.0
  %v2043 = vmax.f32 %v2007, -1.0
  %v2044 = vmax.f32 %v2008, -1.0
  %v2045 = vmax.f32 %v2009, -1.0
  %v2046 = vmax.f32 %v2010, -1.0
  %v2047 = vmax.f32 %v2011, -1.0
  %v2048 = vmax.f32 %v2012, -1.0
  %v2049 = vmin.f32 %v2013, 1.0
  %v2050 = vmin.f32 %v2014, 1.0
  %v2051 = vmin.f32 %v2015, 1.0
  %v2052 = vmin.f32 %v2016, 1.0
  %v2053 = vmin.f32 %v2017, 1.0
  %v2054 = vmin.f32 %v2018, 1.0
  %v2055 = vmin.f32 %v2019, 1.0
  %v2056 = vmin.f32 %v2020, 1.0
  %v2057 = vmin.f32 %v2021, 1.0
  %v2058 = vmin.f32 %v2022, 1.0
  %v2059 = vmin.f32 %v2023, 1.0
  %v2060 = vmin.f32 %v2024, 1.0
  %v2061 = vmin.f32 %v2025, 1.0
  %v2062 = vmin.f32 %v2026, 1.0
  %v2063 = vmin.f32 %v2027, 1.0
  %v2064 = vmin.f32 %v2028, 1.0
  %v2065 = vmin.f32 %v2029, 1.0
  %v2066 = vmin.f32 %v2030, 1.0
  %v2067 = vmin.f32 %v2031, 1.0
  %v2068 = vmin.f32 %v2032, 1.0
  %v2069 = vmin.f32 %v2033, 1.0
  %v2070 = vmin.f32 %v2034, 1.0
  %v2071 = vmin.f32 %v2035, 1.0
  %v2072 = vmin.f32 %v2036, 1.0
  %v2073 = vmin.f32 %v2037, 1.0
  %v2074 = vmin.f32 %v2038, 1.0
  %v2075 = vmin.f32 %v2039, 1.0
  %v2076 = vmin.f32 %v2040, 1.0
  %v2077 = vmin.f32 %v2041, 1.0
  %v2078 = vmin.f32 %v2042, 1.0
  %v2079 = vmin.f32 %v2043, 1.0
  %v2080 = vmin.f32 %v2044, 1.0
  %v2081 = vmin.f32 %v2045, 1.0
  %v2082 = vmin.f32 %v2046, 1.0
  %v2083 = vmin.f32 %v2047, 1.0
  %v2084 = vmin.f32 %v2048, 1.0
  %v2085 = vmul.f32 %v1900, %v1754
  %v2086 = vmul.f32 %v1900, %v1756
  %v2087 = vmul.f32 %v1900, %v1758
  %v2088 = vmul.f32 %v1900, %v1760
  %v2089 = vmul.f32 %v1900, %v1762
  %v2090 = vmul.f32 %v1900, %v1764
  %v2091 = vmul.f32 %v1900, %v1766
  %v2092 = vmul.f32 %v1900, %v1768
  %v2093 = vmul.f32 %v1900, %v1770
  %v2094 = vmul.f32 %v1900, %v1772
  %v2095 = vmul.f32 %v1900, %v1774
  %v2096 = vmul.f32 %v1900, %v1776
  %v2097 = vmul.f32 %v1900, %v1778
  %v2098 = vmul.f32 %v1900, %v1780
  %v2099 = vmul.f32 %v1900, %v1782
  %v2100 = vmul.f32 %v1900, %v1784
  %v2101 = vmul.f32 %v1900, %v1786
  %v2102 = vmul.f32 %v1900, %v1788
  %v2103 = vmul.f32 %v1900, %v1790
  %v2104 = vmul.f32 %v1900, %v1792
  %v2105 = vmul.f32 %v1900, %v1794
  %v2106 = vmul.f32 %v1900, %v1796
  %v2107 = vmul.f32 %v1900, %v1798
  %v2108 = vmul.f32 %v1900, %v1800
  %v2109 = vmul.f32 %v1900, %v1802
  %v2110 = vmul.f32 %v1900, %v1804
  %v2111 = vmul.f32 %v1900, %v1806
  %v2112 = vmul.f32 %v1900, %v1808
  %v2113 = vmul.f32 %v1900, %v1810
  %v2114 = vmul.f32 %v1900, %v1812
  %v2115 = vmul.f32 %v1900, %v1814
  %v2116 = vmul.f32 %v1900, %v1816
  %v2117 = vmul.f32 %v1900, %v1818
  %v2118 = vmul.f32 %v1900, %v1820
  %v2119 = vmul.f32 %v1900, %v1822
  %v2120 = vmul.f32 %v1900, %v1824
  %v2121 = vlaneseq
  %v2122 = vshrl.u32 %v2121, 7
  %v2123 = vsub.s32 1, %v2122
  %v2124 = vrot.slane %v1712, %v2123
  %v2125 = vmul.f32 %v2124, %v1676
  %v2126 = vmul.f32 %v2124, %v1677
  %v2127 = vmul.f32 %v2124, %v1678
  %v2128 = vmul.f32 %v2124, %v1679
  %v2129 = vmul.f32 %v2124, %v1680
  %v2130 = vmul.f32 %v2124, %v1681
  %v2131 = vmul.f32 %v2124, %v1682
  %v2132 = vmul.f32 %v2124, %v1683
  %v2133 = vmul.f32 %v2124, %v1684
  %v2134 = vmul.f32 %v2124, %v1685
  %v2135 = vmul.f32 %v2124, %v1686
  %v2136 = vmul.f32 %v2124, %v1687
  %v2137 = vmul.f32 %v2124, %v1688
  %v2138 = vmul.f32 %v2124, %v1689
  %v2139 = vmul.f32 %v2124, %v1690
  %v2140 = vmul.f32 %v2124, %v1691
  %v2141 = vmul.f32 %v2124, %v1692
  %v2142 = vmul.f32 %v2124, %v1693
  %v2143 = vmul.f32 %v2124, %v1694
  %v2144 = vmul.f32 %v2124, %v1695
  %v2145 = vmul.f32 %v2124, %v1696
  %v2146 = vmul.f32 %v2124, %v1697
  %v2147 = vmul.f32 %v2124, %v1698
  %v2148 = vmul.f32 %v2124, %v1699
  %v2149 = vmul.f32 %v2124, %v1700
  %v2150 = vmul.f32 %v2124, %v1701
  %v2151 = vmul.f32 %v2124, %v1702
  %v2152 = vmul.f32 %v2124, %v1703
  %v2153 = vmul.f32 %v2124, %v1704
  %v2154 = vmul.f32 %v2124, %v1705
  %v2155 = vmul.f32 %v2124, %v1706
  %v2156 = vmul.f32 %v2124, %v1707
  %v2157 = vmul.f32 %v2124, %v1708
  %v2158 = vmul.f32 %v2124, %v1709
  %v2159 = vmul.f32 %v2124, %v1710
  %v2160 = vmul.f32 %v2124, %v1711
  %v2161 = vadd.f32 %v2085, %v2125
  %v2162 = vadd.f32 %v2086, %v2126
  %v2163 = vadd.f32 %v2087, %v2127
  %v2164 = vadd.f32 %v2088, %v2128
  %v2165 = vadd.f32 %v2089, %v2129
  %v2166 = vadd.f32 %v2090, %v2130
  %v2167 = vadd.f32 %v2091, %v2131
  %v2168 = vadd.f32 %v2092, %v2132
  %v2169 = vadd.f32 %v2093, %v2133
  %v2170 = vadd.f32 %v2094, %v2134
  %v2171 = vadd.f32 %v2095, %v2135
  %v2172 = vadd.f32 %v2096, %v2136
  %v2173 = vadd.f32 %v2097, %v2137
  %v2174 = vadd.f32 %v2098, %v2138
  %v2175 = vadd.f32 %v2099, %v2139
  %v2176 = vadd.f32 %v2100, %v2140
  %v2177 = vadd.f32 %v2101, %v2141
  %v2178 = vadd.f32 %v2102, %v2142
  %v2179 = vadd.f32 %v2103, %v2143
  %v2180 = vadd.f32 %v2104, %v2144
  %v2181 = vadd.f32 %v2105, %v2145
  %v2182 = vadd.f32 %v2106, %v2146
  %v2183 = vadd.f32 %v2107, %v2147
  %v2184 = vadd.f32 %v2108, %v2148
  %v2185 = vadd.f32 %v2109, %v2149
  %v2186 = vadd.f32 %v2110, %v2150
  %v2187 = vadd.f32 %v2111, %v2151
  %v2188 = vadd.f32 %v2112, %v2152
  %v2189 = vadd.f32 %v2113, %v2153
  %v2190 = vadd.f32 %v2114, %v2154
  %v2191 = vadd.f32 %v2115, %v2155
  %v2192 = vadd.f32 %v2116, %v2156
  %v2193 = vadd.f32 %v2117, %v2157
  %v2194 = vadd.f32 %v2118, %v2158
  %v2195 = vadd.f32 %v2119, %v2159
  %v2196 = vadd.f32 %v2120, %v2160
  %v2197 = vlaneseq
  %v2198 = vshrl.u32 %v2197, 7
  %v2199 = vsub.s32 4, %v2198
  %v2200 = vrot.slane %v1712, %v2199
  %v2201 = vadd.f32 %v2161, %v2200
  %v2202 = vadd.f32 %v2162, %v2200
  %v2203 = vadd.f32 %v2163, %v2200
  %v2204 = vadd.f32 %v2164, %v2200
  %v2205 = vadd.f32 %v2165, %v2200
  %v2206 = vadd.f32 %v2166, %v2200
  %v2207 = vadd.f32 %v2167, %v2200
  %v2208 = vadd.f32 %v2168, %v2200
  %v2209 = vadd.f32 %v2169, %v2200
  %v2210 = vadd.f32 %v2170, %v2200
  %v2211 = vadd.f32 %v2171, %v2200
  %v2212 = vadd.f32 %v2172, %v2200
  %v2213 = vadd.f32 %v2173, %v2200
  %v2214 = vadd.f32 %v2174, %v2200
  %v2215 = vadd.f32 %v2175, %v2200
  %v2216 = vadd.f32 %v2176, %v2200
  %v2217 = vadd.f32 %v2177, %v2200
  %v2218 = vadd.f32 %v2178, %v2200
  %v2219 = vadd.f32 %v2179, %v2200
  %v2220 = vadd.f32 %v2180, %v2200
  %v2221 = vadd.f32 %v2181, %v2200
  %v2222 = vadd.f32 %v2182, %v2200
  %v2223 = vadd.f32 %v2183, %v2200
  %v2224 = vadd.f32 %v2184, %v2200
  %v2225 = vadd.f32 %v2185, %v2200
  %v2226 = vadd.f32 %v2186, %v2200
  %v2227 = vadd.f32 %v2187, %v2200
  %v2228 = vadd.f32 %v2188, %v2200
  %v2229 = vadd.f32 %v2189, %v2200
  %v2230 = vadd.f32 %v2190, %v2200
  %v2231 = vadd.f32 %v2191, %v2200
  %v2232 = vadd.f32 %v2192, %v2200
  %v2233 = vadd.f32 %v2193, %v2200
  %v2234 = vadd.f32 %v2194, %v2200
  %v2235 = vadd.f32 %v2195, %v2200
  %v2236 = vadd.f32 %v2196, %v2200
  %v2237 = vmax.f32 %v2201, -1.0
  %v2238 = vmax.f32 %v2202, -1.0
  %v2239 = vmax.f32 %v2203, -1.0
  %v2240 = vmax.f32 %v2204, -1.0
  %v2241 = vmax.f32 %v2205, -1.0
  %v2242 = vmax.f32 %v2206, -1.0
  %v2243 = vmax.f32 %v2207, -1.0
  %v2244 = vmax.f32 %v2208, -1.0
  %v2245 = vmax.f32 %v2209, -1.0
  %v2246 = vmax.f32 %v2210, -1.0
  %v2247 = vmax.f32 %v2211, -1.0
  %v2248 = vmax.f32 %v2212, -1.0
  %v2249 = vmax.f32 %v2213, -1.0
  %v2250 = vmax.f32 %v2214, -1.0
  %v2251 = vmax.f32 %v2215, -1.0
  %v2252 = vmax.f32 %v2216, -1.0
  %v2253 = vmax.f32 %v2217, -1.0
  %v2254 = vmax.f32 %v2218, -1.0
  %v2255 = vmax.f32 %v2219, -1.0
  %v2256 = vmax.f32 %v2220, -1.0
  %v2257 = vmax.f32 %v2221, -1.0
  %v2258 = vmax.f32 %v2222, -1.0
  %v2259 = vmax.f32 %v2223, -1.0
  %v2260 = vmax.f32 %v2224, -1.0
  %v2261 = vmax.f32 %v2225, -1.0
  %v2262 = vmax.f32 %v2226, -1.0
  %v2263 = vmax.f32 %v2227, -1.0
  %v2264 = vmax.f32 %v2228, -1.0
  %v2265 = vmax.f32 %v2229, -1.0
  %v2266 = vmax.f32 %v2230, -1.0
  %v2267 = vmax.f32 %v2231, -1.0
  %v2268 = vmax.f32 %v2232, -1.0
  %v2269 = vmax.f32 %v2233, -1.0
  %v2270 = vmax.f32 %v2234, -1.0
  %v2271 = vmax.f32 %v2235, -1.0
  %v2272 = vmax.f32 %v2236, -1.0
  %v2273 = vmin.f32 %v2237, 1.0
  %v2274 = vmin.f32 %v2238, 1.0
  %v2275 = vmin.f32 %v2239, 1.0
  %v2276 = vmin.f32 %v2240, 1.0
  %v2277 = vmin.f32 %v2241, 1.0
  %v2278 = vmin.f32 %v2242, 1.0
  %v2279 = vmin.f32 %v2243, 1.0
  %v2280 = vmin.f32 %v2244, 1.0
  %v2281 = vmin.f32 %v2245, 1.0
  %v2282 = vmin.f32 %v2246, 1.0
  %v2283 = vmin.f32 %v2247, 1.0
  %v2284 = vmin.f32 %v2248, 1.0
  %v2285 = vmin.f32 %v2249, 1.0
  %v2286 = vmin.f32 %v2250, 1.0
  %v2287 = vmin.f32 %v2251, 1.0
  %v2288 = vmin.f32 %v2252, 1.0
  %v2289 = vmin.f32 %v2253, 1.0
  %v2290 = vmin.f32 %v2254, 1.0
  %v2291 = vmin.f32 %v2255, 1.0
  %v2292 = vmin.f32 %v2256, 1.0
  %v2293 = vmin.f32 %v2257, 1.0
  %v2294 = vmin.f32 %v2258, 1.0
  %v2295 = vmin.f32 %v2259, 1.0
  %v2296 = vmin.f32 %v2260, 1.0
  %v2297 = vmin.f32 %v2261, 1.0
  %v2298 = vmin.f32 %v2262, 1.0
  %v2299 = vmin.f32 %v2263, 1.0
  %v2300 = vmin.f32 %v2264, 1.0
  %v2301 = vmin.f32 %v2265, 1.0
  %v2302 = vmin.f32 %v2266, 1.0
  %v2303 = vmin.f32 %v2267, 1.0
  %v2304 = vmin.f32 %v2268, 1.0
  %v2305 = vmin.f32 %v2269, 1.0
  %v2306 = vmin.f32 %v2270, 1.0
  %v2307 = vmin.f32 %v2271, 1.0
  %v2308 = vmin.f32 %v2272, 1.0
  %2309 = vst.msk [vmem:[%s4] sm:$0xff] %vm205, %v2049
  %2310 = vst.msk [vmem:[%s4 + $0x8] sm:$0xff] %vm205, %v2050
  %2311 = vst.msk [vmem:[%s4 + $0x10] sm:$0xff] %vm205, %v2051
  %2312 = vst.msk [vmem:[%s4 + $0x18] sm:$0xff] %vm205, %v2052
  %2313 = vst.msk [vmem:[%s4 + $0x20] sm:$0xff] %vm205, %v2053
  %2314 = vst.msk [vmem:[%s4 + $0x28] sm:$0xff] %vm205, %v2054
  %2315 = vst.msk [vmem:[%s4 + $0x30] sm:$0xff] %vm205, %v2055
  %2316 = vst.msk [vmem:[%s4 + $0x38] sm:$0xff] %vm205, %v2056
  %2317 = vst.msk [vmem:[%s4 + $0x40] sm:$0xff] %vm205, %v2057
  %2318 = vst.msk [vmem:[%s4 + $0x48] sm:$0xff] %vm205, %v2058
  %2319 = vst.msk [vmem:[%s4 + $0x50] sm:$0xff] %vm205, %v2059
  %2320 = vst.msk [vmem:[%s4 + $0x58] sm:$0xff] %vm205, %v2060
  %2321 = vst.msk [vmem:[%s4 + $0x60] sm:$0xff] %vm205, %v2061
  %2322 = vst.msk [vmem:[%s4 + $0x68] sm:$0xff] %vm205, %v2062
  %2323 = vst.msk [vmem:[%s4 + $0x70] sm:$0xff] %vm205, %v2063
  %2324 = vst.msk [vmem:[%s4 + $0x78] sm:$0xff] %vm205, %v2064
  %2325 = vst.msk [vmem:[%s4 + $0x80] sm:$0xff] %vm205, %v2065
  %2326 = vst.msk [vmem:[%s4 + $0x88] sm:$0xff] %vm205, %v2066
  %2327 = vst.msk [vmem:[%s4 + $0x90] sm:$0xff] %vm205, %v2067
  %2328 = vst.msk [vmem:[%s4 + $0x98] sm:$0xff] %vm205, %v2068
  %2329 = vst.msk [vmem:[%s4 + $0xa0] sm:$0xff] %vm205, %v2069
  %2330 = vst.msk [vmem:[%s4 + $0xa8] sm:$0xff] %vm205, %v2070
  %2331 = vst.msk [vmem:[%s4 + $0xb0] sm:$0xff] %vm205, %v2071
  %2332 = vst.msk [vmem:[%s4 + $0xb8] sm:$0xff] %vm205, %v2072
  %2333 = vst.msk [vmem:[%s4 + $0xc0] sm:$0xff] %vm205, %v2073
  %2334 = vst.msk [vmem:[%s4 + $0xc8] sm:$0xff] %vm205, %v2074
  %2335 = vst.msk [vmem:[%s4 + $0xd0] sm:$0xff] %vm205, %v2075
  %2336 = vst.msk [vmem:[%s4 + $0xd8] sm:$0xff] %vm205, %v2076
  %2337 = vst.msk [vmem:[%s4 + $0xe0] sm:$0xff] %vm205, %v2077
  %2338 = vst.msk [vmem:[%s4 + $0xe8] sm:$0xff] %vm205, %v2078
  %2339 = vst.msk [vmem:[%s4 + $0xf0] sm:$0xff] %vm205, %v2079
  %2340 = vst.msk [vmem:[%s4 + $0xf8] sm:$0xff] %vm205, %v2080
  %2341 = vst.msk [vmem:[%s4 + $0x100] sm:$0xff] %vm205, %v2081
  %2342 = vst.msk [vmem:[%s4 + $0x108] sm:$0xff] %vm205, %v2082
  %2343 = vst.msk [vmem:[%s4 + $0x110] sm:$0xff] %vm205, %v2083
  %2344 = vst.msk [vmem:[%s4 + $0x118] sm:$0xff] %vm205, %v2084
  %2381 = vrot.lane.b32.xlu0 %v2273, 16
  %v2382 = vpop.permute.xlu0 %2381
  %2383 = vrot.lane.b32.xlu0 %v2274, 16
  %v2384 = vpop.permute.xlu0 %2383
  %2385 = vrot.lane.b32.xlu0 %v2275, 16
  %v2386 = vpop.permute.xlu0 %2385
  %2387 = vrot.lane.b32.xlu0 %v2276, 16
  %v2388 = vpop.permute.xlu0 %2387
  %2389 = vrot.lane.b32.xlu0 %v2277, 16
  %v2390 = vpop.permute.xlu0 %2389
  %2391 = vrot.lane.b32.xlu0 %v2278, 16
  %v2392 = vpop.permute.xlu0 %2391
  %2393 = vrot.lane.b32.xlu0 %v2279, 16
  %v2394 = vpop.permute.xlu0 %2393
  %2395 = vrot.lane.b32.xlu0 %v2280, 16
  %v2396 = vpop.permute.xlu0 %2395
  %2397 = vrot.lane.b32.xlu0 %v2281, 16
  %v2398 = vpop.permute.xlu0 %2397
  %2399 = vrot.lane.b32.xlu0 %v2282, 16
  %v2400 = vpop.permute.xlu0 %2399
  %2401 = vrot.lane.b32.xlu0 %v2283, 16
  %v2402 = vpop.permute.xlu0 %2401
  %2403 = vrot.lane.b32.xlu0 %v2284, 16
  %v2404 = vpop.permute.xlu0 %2403
  %2405 = vrot.lane.b32.xlu0 %v2285, 16
  %v2406 = vpop.permute.xlu0 %2405
  %2407 = vrot.lane.b32.xlu0 %v2286, 16
  %v2408 = vpop.permute.xlu0 %2407
  %2409 = vrot.lane.b32.xlu0 %v2287, 16
  %v2410 = vpop.permute.xlu0 %2409
  %2411 = vrot.lane.b32.xlu0 %v2288, 16
  %v2412 = vpop.permute.xlu0 %2411
  %2413 = vrot.lane.b32.xlu0 %v2289, 16
  %v2414 = vpop.permute.xlu0 %2413
  %2415 = vrot.lane.b32.xlu0 %v2290, 16
  %v2416 = vpop.permute.xlu0 %2415
  %2417 = vrot.lane.b32.xlu0 %v2291, 16
  %v2418 = vpop.permute.xlu0 %2417
  %2419 = vrot.lane.b32.xlu0 %v2292, 16
  %v2420 = vpop.permute.xlu0 %2419
  %2421 = vrot.lane.b32.xlu0 %v2293, 16
  %v2422 = vpop.permute.xlu0 %2421
  %2423 = vrot.lane.b32.xlu0 %v2294, 16
  %v2424 = vpop.permute.xlu0 %2423
  %2425 = vrot.lane.b32.xlu0 %v2295, 16
  %v2426 = vpop.permute.xlu0 %2425
  %2427 = vrot.lane.b32.xlu0 %v2296, 16
  %v2428 = vpop.permute.xlu0 %2427
  %2429 = vrot.lane.b32.xlu0 %v2297, 16
  %v2430 = vpop.permute.xlu0 %2429
  %2431 = vrot.lane.b32.xlu0 %v2298, 16
  %v2432 = vpop.permute.xlu0 %2431
  %2433 = vrot.lane.b32.xlu0 %v2299, 16
  %v2434 = vpop.permute.xlu0 %2433
  %2435 = vrot.lane.b32.xlu0 %v2300, 16
  %v2436 = vpop.permute.xlu0 %2435
  %2437 = vrot.lane.b32.xlu0 %v2301, 16
  %v2438 = vpop.permute.xlu0 %2437
  %2439 = vrot.lane.b32.xlu0 %v2302, 16
  %v2440 = vpop.permute.xlu0 %2439
  %2441 = vrot.lane.b32.xlu0 %v2303, 16
  %v2442 = vpop.permute.xlu0 %2441
  %2443 = vrot.lane.b32.xlu0 %v2304, 16
  %v2444 = vpop.permute.xlu0 %2443
  %2445 = vrot.lane.b32.xlu0 %v2305, 16
  %v2446 = vpop.permute.xlu0 %2445
  %2447 = vrot.lane.b32.xlu0 %v2306, 16
  %v2448 = vpop.permute.xlu0 %2447
  %2449 = vrot.lane.b32.xlu0 %v2307, 16
  %v2450 = vpop.permute.xlu0 %2449
  %2451 = vrot.lane.b32.xlu0 %v2308, 16
  %v2452 = vpop.permute.xlu0 %2451
  %2489 = vst.msk [vmem:[%s4] sm:$0xff] %vm516, %v2382
  %2490 = vst.msk [vmem:[%s4 + $0x8] sm:$0xff] %vm516, %v2384
  %2491 = vst.msk [vmem:[%s4 + $0x10] sm:$0xff] %vm516, %v2386
  %2492 = vst.msk [vmem:[%s4 + $0x18] sm:$0xff] %vm516, %v2388
  %2493 = vst.msk [vmem:[%s4 + $0x20] sm:$0xff] %vm516, %v2390
  %2494 = vst.msk [vmem:[%s4 + $0x28] sm:$0xff] %vm516, %v2392
  %2495 = vst.msk [vmem:[%s4 + $0x30] sm:$0xff] %vm516, %v2394
  %2496 = vst.msk [vmem:[%s4 + $0x38] sm:$0xff] %vm516, %v2396
  %2497 = vst.msk [vmem:[%s4 + $0x40] sm:$0xff] %vm516, %v2398
  %2498 = vst.msk [vmem:[%s4 + $0x48] sm:$0xff] %vm516, %v2400
  %2499 = vst.msk [vmem:[%s4 + $0x50] sm:$0xff] %vm516, %v2402
  %2500 = vst.msk [vmem:[%s4 + $0x58] sm:$0xff] %vm516, %v2404
  %2501 = vst.msk [vmem:[%s4 + $0x60] sm:$0xff] %vm516, %v2406
  %2502 = vst.msk [vmem:[%s4 + $0x68] sm:$0xff] %vm516, %v2408
  %2503 = vst.msk [vmem:[%s4 + $0x70] sm:$0xff] %vm516, %v2410
  %2504 = vst.msk [vmem:[%s4 + $0x78] sm:$0xff] %vm516, %v2412
  %2505 = vst.msk [vmem:[%s4 + $0x80] sm:$0xff] %vm516, %v2414
  %2506 = vst.msk [vmem:[%s4 + $0x88] sm:$0xff] %vm516, %v2416
  %2507 = vst.msk [vmem:[%s4 + $0x90] sm:$0xff] %vm516, %v2418
  %2508 = vst.msk [vmem:[%s4 + $0x98] sm:$0xff] %vm516, %v2420
  %2509 = vst.msk [vmem:[%s4 + $0xa0] sm:$0xff] %vm516, %v2422
  %2510 = vst.msk [vmem:[%s4 + $0xa8] sm:$0xff] %vm516, %v2424
  %2511 = vst.msk [vmem:[%s4 + $0xb0] sm:$0xff] %vm516, %v2426
  %2512 = vst.msk [vmem:[%s4 + $0xb8] sm:$0xff] %vm516, %v2428
  %2513 = vst.msk [vmem:[%s4 + $0xc0] sm:$0xff] %vm516, %v2430
  %2514 = vst.msk [vmem:[%s4 + $0xc8] sm:$0xff] %vm516, %v2432
  %2515 = vst.msk [vmem:[%s4 + $0xd0] sm:$0xff] %vm516, %v2434
  %2516 = vst.msk [vmem:[%s4 + $0xd8] sm:$0xff] %vm516, %v2436
  %2517 = vst.msk [vmem:[%s4 + $0xe0] sm:$0xff] %vm516, %v2438
  %2518 = vst.msk [vmem:[%s4 + $0xe8] sm:$0xff] %vm516, %v2440
  %2519 = vst.msk [vmem:[%s4 + $0xf0] sm:$0xff] %vm516, %v2442
  %2520 = vst.msk [vmem:[%s4 + $0xf8] sm:$0xff] %vm516, %v2444
  %2521 = vst.msk [vmem:[%s4 + $0x100] sm:$0xff] %vm516, %v2446
  %2522 = vst.msk [vmem:[%s4 + $0x108] sm:$0xff] %vm516, %v2448
  %2523 = vst.msk [vmem:[%s4 + $0x110] sm:$0xff] %vm516, %v2450
  %2524 = vst.msk [vmem:[%s4 + $0x118] sm:$0xff] %vm516, %v2452
  // Predicated region
  $region18: #{encoder_forward.4} parent=0 // pred_check
    _
  $region19: #{encoder_forward.4} parent=0 // pred_check_branch
    %2526 = sbr.rel (0) target = $region21
  $region20: #{encoder_forward.4} parent=0 // pred_region
    _
  $region21: #{encoder_forward.4} parent=0 // pred_fallthru
    _
  // Predicated region
  $region22: #{encoder_forward.4} parent=0 // pred_check
    _
  $region23: #{encoder_forward.4} parent=0 // pred_check_branch
    %2528 = sbr.rel (0) target = $region25
  $region24: #{encoder_forward.4} parent=0 // pred_region
    _
  $region25: #{encoder_forward.4} parent=0 // pred_fallthru
    _

// kernel: encoder_forward.5
$region0: #{encoder_forward.5}
  #allocation0 [shape = 'u32[]', space=smem, size = 0x4, offset = 0x4, fixed_abs, tag = 'smem constant byte address 0x4 - core index']
  #allocation1 [shape = 'u32[144,128]{1,0:T(1,128)}', space=vmem, size = 0x12000, scoped, tag = 'internal scratch']
  #allocation2 [shape = 'f32[2,1600]{1,0:T(2,128)}', space=vmem, size = 0x3400, scoped, tag = 'scratch operand']
  %s0 = inlined_call_operand.vmem [shape: f32[50,288], index: 0, kind: input, shape index: {}]
  %s1 = inlined_call_operand.vmem [shape: bf16[288,64], index: 1, kind: input, shape index: {}]
  %s2 = inlined_call_operand.vmem [shape: f32[1,64], index: 2, kind: input, shape index: {}]
  %s3 = inlined_call_operand.vmem [shape: bf16[1600,256], index: 3, kind: input, shape index: {}]
  %s4 = inlined_call_operand.vmem [shape: f32[1,256], index: 4, kind: input, shape index: {}]
  %s5 = inlined_call_operand.vmem [shape: bf16[256,32], index: 5, kind: input, shape index: {}]
  %s6 = inlined_call_operand.vmem [shape: f32[1,32], index: 6, kind: input, shape index: {}]
  %s7 = inlined_call_operand.vmem [shape: f32[2,32], index: 7, kind: output, shape index: {}]
  %s8 = sld [smem:[#allocation0]]
  $region38: #{encoder_forward.5} parent=0
    _
  %s10 = ssub.s32 1, %s8
  %s11 = scalar_select 0, %s10, %s8
  // Predicated region
  $region2: #{encoder_forward.5} parent=0 // pred_check
    _
  $region3: #{encoder_forward.5} parent=0 // pred_check_branch
    %13 = sbr.rel (0) target = $region5
  $region4: #{encoder_forward.5} parent=0 // pred_region
    _
  $region5: #{encoder_forward.5} parent=0 // pred_fallthru
    _
  // Predicated region
  $region6: #{encoder_forward.5} parent=0 // pred_check
    _
  $region7: #{encoder_forward.5} parent=0 // pred_check_branch
    %15 = sbr.rel (0) target = $region9
  $region8: #{encoder_forward.5} parent=0 // pred_region
    _
  $region9: #{encoder_forward.5} parent=0 // pred_fallthru
    _
  // Predicated region
  $region10: #{encoder_forward.5} parent=0 // pred_check
    _
  $region11: #{encoder_forward.5} parent=0 // pred_check_branch
    %17 = sbr.rel (0) target = $region13
  $region12: #{encoder_forward.5} parent=0 // pred_region
    _
  $region13: #{encoder_forward.5} parent=0 // pred_fallthru
    _
  // Predicated region
  $region14: #{encoder_forward.5} parent=0 // pred_check
    _
  $region15: #{encoder_forward.5} parent=0 // pred_check_branch
    %19 = sbr.rel (0) target = $region17
  $region16: #{encoder_forward.5} parent=0 // pred_region
    _
  $region17: #{encoder_forward.5} parent=0 // pred_fallthru
    _
  // Predicated region
  $region18: #{encoder_forward.5} parent=0 // pred_check
    _
  $region19: #{encoder_forward.5} parent=0 // pred_check_branch
    %21 = sbr.rel (0) target = $region21
  $region20: #{encoder_forward.5} parent=0 // pred_region
    _
  $region21: #{encoder_forward.5} parent=0 // pred_fallthru
    _
  // Predicated region
  $region22: #{encoder_forward.5} parent=0 // pred_check
    _
  $region23: #{encoder_forward.5} parent=0 // pred_check_branch
    %23 = sbr.rel (0) target = $region25
  $region24: #{encoder_forward.5} parent=0 // pred_region
    _
  $region25: #{encoder_forward.5} parent=0 // pred_fallthru
    _
  // Predicated region
  $region26: #{encoder_forward.5} parent=0 // pred_check
    _
  $region27: #{encoder_forward.5} parent=0 // pred_check_branch
    %25 = sbr.rel (0) target = $region29
  $region28: #{encoder_forward.5} parent=0 // pred_region
    _
  $region29: #{encoder_forward.5} parent=0 // pred_fallthru
    _
  %v27 = vld [vmem:[%s0] sm:$0xff]
  %v28 = vld [vmem:[%s0 + $0x8] sm:$0xff]
  %v29 = vld [vmem:[%s0 + $0x10] sm:$0xff]
  %v30 = vld [vmem:[%s0 + $0x18] sm:$0xff]
  %v31 = vld [vmem:[%s0 + $0x20] sm:$0xff]
  %v32 = vld [vmem:[%s0 + $0x28] sm:$0xff]
  %v33 = vld [vmem:[%s0 + $0x30] sm:$0xff]
  %v34 = vld [vmem:[%s0 + $0x38] sm:$0xff]
  %v35 = vld [vmem:[%s0 + $0x40] sm:$0xff]
  %v36 = vld [vmem:[%s0 + $0x48] sm:$0xff]
  %v37 = vld [vmem:[%s0 + $0x50] sm:$0xff]
  %v38 = vld [vmem:[%s0 + $0x58] sm:$0xff]
  %v39 = vld [vmem:[%s0 + $0x60] sm:$0xff]
  %v40 = vld [vmem:[%s0 + $0x68] sm:$0xff]
  %v41 = vld [vmem:[%s0 + $0x70] sm:$0xff]
  %v42 = vld [vmem:[%s0 + $0x78] sm:$0xff]
  %v43 = vld [vmem:[%s0 + $0x80] sm:$0xff]
  %v44 = vld [vmem:[%s0 + $0x88] sm:$0xff]
  %v45 = vld [vmem:[%s0 + $0x90] sm:$0x3]
  %v46 = vld [vmem:[%s0 + $0x98] sm:$0x3]
  %v47 = vld [vmem:[%s0 + $0xa0] sm:$0x3]
  %v48 = vld [vmem:[%s1] sm:$0xf]
  %v49 = vld [vmem:[%s1 + $0x4] sm:$0xf]
  %v50 = vld [vmem:[%s1 + $0x8] sm:$0xf]
  %v51 = vld [vmem:[%s1 + $0xc] sm:$0xf]
  %v52 = vld [vmem:[%s1 + $0x10] sm:$0xf]
  %v53 = vld [vmem:[%s1 + $0x14] sm:$0xf]
  %v54 = vld [vmem:[%s1 + $0x18] sm:$0xf]
  %v55 = vld [vmem:[%s1 + $0x1c] sm:$0xf]
  %v56 = vld [vmem:[%s1 + $0x20] sm:$0xf]
  %v57 = vld [vmem:[%s1 + $0x24] sm:$0xf]
  %v58 = vld [vmem:[%s1 + $0x28] sm:$0xf]
  %v59 = vld [vmem:[%s1 + $0x2c] sm:$0xf]
  %v60 = vld [vmem:[%s1 + $0x30] sm:$0xf]
  %v61 = vld [vmem:[%s1 + $0x34] sm:$0xf]
  %v62 = vld [vmem:[%s1 + $0x38] sm:$0xf]
  %v63 = vld [vmem:[%s1 + $0x3c] sm:$0xf]
  %v64 = vld [vmem:[%s1 + $0x40] sm:$0xf]
  %v65 = vld [vmem:[%s1 + $0x44] sm:$0xf]
  %v66 = vld [vmem:[%s1 + $0x48] sm:$0xf]
  %v67 = vld [vmem:[%s1 + $0x4c] sm:$0xf]
  %v68 = vld [vmem:[%s1 + $0x50] sm:$0xf]
  %v69 = vld [vmem:[%s1 + $0x54] sm:$0xf]
  %v70 = vld [vmem:[%s1 + $0x58] sm:$0xf]
  %v71 = vld [vmem:[%s1 + $0x5c] sm:$0xf]
  %v72 = vld [vmem:[%s1 + $0x60] sm:$0xf]
  %v73 = vld [vmem:[%s1 + $0x64] sm:$0xf]
  %v74 = vld [vmem:[%s1 + $0x68] sm:$0xf]
  %v75 = vld [vmem:[%s1 + $0x6c] sm:$0xf]
  %v76 = vld [vmem:[%s1 + $0x70] sm:$0xf]
  %v77 = vld [vmem:[%s1 + $0x74] sm:$0xf]
  %v78 = vld [vmem:[%s1 + $0x78] sm:$0xf]
  %v79 = vld [vmem:[%s1 + $0x7c] sm:$0xf]
  %v80 = vld [vmem:[%s1 + $0x80] sm:$0xf]
  %v81 = vld [vmem:[%s1 + $0x84] sm:$0xf]
  %v82 = vld [vmem:[%s1 + $0x88] sm:$0xf]
  %v83 = vld [vmem:[%s1 + $0x8c] sm:$0xf]
  %v84 = vpack.c.bf16 %v30, %v27
  %v85 = vpack.c.bf16 %v31, %v28
  %v86 = vpack.c.bf16 %v32, %v29
  %v87 = vpack.c.bf16 %v36, %v33
  %v88 = vpack.c.bf16 %v37, %v34
  %v89 = vpack.c.bf16 %v38, %v35
  %v90 = vpack.c.bf16 %v42, %v39
  %v91 = vpack.c.bf16 %v43, %v40
  %v92 = vpack.c.bf16 %v44, %v41
  %v93 = vpack.c.bf16 %v45, %v45
  %v94 = vpack.c.bf16 %v46, %v46
  %v95 = vpack.c.bf16 %v47, %v47
  %v96 = vld [vmem:[%s2] sm:$0x1]
  %v98 = vlaneseq
  %v99 = vshrl.u32 %v98, 7
  %v100 = vsub.s32 0, %v99
  %v101 = vrot.slane %v96, %v100
  %v139 = vunpack.c.l.b16 %v48
  %v140 = vunpack.c.l.b16 %v49
  %v141 = vunpack.c.l.b16 %v50
  %v142 = vunpack.c.l.b16 %v51
  %v143 = vunpack.c.l.b16 %v52
  %v144 = vunpack.c.l.b16 %v53
  %v145 = vunpack.c.l.b16 %v54
  %v146 = vunpack.c.l.b16 %v55
  %v147 = vunpack.c.l.b16 %v56
  %v148 = vunpack.c.l.b16 %v57
  %v149 = vunpack.c.l.b16 %v58
  %v150 = vunpack.c.l.b16 %v59
  %v151 = vunpack.c.l.b16 %v60
  %v152 = vunpack.c.l.b16 %v61
  %v153 = vunpack.c.l.b16 %v62
  %v154 = vunpack.c.l.b16 %v63
  %v155 = vunpack.c.l.b16 %v64
  %v156 = vunpack.c.l.b16 %v65
  %v157 = vunpack.c.l.b16 %v66
  %v158 = vunpack.c.l.b16 %v67
  %v159 = vunpack.c.l.b16 %v68
  %v160 = vunpack.c.l.b16 %v69
  %v161 = vunpack.c.l.b16 %v70
  %v162 = vunpack.c.l.b16 %v71
  %v163 = vunpack.c.l.b16 %v72
  %v164 = vunpack.c.l.b16 %v73
  %v165 = vunpack.c.l.b16 %v74
  %v166 = vunpack.c.l.b16 %v75
  %v167 = vunpack.c.l.b16 %v76
  %v168 = vunpack.c.l.b16 %v77
  %v169 = vunpack.c.l.b16 %v78
  %v170 = vunpack.c.l.b16 %v79
  %v171 = vunpack.c.l.b16 %v80
  %v172 = vunpack.c.l.b16 %v81
  %v173 = vunpack.c.l.b16 %v82
  %v174 = vunpack.c.l.b16 %v83
  %v175 = vpack.c.b16 %v140, %v139
  %v176 = vpack.c.b16 %v142, %v141
  %v177 = vpack.c.b16 %v144, %v143
  %v178 = vpack.c.b16 %v146, %v145
  %v179 = vpack.c.b16 %v148, %v147
  %v180 = vpack.c.b16 %v150, %v149
  %v181 = vpack.c.b16 %v152, %v151
  %v182 = vpack.c.b16 %v154, %v153
  %v183 = vpack.c.b16 %v156, %v155
  %v184 = vpack.c.b16 %v158, %v157
  %v185 = vpack.c.b16 %v160, %v159
  %v186 = vpack.c.b16 %v162, %v161
  %v187 = vpack.c.b16 %v164, %v163
  %v188 = vpack.c.b16 %v166, %v165
  %v189 = vpack.c.b16 %v168, %v167
  %v190 = vpack.c.b16 %v170, %v169
  %v191 = vpack.c.b16 %v172, %v171
  %v192 = vpack.c.b16 %v174, %v173
  %vm211 = vcmask 261120
  %v213 = vsel %vm211, %v86, 0
  %v216 = vsel %vm211, %v89, 0
  %v219 = vsel %vm211, %v92, 0
  %v222 = vsel %vm211, %v95, 0
  %224 = vmatprep.subr.bf16.mxu0 0
  %225 = vmatpush1.bf16.msra.mxu0 %v175
  %226 = vmatprep.subr.bf16.mxu0 0
  %227 = vmatpush1.bf16.msra.mxu0 %v176
  %228 = vmatprep.subr.bf16.mxu0 0
  %229 = vmatpush1.bf16.msra.mxu0 %v177
  %230 = vmatprep.subr.bf16.mxu0 0
  %231 = vmatpush1.bf16.msra.mxu0 %v178
  %232 = vmatprep.subr.bf16.mxu0 0
  %233 = vmatpush1.bf16.msra.mxu0 %v179
  %234 = vmatprep.subr.bf16.mxu0 0
  %235 = vmatpush1.bf16.msra.mxu0 %v180
  %236 = vmatprep.subr.bf16.mxu0 0
  %237 = vmatpush1.bf16.msra.mxu0 %v181
  %238 = vmatprep.subr.bf16.mxu0 0
  %239 = vmatpush1.bf16.msra.mxu0 %v182
  %240 = vmatprep.subr.bf16.mxu0 0
  %241 = vmatpush1.bf16.msra.mxu0 %v183
  %242 = vmatprep.subr.bf16.mxu0 0
  %243 = vmatpush1.bf16.msra.mxu0 %v184
  %244 = vmatprep.subr.bf16.mxu0 0
  %245 = vmatpush1.bf16.msra.mxu0 %v185
  %246 = vmatprep.subr.bf16.mxu0 0
  %247 = vmatpush1.bf16.msra.mxu0 %v186
  %248 = vmatprep.subr.bf16.mxu0 0
  %249 = vmatpush1.bf16.msra.mxu0 %v187
  %250 = vmatprep.subr.bf16.mxu0 0
  %251 = vmatpush1.bf16.msra.mxu0 %v188
  %252 = vmatprep.subr.bf16.mxu0 0
  %253 = vmatpush1.bf16.msra.mxu0 %v189
  %254 = vmatprep.subr.bf16.mxu0 0
  %255 = vmatpush1.bf16.msra.mxu0 %v190
  %256 = vmatprep.mubr.bf16.mxu0 %v85
  %257 = vmatmul.mubr.bf16.gmra.mrb[0].mxu0 %v84
  %v258 = vpop.f32.mrb[0].mxu0
  %v259 = vadd.f32 %v101, %v258
  %v260 = vpop.f32.mrb[0].mxu0
  %v261 = vpop.f32.mrb[0].mxu0
  %v262 = vadd.f32 %v101, %v261
  %v263 = vpop.f32.mrb[0].mxu0
  %264 = vmatprep.mubr.bf16.mxu0 %v88
  %265 = vmatmul.mubr.bf16.gmra.mrb[0].mxu0 %v87
  %v266 = vpop.f32.mrb[0].mxu0
  %v267 = vadd.f32 %v101, %v266
  %v268 = vpop.f32.mrb[0].mxu0
  %v269 = vpop.f32.mrb[0].mxu0
  %v270 = vadd.f32 %v101, %v269
  %v271 = vpop.f32.mrb[0].mxu0
  %272 = vmatprep.mubr.bf16.mxu0 %v91
  %273 = vmatmul.mubr.bf16.gmra.mrb[0].mxu0 %v90
  %v274 = vpop.f32.mrb[0].mxu0
  %v275 = vadd.f32 %v101, %v274
  %v276 = vpop.f32.mrb[0].mxu0
  %v277 = vpop.f32.mrb[0].mxu0
  %v278 = vadd.f32 %v101, %v277
  %v279 = vpop.f32.mrb[0].mxu0
  %280 = vmatprep.mubr.bf16.mxu0 %v94
  %281 = vmatmul.mubr.bf16.gmra.mrb[0].mxu0 %v93
  %v282 = vpop.f32.mrb[0].mxu0
  %v283 = vadd.f32 %v101, %v282
  %v284 = vpop.f32.mrb[0].mxu0
  %v285 = vpop.f32.mrb[0].mxu0
  %v286 = vpop.f32.mrb[0].mxu0
  %287 = vdwg.mxu0
  %288 = vmatprep.subr.bf16.mxu0 0
  %289 = vmatpush1.bf16.msra.mxu0 %v191
  %290 = vmatprep.subr.bf16.mxu0 0
  %291 = vmatpush1.bf16.msra.mxu0 %v192
  %292 = vmatprep.subr.bf16.mxu0 0
  %293 = vmatpush1.bf16.msra.mxu0 0
  %294 = vmatprep.subr.bf16.mxu0 0
  %295 = vmatpush1.bf16.msra.mxu0 0
  %296 = vmatprep.subr.bf16.mxu0 0
  %297 = vmatpush1.bf16.msra.mxu0 0
  %298 = vmatprep.subr.bf16.mxu0 0
  %299 = vmatpush1.bf16.msra.mxu0 0
  %300 = vmatprep.subr.bf16.mxu0 0
  %301 = vmatpush1.bf16.msra.mxu0 0
  %302 = vmatprep.subr.bf16.mxu0 0
  %303 = vmatpush1.bf16.msra.mxu0 0
  %304 = vmatprep.subr.bf16.mxu0 0
  %305 = vmatpush1.bf16.msra.mxu0 0
  %306 = vmatprep.subr.bf16.mxu0 0
  %307 = vmatpush1.bf16.msra.mxu0 0
  %308 = vmatprep.subr.bf16.mxu0 0
  %309 = vmatpush1.bf16.msra.mxu0 0
  %310 = vmatprep.subr.bf16.mxu0 0
  %311 = vmatpush1.bf16.msra.mxu0 0
  %312 = vmatprep.subr.bf16.mxu0 0
  %313 = vmatpush1.bf16.msra.mxu0 0
  %314 = vmatprep.subr.bf16.mxu0 0
  %315 = vmatpush1.bf16.msra.mxu0 0
  %316 = vmatprep.subr.bf16.mxu0 0
  %317 = vmatpush1.bf16.msra.mxu0 0
  %318 = vmatprep.subr.bf16.mxu0 0
  %319 = vmatpush1.bf16.msra.mxu0 0
  %320 = vmatprep.mubr.bf16.mxu0 0
  %321 = vmatmul.mubr.bf16.gmra.mrb[0].mxu0 %v213
  %v322 = vpop.f32.mrb[0].mxu0
  %v323 = vadd.f32 %v259, %v322
  %v324 = vpop.f32.mrb[0].mxu0
  %v325 = vpop.f32.mrb[0].mxu0
  %v326 = vadd.f32 %v262, %v325
  %v327 = vpop.f32.mrb[0].mxu0
  %328 = vmatprep.mubr.bf16.mxu0 0
  %329 = vmatmul.mubr.bf16.gmra.mrb[0].mxu0 %v216
  %v330 = vpop.f32.mrb[0].mxu0
  %v331 = vadd.f32 %v267, %v330
  %v332 = vpop.f32.mrb[0].mxu0
  %v333 = vpop.f32.mrb[0].mxu0
  %v334 = vadd.f32 %v270, %v333
  %v335 = vpop.f32.mrb[0].mxu0
  %336 = vmatprep.mubr.bf16.mxu0 0
  %337 = vmatmul.mubr.bf16.gmra.mrb[0].mxu0 %v219
  %v338 = vpop.f32.mrb[0].mxu0
  %v339 = vadd.f32 %v275, %v338
  %v340 = vpop.f32.mrb[0].mxu0
  %v341 = vpop.f32.mrb[0].mxu0
  %v342 = vadd.f32 %v278, %v341
  %v343 = vpop.f32.mrb[0].mxu0
  %344 = vmatprep.mubr.bf16.mxu0 0
  %345 = vmatmul.mubr.bf16.gmra.mrb[0].mxu0 %v222
  %v346 = vpop.f32.mrb[0].mxu0
  %v347 = vadd.f32 %v283, %v346
  %v348 = vpop.f32.mrb[0].mxu0
  %v349 = vpop.f32.mrb[0].mxu0
  %v350 = vpop.f32.mrb[0].mxu0
  %351 = vdwg.mxu0
  %v352 = vmax.f32 %v323, -1.0
  %v353 = vmax.f32 %v326, -1.0
  %v354 = vmax.f32 %v331, -1.0
  %v355 = vmax.f32 %v334, -1.0
  %v356 = vmax.f32 %v339, -1.0
  %v357 = vmax.f32 %v342, -1.0
  %v358 = vmax.f32 %v347, -1.0
  %v359 = vmin.f32 %v352, 1.0
  %v360 = vmin.f32 %v353, 1.0
  %v361 = vmin.f32 %v354, 1.0
  %v362 = vmin.f32 %v355, 1.0
  %v363 = vmin.f32 %v356, 1.0
  %v364 = vmin.f32 %v357, 1.0
  %v365 = vmin.f32 %v358, 1.0
  %vm366 = vcmask 254976
  %367 = vst.msk [vmem:[#allocation2] sm:$0x3] %vm366, %v359
  %vm368 = vcmask 517376
  %369 = vst.msk [vmem:[#allocation2 + $0xc] sm:$0x3] %vm368, %v359
  %v372 = vunpack.c.l.s4 1983009808
  %v373 = vunpack.c.0.s8 %v372
  %v374 = vlaneseq
  %v375 = vshrl.u32 %v374, 7
  %v376 = vsub.s32 %v373, %v375
  %v377 = vrot.slane %v359, %v376
  %v378 = vcombine.high %v377, %v377
  %379 = vrot.lane.b32.xlu0 %v378, 32
  %v380 = vpop.permute.xlu0 %379
  %382 = vst.msk [vmem:[#allocation2] sm:$0x3] %vm368, %v380
  %vm383 = vcmask 779776
  %384 = vst.msk [vmem:[#allocation2 + $0xc] sm:$0x3] %vm383, %v380
  %v385 = vcombine.high %v359, %v359
  %v387 = vunpack.c.l.s4 1983009808
  %v388 = vunpack.c.0.s8 %v387
  %v389 = vlaneseq
  %v390 = vshrl.u32 %v389, 7
  %v391 = vsub.s32 %v388, %v390
  %v392 = vrot.slane %v385, %v391
  %393 = vrot.lane.b32.xlu0 %v392, 64
  %v394 = vpop.permute.xlu0 %393
  %396 = vst.msk [vmem:[#allocation2] sm:$0x3] %vm383, %v394
  %vm397 = vcmask 1042176
  %398 = vst.msk [vmem:[#allocation2 + $0xc] sm:$0x3] %vm397, %v394
  %v399 = vcombine.high %v392, %v392
  %400 = vrot.lane.b32.xlu0 %v399, 96
  %v401 = vpop.permute.xlu0 %400
  %403 = vst.msk [vmem:[#allocation2] sm:$0x3] %vm397, %v401
  %404 = vst.msk [vmem:[#allocation2 + $0xe] sm:$0x3] %vm366, %v401
  %405 = vst.msk [vmem:[#allocation2 + $0x2] sm:$0x3] %vm366, %v360
  %406 = vst.msk [vmem:[#allocation2 + $0xe] sm:$0x3] %vm368, %v360
  %v409 = vunpack.c.l.s4 1983009808
  %v410 = vunpack.c.0.s8 %v409
  %v411 = vlaneseq
  %v412 = vshrl.u32 %v411, 7
  %v413 = vsub.s32 %v410, %v412
  %v414 = vrot.slane %v360, %v413
  %v415 = vcombine.high %v414, %v414
  %416 = vrot.lane.b32.xlu0 %v415, 32
  %v417 = vpop.permute.xlu0 %416
  %419 = vst.msk [vmem:[#allocation2 + $0x2] sm:$0x3] %vm368, %v417
  %420 = vst.msk [vmem:[#allocation2 + $0xe] sm:$0x3] %vm383, %v417
  %v421 = vcombine.high %v360, %v360
  %v423 = vunpack.c.l.s4 1983009808
  %v424 = vunpack.c.0.s8 %v423
  %v425 = vlaneseq
  %v426 = vshrl.u32 %v425, 7
  %v427 = vsub.s32 %v424, %v426
  %v428 = vrot.slane %v421, %v427
  %429 = vrot.lane.b32.xlu0 %v428, 64
  %v430 = vpop.permute.xlu0 %429
  %432 = vst.msk [vmem:[#allocation2 + $0x2] sm:$0x3] %vm383, %v430
  %433 = vst.msk [vmem:[#allocation2 + $0xe] sm:$0x3] %vm397, %v430
  %v434 = vcombine.high %v428, %v428
  %435 = vrot.lane.b32.xlu0 %v434, 96
  %v436 = vpop.permute.xlu0 %435
  %438 = vst.msk [vmem:[#allocation2 + $0x2] sm:$0x3] %vm397, %v436
  %439 = vst.msk [vmem:[#allocation2 + $0x10] sm:$0x3] %vm366, %v436
  %440 = vst.msk [vmem:[#allocation2 + $0x4] sm:$0x3] %vm366, %v361
  %441 = vst.msk [vmem:[#allocation2 + $0x10] sm:$0x3] %vm368, %v361
  %v444 = vunpack.c.l.s4 1983009808
  %v445 = vunpack.c.0.s8 %v444
  %v446 = vlaneseq
  %v447 = vshrl.u32 %v446, 7
  %v448 = vsub.s32 %v445, %v447
  %v449 = vrot.slane %v361, %v448
  %v450 = vcombine.high %v449, %v449
  %451 = vrot.lane.b32.xlu0 %v450, 32
  %v452 = vpop.permute.xlu0 %451
  %454 = vst.msk [vmem:[#allocation2 + $0x4] sm:$0x3] %vm368, %v452
  %455 = vst.msk [vmem:[#allocation2 + $0x10] sm:$0x3] %vm383, %v452
  %v456 = vcombine.high %v361, %v361
  %v458 = vunpack.c.l.s4 1983009808
  %v459 = vunpack.c.0.s8 %v458
  %v460 = vlaneseq
  %v461 = vshrl.u32 %v460, 7
  %v462 = vsub.s32 %v459, %v461
  %v463 = vrot.slane %v456, %v462
  %464 = vrot.lane.b32.xlu0 %v463, 64
  %v465 = vpop.permute.xlu0 %464
  %467 = vst.msk [vmem:[#allocation2 + $0x4] sm:$0x3] %vm383, %v465
  %468 = vst.msk [vmem:[#allocation2 + $0x10] sm:$0x3] %vm397, %v465
  %v469 = vcombine.high %v463, %v463
  %470 = vrot.lane.b32.xlu0 %v469, 96
  %v471 = vpop.permute.xlu0 %470
  %473 = vst.msk [vmem:[#allocation2 + $0x4] sm:$0x3] %vm397, %v471
  %474 = vst.msk [vmem:[#allocation2 + $0x12] sm:$0x3] %vm366, %v471
  %475 = vst.msk [vmem:[#allocation2 + $0x6] sm:$0x3] %vm366, %v362
  %476 = vst.msk [vmem:[#allocation2 + $0x12] sm:$0x3] %vm368, %v362
  %v479 = vunpack.c.l.s4 1983009808
  %v480 = vunpack.c.0.s8 %v479
  %v481 = vlaneseq
  %v482 = vshrl.u32 %v481, 7
  %v483 = vsub.s32 %v480, %v482
  %v484 = vrot.slane %v362, %v483
  %v485 = vcombine.high %v484, %v484
  %486 = vrot.lane.b32.xlu0 %v485, 32
  %v487 = vpop.permute.xlu0 %486
  %489 = vst.msk [vmem:[#allocation2 + $0x6] sm:$0x3] %vm368, %v487
  %490 = vst.msk [vmem:[#allocation2 + $0x12] sm:$0x3] %vm383, %v487
  %v491 = vcombine.high %v362, %v362
  %v493 = vunpack.c.l.s4 1983009808
  %v494 = vunpack.c.0.s8 %v493
  %v495 = vlaneseq
  %v496 = vshrl.u32 %v495, 7
  %v497 = vsub.s32 %v494, %v496
  %v498 = vrot.slane %v491, %v497
  %499 = vrot.lane.b32.xlu0 %v498, 64
  %v500 = vpop.permute.xlu0 %499
  %502 = vst.msk [vmem:[#allocation2 + $0x6] sm:$0x3] %vm383, %v500
  %503 = vst.msk [vmem:[#allocation2 + $0x12] sm:$0x3] %vm397, %v500
  %v504 = vcombine.high %v498, %v498
  %505 = vrot.lane.b32.xlu0 %v504, 96
  %v506 = vpop.permute.xlu0 %505
  %508 = vst.msk [vmem:[#allocation2 + $0x6] sm:$0x3] %vm397, %v506
  %509 = vst.msk [vmem:[#allocation2 + $0x14] sm:$0x3] %vm366, %v506
  %510 = vst.msk [vmem:[#allocation2 + $0x8] sm:$0x3] %vm366, %v363
  %511 = vst.msk [vmem:[#allocation2 + $0x14] sm:$0x3] %vm368, %v363
  %v514 = vunpack.c.l.s4 1983009808
  %v515 = vunpack.c.0.s8 %v514
  %v516 = vlaneseq
  %v517 = vshrl.u32 %v516, 7
  %v518 = vsub.s32 %v515, %v517
  %v519 = vrot.slane %v363, %v518
  %v520 = vcombine.high %v519, %v519
  %521 = vrot.lane.b32.xlu0 %v520, 32
  %v522 = vpop.permute.xlu0 %521
  %524 = vst.msk [vmem:[#allocation2 + $0x8] sm:$0x3] %vm368, %v522
  %525 = vst.msk [vmem:[#allocation2 + $0x14] sm:$0x3] %vm383, %v522
  %v526 = vcombine.high %v363, %v363
  %v528 = vunpack.c.l.s4 1983009808
  %v529 = vunpack.c.0.s8 %v528
  %v530 = vlaneseq
  %v531 = vshrl.u32 %v530, 7
  %v532 = vsub.s32 %v529, %v531
  %v533 = vrot.slane %v526, %v532
  %534 = vrot.lane.b32.xlu0 %v533, 64
  %v535 = vpop.permute.xlu0 %534
  %537 = vst.msk [vmem:[#allocation2 + $0x8] sm:$0x3] %vm383, %v535
  %538 = vst.msk [vmem:[#allocation2 + $0x14] sm:$0x3] %vm397, %v535
  %v539 = vcombine.high %v533, %v533
  %540 = vrot.lane.b32.xlu0 %v539, 96
  %v541 = vpop.permute.xlu0 %540
  %543 = vst.msk [vmem:[#allocation2 + $0x8] sm:$0x3] %vm397, %v541
  %544 = vst.msk [vmem:[#allocation2 + $0x16] sm:$0x3] %vm366, %v541
  %545 = vst.msk [vmem:[#allocation2 + $0xa] sm:$0x3] %vm366, %v364
  %546 = vst.msk [vmem:[#allocation2 + $0x16] sm:$0x3] %vm368, %v364
  %v549 = vunpack.c.l.s4 1983009808
  %v550 = vunpack.c.0.s8 %v549
  %v551 = vlaneseq
  %v552 = vshrl.u32 %v551, 7
  %v553 = vsub.s32 %v550, %v552
  %v554 = vrot.slane %v364, %v553
  %v555 = vcombine.high %v554, %v554
  %556 = vrot.lane.b32.xlu0 %v555, 32
  %v557 = vpop.permute.xlu0 %556
  %559 = vst.msk [vmem:[#allocation2 + $0xa] sm:$0x3] %vm368, %v557
  %560 = vst.msk [vmem:[#allocation2 + $0x16] sm:$0x3] %vm383, %v557
  %v561 = vcombine.high %v364, %v364
  %v563 = vunpack.c.l.s4 1983009808
  %v564 = vunpack.c.0.s8 %v563
  %v565 = vlaneseq
  %v566 = vshrl.u32 %v565, 7
  %v567 = vsub.s32 %v564, %v566
  %v568 = vrot.slane %v561, %v567
  %569 = vrot.lane.b32.xlu0 %v568, 64
  %v570 = vpop.permute.xlu0 %569
  %572 = vst.msk [vmem:[#allocation2 + $0xa] sm:$0x3] %vm383, %v570
  %573 = vst.msk [vmem:[#allocation2 + $0x16] sm:$0x3] %vm397, %v570
  %v574 = vcombine.high %v568, %v568
  %575 = vrot.lane.b32.xlu0 %v574, 96
  %v576 = vpop.permute.xlu0 %575
  %578 = vst.msk [vmem:[#allocation2 + $0xa] sm:$0x3] %vm397, %v576
  %579 = vst.msk [vmem:[#allocation2 + $0x18] sm:$0x3] %vm366, %v576
  %580 = vst.msk [vmem:[#allocation2 + $0xc] sm:$0x3] %vm366, %v365
  %581 = vst.msk [vmem:[#allocation2 + $0x18] sm:$0x3] %vm368, %v365
  %v582 = vld [vmem:[#allocation2] sm:$0xff]
  %v583 = vld [vmem:[#allocation2 + $0x8] sm:$0xff]
  %v584 = vld [vmem:[#allocation2 + $0x10] sm:$0xff]
  %v585 = vld [vmem:[#allocation2 + $0x18] sm:$0x3]
  %v586 = vld [vmem:[%s3] sm:$0xff]
  %v587 = vld [vmem:[%s3 + $0x8] sm:$0xff]
  %v588 = vld [vmem:[%s3 + $0x10] sm:$0xff]
  %v589 = vld [vmem:[%s3 + $0x18] sm:$0xff]
  %v590 = vld [vmem:[%s3 + $0x20] sm:$0xff]
  %v591 = vld [vmem:[%s3 + $0x28] sm:$0xff]
  %v592 = vld [vmem:[%s3 + $0x30] sm:$0xff]
  %v593 = vld [vmem:[%s3 + $0x38] sm:$0xff]
  %v594 = vld [vmem:[%s3 + $0x40] sm:$0xff]
  %v595 = vld [vmem:[%s3 + $0x48] sm:$0xff]
  %v596 = vld [vmem:[%s3 + $0x50] sm:$0xff]
  %v597 = vld [vmem:[%s3 + $0x58] sm:$0xff]
  %v598 = vld [vmem:[%s3 + $0x60] sm:$0xff]
  %v599 = vld [vmem:[%s3 + $0x68] sm:$0xff]
  %v600 = vld [vmem:[%s3 + $0x70] sm:$0xff]
  %v601 = vld [vmem:[%s3 + $0x78] sm:$0xff]
  %v602 = vld [vmem:[%s3 + $0x80] sm:$0xff]
  %v603 = vld [vmem:[%s3 + $0x88] sm:$0xff]
  %v604 = vld [vmem:[%s3 + $0x90] sm:$0xff]
  %v605 = vld [vmem:[%s3 + $0x98] sm:$0xff]
  %v606 = vld [vmem:[%s3 + $0xa0] sm:$0xff]
  %v607 = vld [vmem:[%s3 + $0xa8] sm:$0xff]
  %v608 = vld [vmem:[%s3 + $0xb0] sm:$0xff]
  %v609 = vld [vmem:[%s3 + $0xb8] sm:$0xff]
  %v610 = vld [vmem:[%s3 + $0xc0] sm:$0xff]
  %v611 = vld [vmem:[%s3 + $0xc8] sm:$0xff]
  %v612 = vld [vmem:[%s3 + $0xd0] sm:$0xff]
  %v613 = vld [vmem:[%s3 + $0xd8] sm:$0xff]
  %v614 = vld [vmem:[%s3 + $0xe0] sm:$0xff]
  %v615 = vld [vmem:[%s3 + $0xe8] sm:$0xff]
  %v616 = vld [vmem:[%s3 + $0xf0] sm:$0xff]
  %v617 = vld [vmem:[%s3 + $0xf8] sm:$0xff]
  %v618 = vld [vmem:[%s3 + $0x100] sm:$0xff]
  %v619 = vld [vmem:[%s3 + $0x108] sm:$0xff]
  %v620 = vld [vmem:[%s3 + $0x110] sm:$0xff]
  %v621 = vld [vmem:[%s3 + $0x118] sm:$0xff]
  %v622 = vld [vmem:[%s3 + $0x120] sm:$0xff]
  %v623 = vld [vmem:[%s3 + $0x128] sm:$0xff]
  %v624 = vld [vmem:[%s3 + $0x130] sm:$0xff]
  %v625 = vld [vmem:[%s3 + $0x138] sm:$0xff]
  %v626 = vld [vmem:[%s3 + $0x140] sm:$0xff]
  %v627 = vld [vmem:[%s3 + $0x148] sm:$0xff]
  %v628 = vld [vmem:[%s3 + $0x150] sm:$0xff]
  %v629 = vld [vmem:[%s3 + $0x158] sm:$0xff]
  %v630 = vld [vmem:[%s3 + $0x160] sm:$0xff]
  %v631 = vld [vmem:[%s3 + $0x168] sm:$0xff]
  %v632 = vld [vmem:[%s3 + $0x170] sm:$0xff]
  %v633 = vld [vmem:[%s3 + $0x178] sm:$0xff]
  %v634 = vld [vmem:[%s3 + $0x180] sm:$0xff]
  %v635 = vld [vmem:[%s3 + $0x188] sm:$0xff]
  %v636 = vld [vmem:[%s3 + $0x190] sm:$0xff]
  %v637 = vld [vmem:[%s3 + $0x198] sm:$0xff]
  %v638 = vld [vmem:[%s3 + $0x1a0] sm:$0xff]
  %v639 = vld [vmem:[%s3 + $0x1a8] sm:$0xff]
  %v640 = vld [vmem:[%s3 + $0x1b0] sm:$0xff]
  %v641 = vld [vmem:[%s3 + $0x1b8] sm:$0xff]
  %v642 = vld [vmem:[%s3 + $0x1c0] sm:$0xff]
  %v643 = vld [vmem:[%s3 + $0x1c8] sm:$0xff]
  %v644 = vld [vmem:[%s3 + $0x1d0] sm:$0xff]
  %v645 = vld [vmem:[%s3 + $0x1d8] sm:$0xff]
  %v646 = vld [vmem:[%s3 + $0x1e0] sm:$0xff]
  %v647 = vld [vmem:[%s3 + $0x1e8] sm:$0xff]
  %v648 = vld [vmem:[%s3 + $0x1f0] sm:$0xff]
  %v649 = vld [vmem:[%s3 + $0x1f8] sm:$0xff]
  %v650 = vld [vmem:[%s3 + $0x200] sm:$0xff]
  %v651 = vld [vmem:[%s3 + $0x208] sm:$0xff]
  %v652 = vld [vmem:[%s3 + $0x210] sm:$0xff]
  %v653 = vld [vmem:[%s3 + $0x218] sm:$0xff]
  %v654 = vld [vmem:[%s3 + $0x220] sm:$0xff]
  %v655 = vld [vmem:[%s3 + $0x228] sm:$0xff]
  %v656 = vld [vmem:[%s3 + $0x230] sm:$0xff]
  %v657 = vld [vmem:[%s3 + $0x238] sm:$0xff]
  %v658 = vld [vmem:[%s3 + $0x240] sm:$0xff]
  %v659 = vld [vmem:[%s3 + $0x248] sm:$0xff]
  %v660 = vld [vmem:[%s3 + $0x250] sm:$0xff]
  %v661 = vld [vmem:[%s3 + $0x258] sm:$0xff]
  %v662 = vld [vmem:[%s3 + $0x260] sm:$0xff]
  %v663 = vld [vmem:[%s3 + $0x268] sm:$0xff]
  %v664 = vld [vmem:[%s3 + $0x270] sm:$0xff]
  %v665 = vld [vmem:[%s3 + $0x278] sm:$0xff]
  %v666 = vld [vmem:[%s3 + $0x280] sm:$0xff]
  %v667 = vld [vmem:[%s3 + $0x288] sm:$0xff]
  %v668 = vld [vmem:[%s3 + $0x290] sm:$0xff]
  %v669 = vld [vmem:[%s3 + $0x298] sm:$0xff]
  %v670 = vld [vmem:[%s3 + $0x2a0] sm:$0xff]
  %v671 = vld [vmem:[%s3 + $0x2a8] sm:$0xff]
  %v672 = vld [vmem:[%s3 + $0x2b0] sm:$0xff]
  %v673 = vld [vmem:[%s3 + $0x2b8] sm:$0xff]
  %v674 = vld [vmem:[%s3 + $0x2c0] sm:$0xff]
  %v675 = vld [vmem:[%s3 + $0x2c8] sm:$0xff]
  %v676 = vld [vmem:[%s3 + $0x2d0] sm:$0xff]
  %v677 = vld [vmem:[%s3 + $0x2d8] sm:$0xff]
  %v678 = vld [vmem:[%s3 + $0x2e0] sm:$0xff]
  %v679 = vld [vmem:[%s3 + $0x2e8] sm:$0xff]
  %v680 = vld [vmem:[%s3 + $0x2f0] sm:$0xff]
  %v681 = vld [vmem:[%s3 + $0x2f8] sm:$0xff]
  %v682 = vld [vmem:[%s3 + $0x300] sm:$0xff]
  %v683 = vld [vmem:[%s3 + $0x308] sm:$0xff]
  %v684 = vld [vmem:[%s3 + $0x310] sm:$0xff]
  %v685 = vld [vmem:[%s3 + $0x318] sm:$0xff]
  %v686 = vld [vmem:[%s3 + $0x320] sm:$0xff]
  %v687 = vld [vmem:[%s3 + $0x328] sm:$0xff]
  %v688 = vld [vmem:[%s3 + $0x330] sm:$0xff]
  %v689 = vld [vmem:[%s3 + $0x338] sm:$0xff]
  %v690 = vld [vmem:[%s3 + $0x340] sm:$0xff]
  %v691 = vld [vmem:[%s3 + $0x348] sm:$0xff]
  %v692 = vld [vmem:[%s3 + $0x350] sm:$0xff]
  %v693 = vld [vmem:[%s3 + $0x358] sm:$0xff]
  %v694 = vld [vmem:[%s3 + $0x360] sm:$0xff]
  %v695 = vld [vmem:[%s3 + $0x368] sm:$0xff]
  %v696 = vld [vmem:[%s3 + $0x370] sm:$0xff]
  %v697 = vld [vmem:[%s3 + $0x378] sm:$0xff]
  %v698 = vld [vmem:[%s3 + $0x380] sm:$0xff]
  %v699 = vld [vmem:[%s3 + $0x388] sm:$0xff]
  %v700 = vld [vmem:[%s3 + $0x390] sm:$0xff]
  %v701 = vld [vmem:[%s3 + $0x398] sm:$0xff]
  %v702 = vld [vmem:[%s3 + $0x3a0] sm:$0xff]
  %v703 = vld [vmem:[%s3 + $0x3a8] sm:$0xff]
  %v704 = vld [vmem:[%s3 + $0x3b0] sm:$0xff]
  %v705 = vld [vmem:[%s3 + $0x3b8] sm:$0xff]
  %v706 = vld [vmem:[%s3 + $0x3c0] sm:$0xff]
  %v707 = vld [vmem:[%s3 + $0x3c8] sm:$0xff]
  %v708 = vld [vmem:[%s3 + $0x3d0] sm:$0xff]
  %v709 = vld [vmem:[%s3 + $0x3d8] sm:$0xff]
  %v710 = vld [vmem:[%s3 + $0x3e0] sm:$0xff]
  %v711 = vld [vmem:[%s3 + $0x3e8] sm:$0xff]
  %v712 = vld [vmem:[%s3 + $0x3f0] sm:$0xff]
  %v713 = vld [vmem:[%s3 + $0x3f8] sm:$0xff]
  %v714 = vld [vmem:[%s3 + $0x400] sm:$0xff]
  %v715 = vld [vmem:[%s3 + $0x408] sm:$0xff]
  %v716 = vld [vmem:[%s3 + $0x410] sm:$0xff]
  %v717 = vld [vmem:[%s3 + $0x418] sm:$0xff]
  %v718 = vld [vmem:[%s3 + $0x420] sm:$0xff]
  %v719 = vld [vmem:[%s3 + $0x428] sm:$0xff]
  %v720 = vld [vmem:[%s3 + $0x430] sm:$0xff]
  %v721 = vld [vmem:[%s3 + $0x438] sm:$0xff]
  %v722 = vld [vmem:[%s3 + $0x440] sm:$0xff]
  %v723 = vld [vmem:[%s3 + $0x448] sm:$0xff]
  %v724 = vld [vmem:[%s3 + $0x450] sm:$0xff]
  %v725 = vld [vmem:[%s3 + $0x458] sm:$0xff]
  %v726 = vld [vmem:[%s3 + $0x460] sm:$0xff]
  %v727 = vld [vmem:[%s3 + $0x468] sm:$0xff]
  %v728 = vld [vmem:[%s3 + $0x470] sm:$0xff]
  %v729 = vld [vmem:[%s3 + $0x478] sm:$0xff]
  %v730 = vld [vmem:[%s3 + $0x480] sm:$0xff]
  %v731 = vld [vmem:[%s3 + $0x488] sm:$0xff]
  %v732 = vld [vmem:[%s3 + $0x490] sm:$0xff]
  %v733 = vld [vmem:[%s3 + $0x498] sm:$0xff]
  %v734 = vld [vmem:[%s3 + $0x4a0] sm:$0xff]
  %v735 = vld [vmem:[%s3 + $0x4a8] sm:$0xff]
  %v736 = vld [vmem:[%s3 + $0x4b0] sm:$0xff]
  %v737 = vld [vmem:[%s3 + $0x4b8] sm:$0xff]
  %v738 = vld [vmem:[%s3 + $0x4c0] sm:$0xff]
  %v739 = vld [vmem:[%s3 + $0x4c8] sm:$0xff]
  %v740 = vld [vmem:[%s3 + $0x4d0] sm:$0xff]
  %v741 = vld [vmem:[%s3 + $0x4d8] sm:$0xff]
  %v742 = vld [vmem:[%s3 + $0x4e0] sm:$0xff]
  %v743 = vld [vmem:[%s3 + $0x4e8] sm:$0xff]
  %v744 = vld [vmem:[%s3 + $0x4f0] sm:$0xff]
  %v745 = vld [vmem:[%s3 + $0x4f8] sm:$0xff]
  %v746 = vld [vmem:[%s3 + $0x500] sm:$0xff]
  %v747 = vld [vmem:[%s3 + $0x508] sm:$0xff]
  %v748 = vld [vmem:[%s3 + $0x510] sm:$0xff]
  %v749 = vld [vmem:[%s3 + $0x518] sm:$0xff]
  %v750 = vld [vmem:[%s3 + $0x520] sm:$0xff]
  %v751 = vld [vmem:[%s3 + $0x528] sm:$0xff]
  %v752 = vld [vmem:[%s3 + $0x530] sm:$0xff]
  %v753 = vld [vmem:[%s3 + $0x538] sm:$0xff]
  %v754 = vld [vmem:[%s3 + $0x540] sm:$0xff]
  %v755 = vld [vmem:[%s3 + $0x548] sm:$0xff]
  %v756 = vld [vmem:[%s3 + $0x550] sm:$0xff]
  %v757 = vld [vmem:[%s3 + $0x558] sm:$0xff]
  %v758 = vld [vmem:[%s3 + $0x560] sm:$0xff]
  %v759 = vld [vmem:[%s3 + $0x568] sm:$0xff]
  %v760 = vld [vmem:[%s3 + $0x570] sm:$0xff]
  %v761 = vld [vmem:[%s3 + $0x578] sm:$0xff]
  %v762 = vld [vmem:[%s3 + $0x580] sm:$0xff]
  %v763 = vld [vmem:[%s3 + $0x588] sm:$0xff]
  %v764 = vld [vmem:[%s3 + $0x590] sm:$0xff]
  %v765 = vld [vmem:[%s3 + $0x598] sm:$0xff]
  %v766 = vld [vmem:[%s3 + $0x5a0] sm:$0xff]
  %v767 = vld [vmem:[%s3 + $0x5a8] sm:$0xff]
  %v768 = vld [vmem:[%s3 + $0x5b0] sm:$0xff]
  %v769 = vld [vmem:[%s3 + $0x5b8] sm:$0xff]
  %v770 = vld [vmem:[%s3 + $0x5c0] sm:$0xff]
  %v771 = vld [vmem:[%s3 + $0x5c8] sm:$0xff]
  %v772 = vld [vmem:[%s3 + $0x5d0] sm:$0xff]
  %v773 = vld [vmem:[%s3 + $0x5d8] sm:$0xff]
  %v774 = vld [vmem:[%s3 + $0x5e0] sm:$0xff]
  %v775 = vld [vmem:[%s3 + $0x5e8] sm:$0xff]
  %v776 = vld [vmem:[%s3 + $0x5f0] sm:$0xff]
  %v777 = vld [vmem:[%s3 + $0x5f8] sm:$0xff]
  %v778 = vld [vmem:[%s3 + $0x600] sm:$0xff]
  %v779 = vld [vmem:[%s3 + $0x608] sm:$0xff]
  %v780 = vld [vmem:[%s3 + $0x610] sm:$0xff]
  %v781 = vld [vmem:[%s3 + $0x618] sm:$0xff]
  %v782 = vld [vmem:[%s3 + $0x620] sm:$0xff]
  %v783 = vld [vmem:[%s3 + $0x628] sm:$0xff]
  %v784 = vld [vmem:[%s3 + $0x630] sm:$0xff]
  %v785 = vld [vmem:[%s3 + $0x638] sm:$0xff]
  %v790 = vcombine.high %v582, %v582
  %v792 = vunpack.c.l.s4 1983009808
  %v793 = vunpack.c.0.s8 %v792
  %v794 = vlaneseq
  %v795 = vshrl.u32 %v794, 7
  %v796 = vsub.s32 %v793, %v795
  %v797 = vrot.slane %v582, %v796
  %v799 = vunpack.c.l.s4 1983009808
  %v800 = vunpack.c.0.s8 %v799
  %v801 = vlaneseq
  %v802 = vshrl.u32 %v801, 7
  %v803 = vsub.s32 %v800, %v802
  %v804 = vrot.slane %v790, %v803
  %v805 = vcombine.high %v797, %v797
  %v806 = vcombine.high %v804, %v804
  %v807 = vcombine.high %v583, %v583
  %v809 = vunpack.c.l.s4 1983009808
  %v810 = vunpack.c.0.s8 %v809
  %v811 = vlaneseq
  %v812 = vshrl.u32 %v811, 7
  %v813 = vsub.s32 %v810, %v812
  %v814 = vrot.slane %v583, %v813
  %v816 = vunpack.c.l.s4 1983009808
  %v817 = vunpack.c.0.s8 %v816
  %v818 = vlaneseq
  %v819 = vshrl.u32 %v818, 7
  %v820 = vsub.s32 %v817, %v819
  %v821 = vrot.slane %v807, %v820
  %v822 = vcombine.high %v814, %v814
  %v823 = vcombine.high %v821, %v821
  %v824 = vcombine.high %v584, %v584
  %v826 = vunpack.c.l.s4 1983009808
  %v827 = vunpack.c.0.s8 %v826
  %v828 = vlaneseq
  %v829 = vshrl.u32 %v828, 7
  %v830 = vsub.s32 %v827, %v829
  %v831 = vrot.slane %v584, %v830
  %v833 = vunpack.c.l.s4 1983009808
  %v834 = vunpack.c.0.s8 %v833
  %v835 = vlaneseq
  %v836 = vshrl.u32 %v835, 7
  %v837 = vsub.s32 %v834, %v836
  %v838 = vrot.slane %v824, %v837
  %v839 = vcombine.high %v831, %v831
  %v840 = vcombine.high %v838, %v838
  %v842 = vunpack.c.l.s4 1983009808
  %v843 = vunpack.c.0.s8 %v842
  %v844 = vlaneseq
  %v845 = vshrl.u32 %v844, 7
  %v846 = vsub.s32 %v843, %v845
  %v847 = vrot.slane %v585, %v846
  %v861 = vpack.c.bf16 %v797, %v797
  %v862 = vpack.c.bf16 %v805, %v805
  %v863 = vpack.c.bf16 %v804, %v804
  %v864 = vpack.c.bf16 %v806, %v806
  %v865 = vpack.c.bf16 %v814, %v814
  %v866 = vpack.c.bf16 %v822, %v822
  %v867 = vpack.c.bf16 %v821, %v821
  %v868 = vpack.c.bf16 %v823, %v823
  %v869 = vpack.c.bf16 %v831, %v831
  %v870 = vpack.c.bf16 %v839, %v839
  %v871 = vpack.c.bf16 %v838, %v838
  %v872 = vpack.c.bf16 %v840, %v840
  %v873 = vpack.c.bf16 %v847, %v847
  %v874 = vld [vmem:[%s4] sm:$0x3]
  %v876 = vlaneseq
  %v877 = vshrl.u32 %v876, 7
  %v878 = vsub.s32 0, %v877
  %v879 = vrot.slane %v874, %v878
  %v880 = vlaneseq
  %v881 = vshrl.u32 %v880, 7
  %v882 = vsub.s32 1, %v881
  %v883 = vrot.slane %v874, %v882
  %v1086 = vunpack.c.l.b16 %v586
  %v1087 = vunpack.c.h.b16 %v586
  %v1088 = vunpack.c.l.b16 %v587
  %v1089 = vunpack.c.h.b16 %v587
  %v1090 = vunpack.c.l.b16 %v588
  %v1091 = vunpack.c.h.b16 %v588
  %v1092 = vunpack.c.l.b16 %v589
  %v1093 = vunpack.c.h.b16 %v589
  %v1094 = vunpack.c.l.b16 %v590
  %v1095 = vunpack.c.h.b16 %v590
  %v1096 = vunpack.c.l.b16 %v591
  %v1097 = vunpack.c.h.b16 %v591
  %v1098 = vunpack.c.l.b16 %v592
  %v1099 = vunpack.c.h.b16 %v592
  %v1100 = vunpack.c.l.b16 %v593
  %v1101 = vunpack.c.h.b16 %v593
  %v1102 = vunpack.c.l.b16 %v594
  %v1103 = vunpack.c.h.b16 %v594
  %v1104 = vunpack.c.l.b16 %v595
  %v1105 = vunpack.c.h.b16 %v595
  %v1106 = vunpack.c.l.b16 %v596
  %v1107 = vunpack.c.h.b16 %v596
  %v1108 = vunpack.c.l.b16 %v597
  %v1109 = vunpack.c.h.b16 %v597
  %v1110 = vunpack.c.l.b16 %v598
  %v1111 = vunpack.c.h.b16 %v598
  %v1112 = vunpack.c.l.b16 %v599
  %v1113 = vunpack.c.h.b16 %v599
  %v1114 = vunpack.c.l.b16 %v600
  %v1115 = vunpack.c.h.b16 %v600
  %v1116 = vunpack.c.l.b16 %v601
  %v1117 = vunpack.c.h.b16 %v601
  %v1118 = vunpack.c.l.b16 %v602
  %v1119 = vunpack.c.h.b16 %v602
  %v1120 = vunpack.c.l.b16 %v603
  %v1121 = vunpack.c.h.b16 %v603
  %v1122 = vunpack.c.l.b16 %v604
  %v1123 = vunpack.c.h.b16 %v604
  %v1124 = vunpack.c.l.b16 %v605
  %v1125 = vunpack.c.h.b16 %v605
  %v1126 = vunpack.c.l.b16 %v606
  %v1127 = vunpack.c.h.b16 %v606
  %v1128 = vunpack.c.l.b16 %v607
  %v1129 = vunpack.c.h.b16 %v607
  %v1130 = vunpack.c.l.b16 %v608
  %v1131 = vunpack.c.h.b16 %v608
  %v1132 = vunpack.c.l.b16 %v609
  %v1133 = vunpack.c.h.b16 %v609
  %v1134 = vunpack.c.l.b16 %v610
  %v1135 = vunpack.c.h.b16 %v610
  %v1136 = vunpack.c.l.b16 %v611
  %v1137 = vunpack.c.h.b16 %v611
  %v1138 = vunpack.c.l.b16 %v612
  %v1139 = vunpack.c.h.b16 %v612
  %v1140 = vunpack.c.l.b16 %v613
  %v1141 = vunpack.c.h.b16 %v613
  %v1142 = vunpack.c.l.b16 %v614
  %v1143 = vunpack.c.h.b16 %v614
  %v1144 = vunpack.c.l.b16 %v615
  %v1145 = vunpack.c.h.b16 %v615
  %v1146 = vunpack.c.l.b16 %v616
  %v1147 = vunpack.c.h.b16 %v616
  %v1148 = vunpack.c.l.b16 %v617
  %v1149 = vunpack.c.h.b16 %v617
  %v1150 = vunpack.c.l.b16 %v618
  %v1151 = vunpack.c.h.b16 %v618
  %v1152 = vunpack.c.l.b16 %v619
  %v1153 = vunpack.c.h.b16 %v619
  %v1154 = vunpack.c.l.b16 %v620
  %v1155 = vunpack.c.h.b16 %v620
  %v1156 = vunpack.c.l.b16 %v621
  %v1157 = vunpack.c.h.b16 %v621
  %v1158 = vunpack.c.l.b16 %v622
  %v1159 = vunpack.c.h.b16 %v622
  %v1160 = vunpack.c.l.b16 %v623
  %v1161 = vunpack.c.h.b16 %v623
  %v1162 = vunpack.c.l.b16 %v624
  %v1163 = vunpack.c.h.b16 %v624
  %v1164 = vunpack.c.l.b16 %v625
  %v1165 = vunpack.c.h.b16 %v625
  %v1166 = vunpack.c.l.b16 %v626
  %v1167 = vunpack.c.h.b16 %v626
  %v1168 = vunpack.c.l.b16 %v627
  %v1169 = vunpack.c.h.b16 %v627
  %v1170 = vunpack.c.l.b16 %v628
  %v1171 = vunpack.c.h.b16 %v628
  %v1172 = vunpack.c.l.b16 %v629
  %v1173 = vunpack.c.h.b16 %v629
  %v1174 = vunpack.c.l.b16 %v630
  %v1175 = vunpack.c.h.b16 %v630
  %v1176 = vunpack.c.l.b16 %v631
  %v1177 = vunpack.c.h.b16 %v631
  %v1178 = vunpack.c.l.b16 %v632
  %v1179 = vunpack.c.h.b16 %v632
  %v1180 = vunpack.c.l.b16 %v633
  %v1181 = vunpack.c.h.b16 %v633
  %v1182 = vunpack.c.l.b16 %v634
  %v1183 = vunpack.c.h.b16 %v634
  %v1184 = vunpack.c.l.b16 %v635
  %v1185 = vunpack.c.h.b16 %v635
  %v1186 = vunpack.c.l.b16 %v636
  %v1187 = vunpack.c.h.b16 %v636
  %v1188 = vunpack.c.l.b16 %v637
  %v1189 = vunpack.c.h.b16 %v637
  %v1190 = vunpack.c.l.b16 %v638
  %v1191 = vunpack.c.h.b16 %v638
  %v1192 = vunpack.c.l.b16 %v639
  %v1193 = vunpack.c.h.b16 %v639
  %v1194 = vunpack.c.l.b16 %v640
  %v1195 = vunpack.c.h.b16 %v640
  %v1196 = vunpack.c.l.b16 %v641
  %v1197 = vunpack.c.h.b16 %v641
  %v1198 = vunpack.c.l.b16 %v642
  %v1199 = vunpack.c.h.b16 %v642
  %v1200 = vunpack.c.l.b16 %v643
  %v1201 = vunpack.c.h.b16 %v643
  %v1202 = vunpack.c.l.b16 %v644
  %v1203 = vunpack.c.h.b16 %v644
  %v1204 = vunpack.c.l.b16 %v645
  %v1205 = vunpack.c.h.b16 %v645
  %v1206 = vunpack.c.l.b16 %v646
  %v1207 = vunpack.c.h.b16 %v646
  %v1208 = vunpack.c.l.b16 %v647
  %v1209 = vunpack.c.h.b16 %v647
  %v1210 = vunpack.c.l.b16 %v648
  %v1211 = vunpack.c.h.b16 %v648
  %v1212 = vunpack.c.l.b16 %v649
  %v1213 = vunpack.c.h.b16 %v649
  %v1214 = vunpack.c.l.b16 %v650
  %v1215 = vunpack.c.h.b16 %v650
  %v1216 = vunpack.c.l.b16 %v651
  %v1217 = vunpack.c.h.b16 %v651
  %v1218 = vunpack.c.l.b16 %v652
  %v1219 = vunpack.c.h.b16 %v652
  %v1220 = vunpack.c.l.b16 %v653
  %v1221 = vunpack.c.h.b16 %v653
  %v1222 = vunpack.c.l.b16 %v654
  %v1223 = vunpack.c.h.b16 %v654
  %v1224 = vunpack.c.l.b16 %v655
  %v1225 = vunpack.c.h.b16 %v655
  %v1226 = vunpack.c.l.b16 %v656
  %v1227 = vunpack.c.h.b16 %v656
  %v1228 = vunpack.c.l.b16 %v657
  %v1229 = vunpack.c.h.b16 %v657
  %v1230 = vunpack.c.l.b16 %v658
  %v1231 = vunpack.c.h.b16 %v658
  %v1232 = vunpack.c.l.b16 %v659
  %v1233 = vunpack.c.h.b16 %v659
  %v1234 = vunpack.c.l.b16 %v660
  %v1235 = vunpack.c.h.b16 %v660
  %v1236 = vunpack.c.l.b16 %v661
  %v1237 = vunpack.c.h.b16 %v661
  %v1238 = vunpack.c.l.b16 %v662
  %v1239 = vunpack.c.h.b16 %v662
  %v1240 = vunpack.c.l.b16 %v663
  %v1241 = vunpack.c.h.b16 %v663
  %v1242 = vunpack.c.l.b16 %v664
  %v1243 = vunpack.c.h.b16 %v664
  %v1244 = vunpack.c.l.b16 %v665
  %v1245 = vunpack.c.h.b16 %v665
  %v1246 = vunpack.c.l.b16 %v666
  %v1247 = vunpack.c.h.b16 %v666
  %v1248 = vunpack.c.l.b16 %v667
  %v1249 = vunpack.c.h.b16 %v667
  %v1250 = vunpack.c.l.b16 %v668
  %v1251 = vunpack.c.h.b16 %v668
  %v1252 = vunpack.c.l.b16 %v669
  %v1253 = vunpack.c.h.b16 %v669
  %v1254 = vunpack.c.l.b16 %v670
  %v1255 = vunpack.c.h.b16 %v670
  %v1256 = vunpack.c.l.b16 %v671
  %v1257 = vunpack.c.h.b16 %v671
  %v1258 = vunpack.c.l.b16 %v672
  %v1259 = vunpack.c.h.b16 %v672
  %v1260 = vunpack.c.l.b16 %v673
  %v1261 = vunpack.c.h.b16 %v673
  %v1262 = vunpack.c.l.b16 %v674
  %v1263 = vunpack.c.h.b16 %v674
  %v1264 = vunpack.c.l.b16 %v675
  %v1265 = vunpack.c.h.b16 %v675
  %v1266 = vunpack.c.l.b16 %v676
  %v1267 = vunpack.c.h.b16 %v676
  %v1268 = vunpack.c.l.b16 %v677
  %v1269 = vunpack.c.h.b16 %v677
  %v1270 = vunpack.c.l.b16 %v678
  %v1271 = vunpack.c.h.b16 %v678
  %v1272 = vunpack.c.l.b16 %v679
  %v1273 = vunpack.c.h.b16 %v679
  %v1274 = vunpack.c.l.b16 %v680
  %v1275 = vunpack.c.h.b16 %v680
  %v1276 = vunpack.c.l.b16 %v681
  %v1277 = vunpack.c.h.b16 %v681
  %v1278 = vunpack.c.l.b16 %v682
  %v1279 = vunpack.c.h.b16 %v682
  %v1280 = vunpack.c.l.b16 %v683
  %v1281 = vunpack.c.h.b16 %v683
  %v1282 = vunpack.c.l.b16 %v684
  %v1283 = vunpack.c.h.b16 %v684
  %v1284 = vunpack.c.l.b16 %v685
  %v1285 = vunpack.c.h.b16 %v685
  %v1286 = vunpack.c.l.b16 %v686
  %v1287 = vunpack.c.h.b16 %v686
  %v1288 = vunpack.c.l.b16 %v687
  %v1289 = vunpack.c.h.b16 %v687
  %v1290 = vunpack.c.l.b16 %v688
  %v1291 = vunpack.c.h.b16 %v688
  %v1292 = vunpack.c.l.b16 %v689
  %v1293 = vunpack.c.h.b16 %v689
  %v1294 = vunpack.c.l.b16 %v690
  %v1295 = vunpack.c.h.b16 %v690
  %v1296 = vunpack.c.l.b16 %v691
  %v1297 = vunpack.c.h.b16 %v691
  %v1298 = vunpack.c.l.b16 %v692
  %v1299 = vunpack.c.h.b16 %v692
  %v1300 = vunpack.c.l.b16 %v693
  %v1301 = vunpack.c.h.b16 %v693
  %v1302 = vunpack.c.l.b16 %v694
  %v1303 = vunpack.c.h.b16 %v694
  %v1304 = vunpack.c.l.b16 %v695
  %v1305 = vunpack.c.h.b16 %v695
  %v1306 = vunpack.c.l.b16 %v696
  %v1307 = vunpack.c.h.b16 %v696
  %v1308 = vunpack.c.l.b16 %v697
  %v1309 = vunpack.c.h.b16 %v697
  %v1310 = vunpack.c.l.b16 %v698
  %v1311 = vunpack.c.h.b16 %v698
  %v1312 = vunpack.c.l.b16 %v699
  %v1313 = vunpack.c.h.b16 %v699
  %v1314 = vunpack.c.l.b16 %v700
  %v1315 = vunpack.c.h.b16 %v700
  %v1316 = vunpack.c.l.b16 %v701
  %v1317 = vunpack.c.h.b16 %v701
  %v1318 = vunpack.c.l.b16 %v702
  %v1319 = vunpack.c.h.b16 %v702
  %v1320 = vunpack.c.l.b16 %v703
  %v1321 = vunpack.c.h.b16 %v703
  %v1322 = vunpack.c.l.b16 %v704
  %v1323 = vunpack.c.h.b16 %v704
  %v1324 = vunpack.c.l.b16 %v705
  %v1325 = vunpack.c.h.b16 %v705
  %v1326 = vunpack.c.l.b16 %v706
  %v1327 = vunpack.c.h.b16 %v706
  %v1328 = vunpack.c.l.b16 %v707
  %v1329 = vunpack.c.h.b16 %v707
  %v1330 = vunpack.c.l.b16 %v708
  %v1331 = vunpack.c.h.b16 %v708
  %v1332 = vunpack.c.l.b16 %v709
  %v1333 = vunpack.c.h.b16 %v709
  %v1334 = vunpack.c.l.b16 %v710
  %v1335 = vunpack.c.h.b16 %v710
  %v1336 = vunpack.c.l.b16 %v711
  %v1337 = vunpack.c.h.b16 %v711
  %v1338 = vunpack.c.l.b16 %v712
  %v1339 = vunpack.c.h.b16 %v712
  %v1340 = vunpack.c.l.b16 %v713
  %v1341 = vunpack.c.h.b16 %v713
  %v1342 = vunpack.c.l.b16 %v714
  %v1343 = vunpack.c.h.b16 %v714
  %v1344 = vunpack.c.l.b16 %v715
  %v1345 = vunpack.c.h.b16 %v715
  %v1346 = vunpack.c.l.b16 %v716
  %v1347 = vunpack.c.h.b16 %v716
  %v1348 = vunpack.c.l.b16 %v717
  %v1349 = vunpack.c.h.b16 %v717
  %v1350 = vunpack.c.l.b16 %v718
  %v1351 = vunpack.c.h.b16 %v718
  %v1352 = vunpack.c.l.b16 %v719
  %v1353 = vunpack.c.h.b16 %v719
  %v1354 = vunpack.c.l.b16 %v720
  %v1355 = vunpack.c.h.b16 %v720
  %v1356 = vunpack.c.l.b16 %v721
  %v1357 = vunpack.c.h.b16 %v721
  %v1358 = vunpack.c.l.b16 %v722
  %v1359 = vunpack.c.h.b16 %v722
  %v1360 = vunpack.c.l.b16 %v723
  %v1361 = vunpack.c.h.b16 %v723
  %v1362 = vunpack.c.l.b16 %v724
  %v1363 = vunpack.c.h.b16 %v724
  %v1364 = vunpack.c.l.b16 %v725
  %v1365 = vunpack.c.h.b16 %v725
  %v1366 = vunpack.c.l.b16 %v726
  %v1367 = vunpack.c.h.b16 %v726
  %v1368 = vunpack.c.l.b16 %v727
  %v1369 = vunpack.c.h.b16 %v727
  %v1370 = vunpack.c.l.b16 %v728
  %v1371 = vunpack.c.h.b16 %v728
  %v1372 = vunpack.c.l.b16 %v729
  %v1373 = vunpack.c.h.b16 %v729
  %v1374 = vunpack.c.l.b16 %v730
  %v1375 = vunpack.c.h.b16 %v730
  %v1376 = vunpack.c.l.b16 %v731
  %v1377 = vunpack.c.h.b16 %v731
  %v1378 = vunpack.c.l.b16 %v732
  %v1379 = vunpack.c.h.b16 %v732
  %v1380 = vunpack.c.l.b16 %v733
  %v1381 = vunpack.c.h.b16 %v733
  %v1382 = vunpack.c.l.b16 %v734
  %v1383 = vunpack.c.h.b16 %v734
  %v1384 = vunpack.c.l.b16 %v735
  %v1385 = vunpack.c.h.b16 %v735
  %v1386 = vunpack.c.l.b16 %v736
  %v1387 = vunpack.c.h.b16 %v736
  %v1388 = vunpack.c.l.b16 %v737
  %v1389 = vunpack.c.h.b16 %v737
  %v1390 = vunpack.c.l.b16 %v738
  %v1391 = vunpack.c.h.b16 %v738
  %v1392 = vunpack.c.l.b16 %v739
  %v1393 = vunpack.c.h.b16 %v739
  %v1394 = vunpack.c.l.b16 %v740
  %v1395 = vunpack.c.h.b16 %v740
  %v1396 = vunpack.c.l.b16 %v741
  %v1397 = vunpack.c.h.b16 %v741
  %v1398 = vunpack.c.l.b16 %v742
  %v1399 = vunpack.c.h.b16 %v742
  %v1400 = vunpack.c.l.b16 %v743
  %v1401 = vunpack.c.h.b16 %v743
  %v1402 = vunpack.c.l.b16 %v744
  %v1403 = vunpack.c.h.b16 %v744
  %v1404 = vunpack.c.l.b16 %v745
  %v1405 = vunpack.c.h.b16 %v745
  %v1406 = vunpack.c.l.b16 %v746
  %v1407 = vunpack.c.h.b16 %v746
  %v1408 = vunpack.c.l.b16 %v747
  %v1409 = vunpack.c.h.b16 %v747
  %v1410 = vunpack.c.l.b16 %v748
  %v1411 = vunpack.c.h.b16 %v748
  %v1412 = vunpack.c.l.b16 %v749
  %v1413 = vunpack.c.h.b16 %v749
  %v1414 = vunpack.c.l.b16 %v750
  %v1415 = vunpack.c.h.b16 %v750
  %v1416 = vunpack.c.l.b16 %v751
  %v1417 = vunpack.c.h.b16 %v751
  %v1418 = vunpack.c.l.b16 %v752
  %v1419 = vunpack.c.h.b16 %v752
  %v1420 = vunpack.c.l.b16 %v753
  %v1421 = vunpack.c.h.b16 %v753
  %v1422 = vunpack.c.l.b16 %v754
  %v1423 = vunpack.c.h.b16 %v754
  %v1424 = vunpack.c.l.b16 %v755
  %v1425 = vunpack.c.h.b16 %v755
  %v1426 = vunpack.c.l.b16 %v756
  %v1427 = vunpack.c.h.b16 %v756
  %v1428 = vunpack.c.l.b16 %v757
  %v1429 = vunpack.c.h.b16 %v757
  %v1430 = vunpack.c.l.b16 %v758
  %v1431 = vunpack.c.h.b16 %v758
  %v1432 = vunpack.c.l.b16 %v759
  %v1433 = vunpack.c.h.b16 %v759
  %v1434 = vunpack.c.l.b16 %v760
  %v1435 = vunpack.c.h.b16 %v760
  %v1436 = vunpack.c.l.b16 %v761
  %v1437 = vunpack.c.h.b16 %v761
  %v1438 = vunpack.c.l.b16 %v762
  %v1439 = vunpack.c.h.b16 %v762
  %v1440 = vunpack.c.l.b16 %v763
  %v1441 = vunpack.c.h.b16 %v763
  %v1442 = vunpack.c.l.b16 %v764
  %v1443 = vunpack.c.h.b16 %v764
  %v1444 = vunpack.c.l.b16 %v765
  %v1445 = vunpack.c.h.b16 %v765
  %v1446 = vunpack.c.l.b16 %v766
  %v1447 = vunpack.c.h.b16 %v766
  %v1448 = vunpack.c.l.b16 %v767
  %v1449 = vunpack.c.h.b16 %v767
  %v1450 = vunpack.c.l.b16 %v768
  %v1451 = vunpack.c.h.b16 %v768
  %v1452 = vunpack.c.l.b16 %v769
  %v1453 = vunpack.c.h.b16 %v769
  %v1454 = vunpack.c.l.b16 %v770
  %v1455 = vunpack.c.h.b16 %v770
  %v1456 = vunpack.c.l.b16 %v771
  %v1457 = vunpack.c.h.b16 %v771
  %v1458 = vunpack.c.l.b16 %v772
  %v1459 = vunpack.c.h.b16 %v772
  %v1460 = vunpack.c.l.b16 %v773
  %v1461 = vunpack.c.h.b16 %v773
  %v1462 = vunpack.c.l.b16 %v774
  %v1463 = vunpack.c.h.b16 %v774
  %v1464 = vunpack.c.l.b16 %v775
  %v1465 = vunpack.c.h.b16 %v775
  %v1466 = vunpack.c.l.b16 %v776
  %v1467 = vunpack.c.h.b16 %v776
  %v1468 = vunpack.c.l.b16 %v777
  %v1469 = vunpack.c.h.b16 %v777
  %v1470 = vunpack.c.l.b16 %v778
  %v1471 = vunpack.c.h.b16 %v778
  %v1472 = vunpack.c.l.b16 %v779
  %v1473 = vunpack.c.h.b16 %v779
  %v1474 = vunpack.c.l.b16 %v780
  %v1475 = vunpack.c.h.b16 %v780
  %v1476 = vunpack.c.l.b16 %v781
  %v1477 = vunpack.c.h.b16 %v781
  %v1478 = vunpack.c.l.b16 %v782
  %v1479 = vunpack.c.h.b16 %v782
  %v1480 = vunpack.c.l.b16 %v783
  %v1481 = vunpack.c.h.b16 %v783
  %v1482 = vunpack.c.l.b16 %v784
  %v1483 = vunpack.c.h.b16 %v784
  %v1484 = vunpack.c.l.b16 %v785
  %v1485 = vunpack.c.h.b16 %v785
  %v1486 = vpack.c.b16 %v1088, %v1086
  %v1487 = vpack.c.b16 %v1089, %v1087
  %v1488 = vpack.c.b16 %v1092, %v1090
  %v1489 = vpack.c.b16 %v1093, %v1091
  %v1490 = vpack.c.b16 %v1096, %v1094
  %v1491 = vpack.c.b16 %v1097, %v1095
  %v1492 = vpack.c.b16 %v1100, %v1098
  %v1493 = vpack.c.b16 %v1101, %v1099
  %v1494 = vpack.c.b16 %v1104, %v1102
  %v1495 = vpack.c.b16 %v1105, %v1103
  %v1496 = vpack.c.b16 %v1108, %v1106
  %v1497 = vpack.c.b16 %v1109, %v1107
  %v1498 = vpack.c.b16 %v1112, %v1110
  %v1499 = vpack.c.b16 %v1113, %v1111
  %v1500 = vpack.c.b16 %v1116, %v1114
  %v1501 = vpack.c.b16 %v1117, %v1115
  %v1502 = vpack.c.b16 %v1120, %v1118
  %v1503 = vpack.c.b16 %v1121, %v1119
  %v1504 = vpack.c.b16 %v1124, %v1122
  %v1505 = vpack.c.b16 %v1125, %v1123
  %v1506 = vpack.c.b16 %v1128, %v1126
  %v1507 = vpack.c.b16 %v1129, %v1127
  %v1508 = vpack.c.b16 %v1132, %v1130
  %v1509 = vpack.c.b16 %v1133, %v1131
  %v1510 = vpack.c.b16 %v1136, %v1134
  %v1511 = vpack.c.b16 %v1137, %v1135
  %v1512 = vpack.c.b16 %v1140, %v1138
  %v1513 = vpack.c.b16 %v1141, %v1139
  %v1514 = vpack.c.b16 %v1144, %v1142
  %v1515 = vpack.c.b16 %v1145, %v1143
  %v1516 = vpack.c.b16 %v1148, %v1146
  %v1517 = vpack.c.b16 %v1149, %v1147
  %v1518 = vpack.c.b16 %v1152, %v1150
  %v1519 = vpack.c.b16 %v1153, %v1151
  %v1520 = vpack.c.b16 %v1156, %v1154
  %v1521 = vpack.c.b16 %v1157, %v1155
  %v1522 = vpack.c.b16 %v1160, %v1158
  %v1523 = vpack.c.b16 %v1161, %v1159
  %v1524 = vpack.c.b16 %v1164, %v1162
  %v1525 = vpack.c.b16 %v1165, %v1163
  %v1526 = vpack.c.b16 %v1168, %v1166
  %v1527 = vpack.c.b16 %v1169, %v1167
  %v1528 = vpack.c.b16 %v1172, %v1170
  %v1529 = vpack.c.b16 %v1173, %v1171
  %v1530 = vpack.c.b16 %v1176, %v1174
  %v1531 = vpack.c.b16 %v1177, %v1175
  %v1532 = vpack.c.b16 %v1180, %v1178
  %v1533 = vpack.c.b16 %v1181, %v1179
  %v1534 = vpack.c.b16 %v1184, %v1182
  %v1535 = vpack.c.b16 %v1185, %v1183
  %v1536 = vpack.c.b16 %v1188, %v1186
  %v1537 = vpack.c.b16 %v1189, %v1187
  %v1538 = vpack.c.b16 %v1192, %v1190
  %v1539 = vpack.c.b16 %v1193, %v1191
  %v1540 = vpack.c.b16 %v1196, %v1194
  %v1541 = vpack.c.b16 %v1197, %v1195
  %v1542 = vpack.c.b16 %v1200, %v1198
  %v1543 = vpack.c.b16 %v1201, %v1199
  %v1544 = vpack.c.b16 %v1204, %v1202
  %v1545 = vpack.c.b16 %v1205, %v1203
  %v1546 = vpack.c.b16 %v1208, %v1206
  %v1547 = vpack.c.b16 %v1209, %v1207
  %v1548 = vpack.c.b16 %v1212, %v1210
  %v1549 = vpack.c.b16 %v1213, %v1211
  %v1550 = vpack.c.b16 %v1216, %v1214
  %v1551 = vpack.c.b16 %v1217, %v1215
  %v1552 = vpack.c.b16 %v1220, %v1218
  %v1553 = vpack.c.b16 %v1221, %v1219
  %v1554 = vpack.c.b16 %v1224, %v1222
  %v1555 = vpack.c.b16 %v1225, %v1223
  %v1556 = vpack.c.b16 %v1228, %v1226
  %v1557 = vpack.c.b16 %v1229, %v1227
  %v1558 = vpack.c.b16 %v1232, %v1230
  %v1559 = vpack.c.b16 %v1233, %v1231
  %v1560 = vpack.c.b16 %v1236, %v1234
  %v1561 = vpack.c.b16 %v1237, %v1235
  %v1562 = vpack.c.b16 %v1240, %v1238
  %v1563 = vpack.c.b16 %v1241, %v1239
  %v1564 = vpack.c.b16 %v1244, %v1242
  %v1565 = vpack.c.b16 %v1245, %v1243
  %v1566 = vpack.c.b16 %v1248, %v1246
  %v1567 = vpack.c.b16 %v1249, %v1247
  %v1568 = vpack.c.b16 %v1252, %v1250
  %v1569 = vpack.c.b16 %v1253, %v1251
  %v1570 = vpack.c.b16 %v1256, %v1254
  %v1571 = vpack.c.b16 %v1257, %v1255
  %v1572 = vpack.c.b16 %v1260, %v1258
  %v1573 = vpack.c.b16 %v1261, %v1259
  %v1574 = vpack.c.b16 %v1264, %v1262
  %v1575 = vpack.c.b16 %v1265, %v1263
  %v1576 = vpack.c.b16 %v1268, %v1266
  %v1577 = vpack.c.b16 %v1269, %v1267
  %v1578 = vpack.c.b16 %v1272, %v1270
  %v1579 = vpack.c.b16 %v1273, %v1271
  %v1580 = vpack.c.b16 %v1276, %v1274
  %v1581 = vpack.c.b16 %v1277, %v1275
  %v1582 = vpack.c.b16 %v1280, %v1278
  %v1583 = vpack.c.b16 %v1281, %v1279
  %v1584 = vpack.c.b16 %v1284, %v1282
  %v1585 = vpack.c.b16 %v1285, %v1283
  %v1586 = vpack.c.b16 %v1288, %v1286
  %v1587 = vpack.c.b16 %v1289, %v1287
  %v1588 = vpack.c.b16 %v1292, %v1290
  %v1589 = vpack.c.b16 %v1293, %v1291
  %v1590 = vpack.c.b16 %v1296, %v1294
  %v1591 = vpack.c.b16 %v1297, %v1295
  %v1592 = vpack.c.b16 %v1300, %v1298
  %v1593 = vpack.c.b16 %v1301, %v1299
  %v1594 = vpack.c.b16 %v1304, %v1302
  %v1595 = vpack.c.b16 %v1305, %v1303
  %v1596 = vpack.c.b16 %v1308, %v1306
  %v1597 = vpack.c.b16 %v1309, %v1307
  %v1598 = vpack.c.b16 %v1312, %v1310
  %v1599 = vpack.c.b16 %v1313, %v1311
  %v1600 = vpack.c.b16 %v1316, %v1314
  %v1601 = vpack.c.b16 %v1317, %v1315
  %v1602 = vpack.c.b16 %v1320, %v1318
  %v1603 = vpack.c.b16 %v1321, %v1319
  %v1604 = vpack.c.b16 %v1324, %v1322
  %v1605 = vpack.c.b16 %v1325, %v1323
  %v1606 = vpack.c.b16 %v1328, %v1326
  %v1607 = vpack.c.b16 %v1329, %v1327
  %v1608 = vpack.c.b16 %v1332, %v1330
  %v1609 = vpack.c.b16 %v1333, %v1331
  %v1610 = vpack.c.b16 %v1336, %v1334
  %v1611 = vpack.c.b16 %v1337, %v1335
  %v1612 = vpack.c.b16 %v1340, %v1338
  %v1613 = vpack.c.b16 %v1341, %v1339
  %v1614 = vpack.c.b16 %v1344, %v1342
  %v1615 = vpack.c.b16 %v1345, %v1343
  %v1616 = vpack.c.b16 %v1348, %v1346
  %v1617 = vpack.c.b16 %v1349, %v1347
  %v1618 = vpack.c.b16 %v1352, %v1350
  %v1619 = vpack.c.b16 %v1353, %v1351
  %v1620 = vpack.c.b16 %v1356, %v1354
  %v1621 = vpack.c.b16 %v1357, %v1355
  %v1622 = vpack.c.b16 %v1360, %v1358
  %v1623 = vpack.c.b16 %v1361, %v1359
  %v1624 = vpack.c.b16 %v1364, %v1362
  %v1625 = vpack.c.b16 %v1365, %v1363
  %v1626 = vpack.c.b16 %v1368, %v1366
  %v1627 = vpack.c.b16 %v1369, %v1367
  %v1628 = vpack.c.b16 %v1372, %v1370
  %v1629 = vpack.c.b16 %v1373, %v1371
  %v1630 = vpack.c.b16 %v1376, %v1374
  %v1631 = vpack.c.b16 %v1377, %v1375
  %v1632 = vpack.c.b16 %v1380, %v1378
  %v1633 = vpack.c.b16 %v1381, %v1379
  %v1634 = vpack.c.b16 %v1384, %v1382
  %v1635 = vpack.c.b16 %v1385, %v1383
  %v1636 = vpack.c.b16 %v1388, %v1386
  %v1637 = vpack.c.b16 %v1389, %v1387
  %v1638 = vpack.c.b16 %v1392, %v1390
  %v1639 = vpack.c.b16 %v1393, %v1391
  %v1640 = vpack.c.b16 %v1396, %v1394
  %v1641 = vpack.c.b16 %v1397, %v1395
  %v1642 = vpack.c.b16 %v1400, %v1398
  %v1643 = vpack.c.b16 %v1401, %v1399
  %v1644 = vpack.c.b16 %v1404, %v1402
  %v1645 = vpack.c.b16 %v1405, %v1403
  %v1646 = vpack.c.b16 %v1408, %v1406
  %v1647 = vpack.c.b16 %v1409, %v1407
  %v1648 = vpack.c.b16 %v1412, %v1410
  %v1649 = vpack.c.b16 %v1413, %v1411
  %v1650 = vpack.c.b16 %v1416, %v1414
  %v1651 = vpack.c.b16 %v1417, %v1415
  %v1652 = vpack.c.b16 %v1420, %v1418
  %v1653 = vpack.c.b16 %v1421, %v1419
  %v1654 = vpack.c.b16 %v1424, %v1422
  %v1655 = vpack.c.b16 %v1425, %v1423
  %v1656 = vpack.c.b16 %v1428, %v1426
  %v1657 = vpack.c.b16 %v1429, %v1427
  %v1658 = vpack.c.b16 %v1432, %v1430
  %v1659 = vpack.c.b16 %v1433, %v1431
  %v1660 = vpack.c.b16 %v1436, %v1434
  %v1661 = vpack.c.b16 %v1437, %v1435
  %v1662 = vpack.c.b16 %v1440, %v1438
  %v1663 = vpack.c.b16 %v1441, %v1439
  %v1664 = vpack.c.b16 %v1444, %v1442
  %v1665 = vpack.c.b16 %v1445, %v1443
  %v1666 = vpack.c.b16 %v1448, %v1446
  %v1667 = vpack.c.b16 %v1449, %v1447
  %v1668 = vpack.c.b16 %v1452, %v1450
  %v1669 = vpack.c.b16 %v1453, %v1451
  %v1670 = vpack.c.b16 %v1456, %v1454
  %v1671 = vpack.c.b16 %v1457, %v1455
  %v1672 = vpack.c.b16 %v1460, %v1458
  %v1673 = vpack.c.b16 %v1461, %v1459
  %v1674 = vpack.c.b16 %v1464, %v1462
  %v1675 = vpack.c.b16 %v1465, %v1463
  %v1676 = vpack.c.b16 %v1468, %v1466
  %v1677 = vpack.c.b16 %v1469, %v1467
  %v1678 = vpack.c.b16 %v1472, %v1470
  %v1679 = vpack.c.b16 %v1473, %v1471
  %v1680 = vpack.c.b16 %v1476, %v1474
  %v1681 = vpack.c.b16 %v1477, %v1475
  %v1682 = vpack.c.b16 %v1480, %v1478
  %v1683 = vpack.c.b16 %v1481, %v1479
  %v1684 = vpack.c.b16 %v1484, %v1482
  %v1685 = vpack.c.b16 %v1485, %v1483
  %vm1886 = vcmask 523264
  %v1888 = vsel %vm1886, %v873, 0
  %1890 = vmatprep.subr.bf16.mxu0 %v1487
  %1891 = vmatpush1.bf16.msra.mxu0 %v1486
  %1892 = vmatprep.subr.bf16.mxu0 %v1489
  %1893 = vmatpush1.bf16.msra.mxu0 %v1488
  %1894 = vmatprep.subr.bf16.mxu0 %v1491
  %1895 = vmatpush1.bf16.msra.mxu0 %v1490
  %1896 = vmatprep.subr.bf16.mxu0 %v1493
  %1897 = vmatpush1.bf16.msra.mxu0 %v1492
  %1898 = vmatprep.subr.bf16.mxu0 %v1495
  %1899 = vmatpush1.bf16.msra.mxu0 %v1494
  %1900 = vmatprep.subr.bf16.mxu0 %v1497
  %1901 = vmatpush1.bf16.msra.mxu0 %v1496
  %1902 = vmatprep.subr.bf16.mxu0 %v1499
  %1903 = vmatpush1.bf16.msra.mxu0 %v1498
  %1904 = vmatprep.subr.bf16.mxu0 %v1501
  %1905 = vmatpush1.bf16.msra.mxu0 %v1500
  %1906 = vmatprep.subr.bf16.mxu0 %v1503
  %1907 = vmatpush1.bf16.msra.mxu0 %v1502
  %1908 = vmatprep.subr.bf16.mxu0 %v1505
  %1909 = vmatpush1.bf16.msra.mxu0 %v1504
  %1910 = vmatprep.subr.bf16.mxu0 %v1507
  %1911 = vmatpush1.bf16.msra.mxu0 %v1506
  %1912 = vmatprep.subr.bf16.mxu0 %v1509
  %1913 = vmatpush1.bf16.msra.mxu0 %v1508
  %1914 = vmatprep.subr.bf16.mxu0 %v1511
  %1915 = vmatpush1.bf16.msra.mxu0 %v1510
  %1916 = vmatprep.subr.bf16.mxu0 %v1513
  %1917 = vmatpush1.bf16.msra.mxu0 %v1512
  %1918 = vmatprep.subr.bf16.mxu0 %v1515
  %1919 = vmatpush1.bf16.msra.mxu0 %v1514
  %1920 = vmatprep.subr.bf16.mxu0 %v1517
  %1921 = vmatpush1.bf16.msra.mxu0 %v1516
  %1922 = vmatprep.mubr.bf16.mxu0 %v862
  %1923 = vmatmul.mubr.bf16.gmra.mrb[0].mxu0 %v861
  %v1924 = vpop.f32.mrb[0].mxu0
  %v1925 = vadd.f32 %v879, %v1924
  %v1926 = vpop.f32.mrb[0].mxu0
  %v1927 = vadd.f32 %v883, %v1926
  %v1928 = vpop.f32.mrb[0].mxu0
  %v1929 = vpop.f32.mrb[0].mxu0
  %1930 = vdwg.mxu0
  %1931 = vmatprep.subr.bf16.mxu0 %v1519
  %1932 = vmatpush1.bf16.msra.mxu0 %v1518
  %1933 = vmatprep.subr.bf16.mxu0 %v1521
  %1934 = vmatpush1.bf16.msra.mxu0 %v1520
  %1935 = vmatprep.subr.bf16.mxu0 %v1523
  %1936 = vmatpush1.bf16.msra.mxu0 %v1522
  %1937 = vmatprep.subr.bf16.mxu0 %v1525
  %1938 = vmatpush1.bf16.msra.mxu0 %v1524
  %1939 = vmatprep.subr.bf16.mxu0 %v1527
  %1940 = vmatpush1.bf16.msra.mxu0 %v1526
  %1941 = vmatprep.subr.bf16.mxu0 %v1529
  %1942 = vmatpush1.bf16.msra.mxu0 %v1528
  %1943 = vmatprep.subr.bf16.mxu0 %v1531
  %1944 = vmatpush1.bf16.msra.mxu0 %v1530
  %1945 = vmatprep.subr.bf16.mxu0 %v1533
  %1946 = vmatpush1.bf16.msra.mxu0 %v1532
  %1947 = vmatprep.subr.bf16.mxu0 %v1535
  %1948 = vmatpush1.bf16.msra.mxu0 %v1534
  %1949 = vmatprep.subr.bf16.mxu0 %v1537
  %1950 = vmatpush1.bf16.msra.mxu0 %v1536
  %1951 = vmatprep.subr.bf16.mxu0 %v1539
  %1952 = vmatpush1.bf16.msra.mxu0 %v1538
  %1953 = vmatprep.subr.bf16.mxu0 %v1541
  %1954 = vmatpush1.bf16.msra.mxu0 %v1540
  %1955 = vmatprep.subr.bf16.mxu0 %v1543
  %1956 = vmatpush1.bf16.msra.mxu0 %v1542
  %1957 = vmatprep.subr.bf16.mxu0 %v1545
  %1958 = vmatpush1.bf16.msra.mxu0 %v1544
  %1959 = vmatprep.subr.bf16.mxu0 %v1547
  %1960 = vmatpush1.bf16.msra.mxu0 %v1546
  %1961 = vmatprep.subr.bf16.mxu0 %v1549
  %1962 = vmatpush1.bf16.msra.mxu0 %v1548
  %1963 = vmatprep.mubr.bf16.mxu0 %v864
  %1964 = vmatmul.mubr.bf16.gmra.mrb[0].mxu0 %v863
  %v1965 = vpop.f32.mrb[0].mxu0
  %v1966 = vadd.f32 %v1925, %v1965
  %v1967 = vpop.f32.mrb[0].mxu0
  %v1968 = vadd.f32 %v1927, %v1967
  %v1969 = vpop.f32.mrb[0].mxu0
  %v1970 = vpop.f32.mrb[0].mxu0
  %1971 = vdwg.mxu0
  %1972 = vmatprep.subr.bf16.mxu0 %v1551
  %1973 = vmatpush1.bf16.msra.mxu0 %v1550
  %1974 = vmatprep.subr.bf16.mxu0 %v1553
  %1975 = vmatpush1.bf16.msra.mxu0 %v1552
  %1976 = vmatprep.subr.bf16.mxu0 %v1555
  %1977 = vmatpush1.bf16.msra.mxu0 %v1554
  %1978 = vmatprep.subr.bf16.mxu0 %v1557
  %1979 = vmatpush1.bf16.msra.mxu0 %v1556
  %1980 = vmatprep.subr.bf16.mxu0 %v1559
  %1981 = vmatpush1.bf16.msra.mxu0 %v1558
  %1982 = vmatprep.subr.bf16.mxu0 %v1561
  %1983 = vmatpush1.bf16.msra.mxu0 %v1560
  %1984 = vmatprep.subr.bf16.mxu0 %v1563
  %1985 = vmatpush1.bf16.msra.mxu0 %v1562
  %1986 = vmatprep.subr.bf16.mxu0 %v1565
  %1987 = vmatpush1.bf16.msra.mxu0 %v1564
  %1988 = vmatprep.subr.bf16.mxu0 %v1567
  %1989 = vmatpush1.bf16.msra.mxu0 %v1566
  %1990 = vmatprep.subr.bf16.mxu0 %v1569
  %1991 = vmatpush1.bf16.msra.mxu0 %v1568
  %1992 = vmatprep.subr.bf16.mxu0 %v1571
  %1993 = vmatpush1.bf16.msra.mxu0 %v1570
  %1994 = vmatprep.subr.bf16.mxu0 %v1573
  %1995 = vmatpush1.bf16.msra.mxu0 %v1572
  %1996 = vmatprep.subr.bf16.mxu0 %v1575
  %1997 = vmatpush1.bf16.msra.mxu0 %v1574
  %1998 = vmatprep.subr.bf16.mxu0 %v1577
  %1999 = vmatpush1.bf16.msra.mxu0 %v1576
  %2000 = vmatprep.subr.bf16.mxu0 %v1579
  %2001 = vmatpush1.bf16.msra.mxu0 %v1578
  %2002 = vmatprep.subr.bf16.mxu0 %v1581
  %2003 = vmatpush1.bf16.msra.mxu0 %v1580
  %2004 = vmatprep.mubr.bf16.mxu0 %v866
  %2005 = vmatmul.mubr.bf16.gmra.mrb[0].mxu0 %v865
  %v2006 = vpop.f32.mrb[0].mxu0
  %v2007 = vadd.f32 %v1966, %v2006
  %v2008 = vpop.f32.mrb[0].mxu0
  %v2009 = vadd.f32 %v1968, %v2008
  %v2010 = vpop.f32.mrb[0].mxu0
  %v2011 = vpop.f32.mrb[0].mxu0
  %2012 = vdwg.mxu0
  %2013 = vmatprep.subr.bf16.mxu0 %v1583
  %2014 = vmatpush1.bf16.msra.mxu0 %v1582
  %2015 = vmatprep.subr.bf16.mxu0 %v1585
  %2016 = vmatpush1.bf16.msra.mxu0 %v1584
  %2017 = vmatprep.subr.bf16.mxu0 %v1587
  %2018 = vmatpush1.bf16.msra.mxu0 %v1586
  %2019 = vmatprep.subr.bf16.mxu0 %v1589
  %2020 = vmatpush1.bf16.msra.mxu0 %v1588
  %2021 = vmatprep.subr.bf16.mxu0 %v1591
  %2022 = vmatpush1.bf16.msra.mxu0 %v1590
  %2023 = vmatprep.subr.bf16.mxu0 %v1593
  %2024 = vmatpush1.bf16.msra.mxu0 %v1592
  %2025 = vmatprep.subr.bf16.mxu0 %v1595
  %2026 = vmatpush1.bf16.msra.mxu0 %v1594
  %2027 = vmatprep.subr.bf16.mxu0 %v1597
  %2028 = vmatpush1.bf16.msra.mxu0 %v1596
  %2029 = vmatprep.subr.bf16.mxu0 %v1599
  %2030 = vmatpush1.bf16.msra.mxu0 %v1598
  %2031 = vmatprep.subr.bf16.mxu0 %v1601
  %2032 = vmatpush1.bf16.msra.mxu0 %v1600
  %2033 = vmatprep.subr.bf16.mxu0 %v1603
  %2034 = vmatpush1.bf16.msra.mxu0 %v1602
  %2035 = vmatprep.subr.bf16.mxu0 %v1605
  %2036 = vmatpush1.bf16.msra.mxu0 %v1604
  %2037 = vmatprep.subr.bf16.mxu0 %v1607
  %2038 = vmatpush1.bf16.msra.mxu0 %v1606
  %2039 = vmatprep.subr.bf16.mxu0 %v1609
  %2040 = vmatpush1.bf16.msra.mxu0 %v1608
  %2041 = vmatprep.subr.bf16.mxu0 %v1611
  %2042 = vmatpush1.bf16.msra.mxu0 %v1610
  %2043 = vmatprep.subr.bf16.mxu0 %v1613
  %2044 = vmatpush1.bf16.msra.mxu0 %v1612
  %2045 = vmatprep.mubr.bf16.mxu0 %v868
  %2046 = vmatmul.mubr.bf16.gmra.mrb[0].mxu0 %v867
  %v2047 = vpop.f32.mrb[0].mxu0
  %v2048 = vadd.f32 %v2007, %v2047
  %v2049 = vpop.f32.mrb[0].mxu0
  %v2050 = vadd.f32 %v2009, %v2049
  %v2051 = vpop.f32.mrb[0].mxu0
  %v2052 = vpop.f32.mrb[0].mxu0
  %2053 = vdwg.mxu0
  %2054 = vmatprep.subr.bf16.mxu0 %v1615
  %2055 = vmatpush1.bf16.msra.mxu0 %v1614
  %2056 = vmatprep.subr.bf16.mxu0 %v1617
  %2057 = vmatpush1.bf16.msra.mxu0 %v1616
  %2058 = vmatprep.subr.bf16.mxu0 %v1619
  %2059 = vmatpush1.bf16.msra.mxu0 %v1618
  %2060 = vmatprep.subr.bf16.mxu0 %v1621
  %2061 = vmatpush1.bf16.msra.mxu0 %v1620
  %2062 = vmatprep.subr.bf16.mxu0 %v1623
  %2063 = vmatpush1.bf16.msra.mxu0 %v1622
  %2064 = vmatprep.subr.bf16.mxu0 %v1625
  %2065 = vmatpush1.bf16.msra.mxu0 %v1624
  %2066 = vmatprep.subr.bf16.mxu0 %v1627
  %2067 = vmatpush1.bf16.msra.mxu0 %v1626
  %2068 = vmatprep.subr.bf16.mxu0 %v1629
  %2069 = vmatpush1.bf16.msra.mxu0 %v1628
  %2070 = vmatprep.subr.bf16.mxu0 %v1631
  %2071 = vmatpush1.bf16.msra.mxu0 %v1630
  %2072 = vmatprep.subr.bf16.mxu0 %v1633
  %2073 = vmatpush1.bf16.msra.mxu0 %v1632
  %2074 = vmatprep.subr.bf16.mxu0 %v1635
  %2075 = vmatpush1.bf16.msra.mxu0 %v1634
  %2076 = vmatprep.subr.bf16.mxu0 %v1637
  %2077 = vmatpush1.bf16.msra.mxu0 %v1636
  %2078 = vmatprep.subr.bf16.mxu0 %v1639
  %2079 = vmatpush1.bf16.msra.mxu0 %v1638
  %2080 = vmatprep.subr.bf16.mxu0 %v1641
  %2081 = vmatpush1.bf16.msra.mxu0 %v1640
  %2082 = vmatprep.subr.bf16.mxu0 %v1643
  %2083 = vmatpush1.bf16.msra.mxu0 %v1642
  %2084 = vmatprep.subr.bf16.mxu0 %v1645
  %2085 = vmatpush1.bf16.msra.mxu0 %v1644
  %2086 = vmatprep.mubr.bf16.mxu0 %v870
  %2087 = vmatmul.mubr.bf16.gmra.mrb[0].mxu0 %v869
  %v2088 = vpop.f32.mrb[0].mxu0
  %v2089 = vadd.f32 %v2048, %v2088
  %v2090 = vpop.f32.mrb[0].mxu0
  %v2091 = vadd.f32 %v2050, %v2090
  %v2092 = vpop.f32.mrb[0].mxu0
  %v2093 = vpop.f32.mrb[0].mxu0
  %2094 = vdwg.mxu0
  %2095 = vmatprep.subr.bf16.mxu0 %v1647
  %2096 = vmatpush1.bf16.msra.mxu0 %v1646
  %2097 = vmatprep.subr.bf16.mxu0 %v1649
  %2098 = vmatpush1.bf16.msra.mxu0 %v1648
  %2099 = vmatprep.subr.bf16.mxu0 %v1651
  %2100 = vmatpush1.bf16.msra.mxu0 %v1650
  %2101 = vmatprep.subr.bf16.mxu0 %v1653
  %2102 = vmatpush1.bf16.msra.mxu0 %v1652
  %2103 = vmatprep.subr.bf16.mxu0 %v1655
  %2104 = vmatpush1.bf16.msra.mxu0 %v1654
  %2105 = vmatprep.subr.bf16.mxu0 %v1657
  %2106 = vmatpush1.bf16.msra.mxu0 %v1656
  %2107 = vmatprep.subr.bf16.mxu0 %v1659
  %2108 = vmatpush1.bf16.msra.mxu0 %v1658
  %2109 = vmatprep.subr.bf16.mxu0 %v1661
  %2110 = vmatpush1.bf16.msra.mxu0 %v1660
  %2111 = vmatprep.subr.bf16.mxu0 %v1663
  %2112 = vmatpush1.bf16.msra.mxu0 %v1662
  %2113 = vmatprep.subr.bf16.mxu0 %v1665
  %2114 = vmatpush1.bf16.msra.mxu0 %v1664
  %2115 = vmatprep.subr.bf16.mxu0 %v1667
  %2116 = vmatpush1.bf16.msra.mxu0 %v1666
  %2117 = vmatprep.subr.bf16.mxu0 %v1669
  %2118 = vmatpush1.bf16.msra.mxu0 %v1668
  %2119 = vmatprep.subr.bf16.mxu0 %v1671
  %2120 = vmatpush1.bf16.msra.mxu0 %v1670
  %2121 = vmatprep.subr.bf16.mxu0 %v1673
  %2122 = vmatpush1.bf16.msra.mxu0 %v1672
  %2123 = vmatprep.subr.bf16.mxu0 %v1675
  %2124 = vmatpush1.bf16.msra.mxu0 %v1674
  %2125 = vmatprep.subr.bf16.mxu0 %v1677
  %2126 = vmatpush1.bf16.msra.mxu0 %v1676
  %2127 = vmatprep.mubr.bf16.mxu0 %v872
  %2128 = vmatmul.mubr.bf16.gmra.mrb[0].mxu0 %v871
  %v2129 = vpop.f32.mrb[0].mxu0
  %v2130 = vadd.f32 %v2089, %v2129
  %v2131 = vpop.f32.mrb[0].mxu0
  %v2132 = vadd.f32 %v2091, %v2131
  %v2133 = vpop.f32.mrb[0].mxu0
  %v2134 = vpop.f32.mrb[0].mxu0
  %2135 = vdwg.mxu0
  %2136 = vmatprep.subr.bf16.mxu0 %v1679
  %2137 = vmatpush1.bf16.msra.mxu0 %v1678
  %2138 = vmatprep.subr.bf16.mxu0 %v1681
  %2139 = vmatpush1.bf16.msra.mxu0 %v1680
  %2140 = vmatprep.subr.bf16.mxu0 %v1683
  %2141 = vmatpush1.bf16.msra.mxu0 %v1682
  %2142 = vmatprep.subr.bf16.mxu0 %v1685
  %2143 = vmatpush1.bf16.msra.mxu0 %v1684
  %2144 = vmatprep.subr.bf16.mxu0 0
  %2145 = vmatpush1.bf16.msra.mxu0 0
  %2146 = vmatprep.subr.bf16.mxu0 0
  %2147 = vmatpush1.bf16.msra.mxu0 0
  %2148 = vmatprep.subr.bf16.mxu0 0
  %2149 = vmatpush1.bf16.msra.mxu0 0
  %2150 = vmatprep.subr.bf16.mxu0 0
  %2151 = vmatpush1.bf16.msra.mxu0 0
  %2152 = vmatprep.subr.bf16.mxu0 0
  %2153 = vmatpush1.bf16.msra.mxu0 0
  %2154 = vmatprep.subr.bf16.mxu0 0
  %2155 = vmatpush1.bf16.msra.mxu0 0
  %2156 = vmatprep.subr.bf16.mxu0 0
  %2157 = vmatpush1.bf16.msra.mxu0 0
  %2158 = vmatprep.subr.bf16.mxu0 0
  %2159 = vmatpush1.bf16.msra.mxu0 0
  %2160 = vmatprep.subr.bf16.mxu0 0
  %2161 = vmatpush1.bf16.msra.mxu0 0
  %2162 = vmatprep.subr.bf16.mxu0 0
  %2163 = vmatpush1.bf16.msra.mxu0 0
  %2164 = vmatprep.subr.bf16.mxu0 0
  %2165 = vmatpush1.bf16.msra.mxu0 0
  %2166 = vmatprep.subr.bf16.mxu0 0
  %2167 = vmatpush1.bf16.msra.mxu0 0
  %2168 = vmatprep.mubr.bf16.mxu0 0
  %2169 = vmatmul.mubr.bf16.gmra.mrb[0].mxu0 %v1888
  %v2170 = vpop.f32.mrb[0].mxu0
  %v2171 = vadd.f32 %v2130, %v2170
  %v2172 = vpop.f32.mrb[0].mxu0
  %v2173 = vadd.f32 %v2132, %v2172
  %v2174 = vpop.f32.mrb[0].mxu0
  %v2175 = vpop.f32.mrb[0].mxu0
  %2176 = vdwg.mxu0
  %v2177 = vmax.f32 %v2171, -1.0
  %v2178 = vmax.f32 %v2173, -1.0
  %v2179 = vmin.f32 %v2177, 1.0
  %v2180 = vmin.f32 %v2178, 1.0
  %v2181 = vld [vmem:[%s5] sm:$0xf]
  %v2182 = vld [vmem:[%s5 + $0x4] sm:$0xf]
  %v2183 = vld [vmem:[%s5 + $0x8] sm:$0xf]
  %v2184 = vld [vmem:[%s5 + $0xc] sm:$0xf]
  %v2185 = vld [vmem:[%s5 + $0x10] sm:$0xf]
  %v2186 = vld [vmem:[%s5 + $0x14] sm:$0xf]
  %v2187 = vld [vmem:[%s5 + $0x18] sm:$0xf]
  %v2188 = vld [vmem:[%s5 + $0x1c] sm:$0xf]
  %v2189 = vld [vmem:[%s5 + $0x20] sm:$0xf]
  %v2190 = vld [vmem:[%s5 + $0x24] sm:$0xf]
  %v2191 = vld [vmem:[%s5 + $0x28] sm:$0xf]
  %v2192 = vld [vmem:[%s5 + $0x2c] sm:$0xf]
  %v2193 = vld [vmem:[%s5 + $0x30] sm:$0xf]
  %v2194 = vld [vmem:[%s5 + $0x34] sm:$0xf]
  %v2195 = vld [vmem:[%s5 + $0x38] sm:$0xf]
  %v2196 = vld [vmem:[%s5 + $0x3c] sm:$0xf]
  %v2197 = vld [vmem:[%s5 + $0x40] sm:$0xf]
  %v2198 = vld [vmem:[%s5 + $0x44] sm:$0xf]
  %v2199 = vld [vmem:[%s5 + $0x48] sm:$0xf]
  %v2200 = vld [vmem:[%s5 + $0x4c] sm:$0xf]
  %v2201 = vld [vmem:[%s5 + $0x50] sm:$0xf]
  %v2202 = vld [vmem:[%s5 + $0x54] sm:$0xf]
  %v2203 = vld [vmem:[%s5 + $0x58] sm:$0xf]
  %v2204 = vld [vmem:[%s5 + $0x5c] sm:$0xf]
  %v2205 = vld [vmem:[%s5 + $0x60] sm:$0xf]
  %v2206 = vld [vmem:[%s5 + $0x64] sm:$0xf]
  %v2207 = vld [vmem:[%s5 + $0x68] sm:$0xf]
  %v2208 = vld [vmem:[%s5 + $0x6c] sm:$0xf]
  %v2209 = vld [vmem:[%s5 + $0x70] sm:$0xf]
  %v2210 = vld [vmem:[%s5 + $0x74] sm:$0xf]
  %v2211 = vld [vmem:[%s5 + $0x78] sm:$0xf]
  %v2212 = vld [vmem:[%s5 + $0x7c] sm:$0xf]
  %v2213 = vpack.c.bf16 %v2179, %v2179
  %v2214 = vpack.c.bf16 %v2180, %v2180
  %v2215 = vld [vmem:[%s6] sm:$0x1]
  %v2217 = vlaneseq
  %v2218 = vshrl.u32 %v2217, 7
  %v2219 = vsub.s32 0, %v2218
  %v2220 = vrot.slane %v2215, %v2219
  %v2254 = vunpack.c.l.b16 %v2181
  %v2255 = vunpack.c.l.b16 %v2182
  %v2256 = vunpack.c.l.b16 %v2183
  %v2257 = vunpack.c.l.b16 %v2184
  %v2258 = vunpack.c.l.b16 %v2185
  %v2259 = vunpack.c.l.b16 %v2186
  %v2260 = vunpack.c.l.b16 %v2187
  %v2261 = vunpack.c.l.b16 %v2188
  %v2262 = vunpack.c.l.b16 %v2189
  %v2263 = vunpack.c.l.b16 %v2190
  %v2264 = vunpack.c.l.b16 %v2191
  %v2265 = vunpack.c.l.b16 %v2192
  %v2266 = vunpack.c.l.b16 %v2193
  %v2267 = vunpack.c.l.b16 %v2194
  %v2268 = vunpack.c.l.b16 %v2195
  %v2269 = vunpack.c.l.b16 %v2196
  %v2270 = vunpack.c.l.b16 %v2197
  %v2271 = vunpack.c.l.b16 %v2198
  %v2272 = vunpack.c.l.b16 %v2199
  %v2273 = vunpack.c.l.b16 %v2200
  %v2274 = vunpack.c.l.b16 %v2201
  %v2275 = vunpack.c.l.b16 %v2202
  %v2276 = vunpack.c.l.b16 %v2203
  %v2277 = vunpack.c.l.b16 %v2204
  %v2278 = vunpack.c.l.b16 %v2205
  %v2279 = vunpack.c.l.b16 %v2206
  %v2280 = vunpack.c.l.b16 %v2207
  %v2281 = vunpack.c.l.b16 %v2208
  %v2282 = vunpack.c.l.b16 %v2209
  %v2283 = vunpack.c.l.b16 %v2210
  %v2284 = vunpack.c.l.b16 %v2211
  %v2285 = vunpack.c.l.b16 %v2212
  %v2286 = vpack.c.b16 %v2255, %v2254
  %v2287 = vpack.c.b16 %v2257, %v2256
  %v2288 = vpack.c.b16 %v2259, %v2258
  %v2289 = vpack.c.b16 %v2261, %v2260
  %v2290 = vpack.c.b16 %v2263, %v2262
  %v2291 = vpack.c.b16 %v2265, %v2264
  %v2292 = vpack.c.b16 %v2267, %v2266
  %v2293 = vpack.c.b16 %v2269, %v2268
  %v2294 = vpack.c.b16 %v2271, %v2270
  %v2295 = vpack.c.b16 %v2273, %v2272
  %v2296 = vpack.c.b16 %v2275, %v2274
  %v2297 = vpack.c.b16 %v2277, %v2276
  %v2298 = vpack.c.b16 %v2279, %v2278
  %v2299 = vpack.c.b16 %v2281, %v2280
  %v2300 = vpack.c.b16 %v2283, %v2282
  %v2301 = vpack.c.b16 %v2285, %v2284
  %2318 = vmatprep.subr.bf16.mxu0 0
  %2319 = vmatpush1.bf16.msra.mxu0 %v2286
  %2320 = vmatprep.subr.bf16.mxu0 0
  %2321 = vmatpush1.bf16.msra.mxu0 %v2287
  %2322 = vmatprep.subr.bf16.mxu0 0
  %2323 = vmatpush1.bf16.msra.mxu0 %v2288
  %2324 = vmatprep.subr.bf16.mxu0 0
  %2325 = vmatpush1.bf16.msra.mxu0 %v2289
  %2326 = vmatprep.subr.bf16.mxu0 0
  %2327 = vmatpush1.bf16.msra.mxu0 %v2290
  %2328 = vmatprep.subr.bf16.mxu0 0
  %2329 = vmatpush1.bf16.msra.mxu0 %v2291
  %2330 = vmatprep.subr.bf16.mxu0 0
  %2331 = vmatpush1.bf16.msra.mxu0 %v2292
  %2332 = vmatprep.subr.bf16.mxu0 0
  %2333 = vmatpush1.bf16.msra.mxu0 %v2293
  %2334 = vmatprep.subr.bf16.mxu0 0
  %2335 = vmatpush1.bf16.msra.mxu0 %v2294
  %2336 = vmatprep.subr.bf16.mxu0 0
  %2337 = vmatpush1.bf16.msra.mxu0 %v2295
  %2338 = vmatprep.subr.bf16.mxu0 0
  %2339 = vmatpush1.bf16.msra.mxu0 %v2296
  %2340 = vmatprep.subr.bf16.mxu0 0
  %2341 = vmatpush1.bf16.msra.mxu0 %v2297
  %2342 = vmatprep.subr.bf16.mxu0 0
  %2343 = vmatpush1.bf16.msra.mxu0 %v2298
  %2344 = vmatprep.subr.bf16.mxu0 0
  %2345 = vmatpush1.bf16.msra.mxu0 %v2299
  %2346 = vmatprep.subr.bf16.mxu0 0
  %2347 = vmatpush1.bf16.msra.mxu0 %v2300
  %2348 = vmatprep.subr.bf16.mxu0 0
  %2349 = vmatpush1.bf16.msra.mxu0 %v2301
  %2350 = vmatprep.mubr.bf16.mxu0 %v2214
  %2351 = vmatmul.mubr.bf16.gmra.mrb[0].mxu0 %v2213
  %v2352 = vpop.f32.mrb[0].mxu0
  %v2353 = vadd.f32 %v2220, %v2352
  %v2354 = vpop.f32.mrb[0].mxu0
  %v2355 = vpop.f32.mrb[0].mxu0
  %v2356 = vpop.f32.mrb[0].mxu0
  %2357 = vdwg.mxu0
  %2358 = vst.msk [vmem:[%s7] sm:$0x3] %vm366, %v2353
  // Predicated region
  $region30: #{encoder_forward.5} parent=0 // pred_check
    _
  $region31: #{encoder_forward.5} parent=0 // pred_check_branch
    %2360 = sbr.rel (0) target = $region33
  $region32: #{encoder_forward.5} parent=0 // pred_region
    _
  $region33: #{encoder_forward.5} parent=0 // pred_fallthru
    _
  // Predicated region
  $region34: #{encoder_forward.5} parent=0 // pred_check
    _
  $region35: #{encoder_forward.5} parent=0 // pred_check_branch
    %2362 = sbr.rel (0) target = $region37
  $region36: #{encoder_forward.5} parent=0 // pred_region
    _
  $region37: #{encoder_forward.5} parent=0 // pred_fallthru
    _

</llo_original>
